<compile_context>
chip_gen: v7x
topology: tpu7x:2x2x1
jax: 0.10.0
libtpu: 0.0.40
codegen_flags: <defaults>
</compile_context>

<pallas_src>
import functools

import jax
import jax.numpy as jnp
from jax import lax
from jax.experimental import pallas as pl
from jax.experimental.pallas import tpu as pltpu

LANE_PAD = 128   # decoder logits lane-padded to a full vreg lane width
UNROLL = 8       # bounded unroll for the recurrent loops


def elmo_classifier_kernel(
    # inputs
    x_ref,        # (S, BT, E) time-major embeddings, f32 VMEM
    sw_ref,       # (3,) scalar mixing weights, f32 SMEM
    w1ih_ref, w1hh_ref, b1_ref,      # ELMo lstm1: combined W_ih, block-diag W_hh, bias
    w2ih_ref, w2hh_ref, b2_ref,      # ELMo lstm2
    wcih_ref, wchh_ref, bc_ref,      # classifier LSTM (H -> 2H)
    wd_ref, bd_ref,                  # decoder Linear (2H -> 128, zero-padded past C)
    # outputs
    out_ref,                         # (BT, 128) lane-padded logits
    # scratch
    l1_ref, l2_ref,                  # (S, BT, E) bidirectional layer outputs
    proj_ref,                        # (S, BT, 8E) hoisted projections (reused)
):
    S, BT, E = x_ref.shape
    hd = E // 2          # per-direction hidden size of the ELMo BiLSTMs
    Hc = 2 * E           # classifier LSTM hidden size
    G = 4 * hd           # per-direction gate width (= 2E)

    def cell(g, c, H):
        # Gate column order [i, f, o, g] (reordered at param-prep time):
        # one wide sigmoid launch + two tanh launches per cell (EUP-friendly).
        #   c' = f*c + i*g ; h' = o*tanh(c')   (same math as PyTorch LSTMCell)
        sig = jax.nn.sigmoid(g[:, 0:3 * H])
        i_g = sig[:, 0:H]
        f_g = sig[:, H:2 * H]
        o_g = sig[:, 2 * H:3 * H]
        g_g = jnp.tanh(g[:, 3 * H:4 * H])
        c_n = f_g * c + i_g * g_g
        h_n = o_g * jnp.tanh(c_n)
        return h_n, c_n

    def project(x3d, w_ref, b_ref):
        # Hoisted non-recurrent projection: one (S*BT, in) @ (in, cols) bf16
        # MXU matmul for all timesteps, accumulated in f32.
        sdim, bdim, idim = x3d.shape
        cols = w_ref.shape[1]
        p = (jnp.dot(x3d.reshape(sdim * bdim, idim).astype(jnp.bfloat16),
                     w_ref[...], preferred_element_type=jnp.float32)
             + b_ref[...])
        return p.reshape(sdim, bdim, cols)

    def run_bidir(whh_ref, out_l_ref):
        # Fused fwd+bwd recurrence: ONE block-diagonal h@W_hh MXU op per step;
        # hidden states are written straight into the two lane-halves of the
        # layer output (no per-direction scratch, no concatenate pass).
        whh = whh_ref[...]                                   # (2hd, 8hd) bf16

        def step(i, carry):
            hf, cf, hb, cb = carry                           # f32 carries
            tb = S - 1 - i
            h_cat = jnp.concatenate([hf, hb], axis=-1).astype(jnp.bfloat16)
            rec = jnp.dot(h_cat, whh, preferred_element_type=jnp.float32)
            gf = proj_ref[i, :, 0:G] + rec[:, 0:G]
            gb = proj_ref[tb, :, G:2 * G] + rec[:, G:2 * G]
            hf_n, cf_n = cell(gf, cf, hd)
            hb_n, cb_n = cell(gb, cb, hd)
            out_l_ref[i, :, 0:hd] = hf_n
            out_l_ref[tb, :, hd:E] = hb_n
            return hf_n, cf_n, hb_n, cb_n

        z = jnp.zeros((BT, hd), jnp.float32)
        lax.fori_loop(0, S, step, (z, z, z, z), unroll=min(UNROLL, S))

    x = x_ref[...]                                           # (S, BT, E) f32

    # --- ELMo layer 1 (bidirectional) over the embeddings ---
    proj_ref[:, :, 0:2 * G] = project(x, w1ih_ref, b1_ref)
    run_bidir(w1hh_ref, l1_ref)

    # --- ELMo layer 2 (bidirectional) over layer-1 output ---
    l1 = l1_ref[...]
    proj_ref[:, :, 0:2 * G] = project(l1, w2ih_ref, b2_ref)
    run_bidir(w2hh_ref, l2_ref)

    # --- scalar mixture, vectorized over all S timesteps at once ---
    mix = sw_ref[0] * l1 + sw_ref[1] * l2_ref[...] + sw_ref[2] * x
    proj_ref[...] = project(mix, wcih_ref, bc_ref)           # (S, BT, 4*Hc)

    # --- classifier LSTM: only the final hidden state is needed ---
    whh_c = wchh_ref[...]                                    # (Hc, 4Hc) bf16

    def cstep(i, carry):
        h, c = carry
        g = proj_ref[i] + jnp.dot(h.astype(jnp.bfloat16), whh_c,
                                  preferred_element_type=jnp.float32)
        return cell(g, c, Hc)

    z = jnp.zeros((BT, Hc), jnp.float32)
    h_fin, _ = lax.fori_loop(0, S, cstep, (z, z), unroll=min(UNROLL, S))

    # --- decoder (dropout is identity in eval); output lane-padded to 128 ---
    out_ref[...] = (jnp.dot(h_fin.astype(jnp.bfloat16), wd_ref[...],
                            preferred_element_type=jnp.float32) + bd_ref[...])


# ----------------------------------------------------------------------------
# Parameter construction (PyTorch layout) and kernel-layout preparation.
# ----------------------------------------------------------------------------

def _reorder_ifog(w, H):
    """PyTorch LSTM gate row-blocks [i, f, g, o] -> kernel order [i, f, o, g]."""
    return jnp.concatenate([w[0:H], w[H:2 * H], w[3 * H:4 * H], w[2 * H:3 * H]],
                           axis=0)


def _lstm_dir_params(key, in_dim, hid, scale=0.1):
    """Random LSTM direction params in PyTorch layout (w_ih, w_hh, b_ih, b_hh)."""
    k1, k2, k3, k4 = jax.random.split(key, 4)
    return (scale * jax.random.normal(k1, (4 * hid, in_dim), jnp.float32),
            scale * jax.random.normal(k2, (4 * hid, hid), jnp.float32),
            scale * jax.random.normal(k3, (4 * hid,), jnp.float32),
            scale * jax.random.normal(k4, (4 * hid,), jnp.float32))


def make_params(key, vocab_size, embedding_dim, hidden_dim, num_classes):
    assert embedding_dim == hidden_dim, "combined ELMo output feeds an LSTM with input=hidden_dim"
    assert embedding_dim % 2 == 0
    hd = embedding_dim // 2
    keys = jax.random.split(key, 9)
    return {
        "embedding": 0.1 * jax.random.normal(keys[0], (vocab_size, embedding_dim), jnp.float32),
        "scalar_weights": jax.random.normal(keys[1], (3,), jnp.float32),
        "lstm1_f": _lstm_dir_params(keys[2], embedding_dim, hd),
        "lstm1_b": _lstm_dir_params(keys[3], embedding_dim, hd),
        "lstm2_f": _lstm_dir_params(keys[4], embedding_dim, hd),
        "lstm2_b": _lstm_dir_params(keys[5], embedding_dim, hd),
        "lstm_cls": _lstm_dir_params(keys[6], hidden_dim, 2 * hidden_dim),
        "decoder_w": 0.1 * jax.random.normal(keys[7], (num_classes, 2 * hidden_dim), jnp.float32),
        "decoder_b": 0.1 * jax.random.normal(keys[8], (num_classes,), jnp.float32),
    }


def _prep_bilstm(fwd, bwd, hd):
    """Combined fwd+bwd W_ih (in, 8hd), block-diag W_hh (2hd, 8hd), bias (1, 8hd)."""
    wih_f, whh_f, bih_f, bhh_f = fwd
    wih_b, whh_b, bih_b, bhh_b = bwd
    wih = jnp.concatenate([_reorder_ifog(wih_f, hd).T,
                           _reorder_ifog(wih_b, hd).T], axis=1).astype(jnp.bfloat16)
    whh = jnp.zeros((2 * hd, 8 * hd), jnp.float32)
    whh = whh.at[:hd, :4 * hd].set(_reorder_ifog(whh_f, hd).T)
    whh = whh.at[hd:, 4 * hd:].set(_reorder_ifog(whh_b, hd).T)
    b = jnp.concatenate([_reorder_ifog(bih_f + bhh_f, hd),
                         _reorder_ifog(bih_b + bhh_b, hd)]).reshape(1, 8 * hd)
    return wih, whh.astype(jnp.bfloat16), b


def _prep_lstm(raw, hid):
    """Unidirectional LSTM: W_ih (in, 4H) bf16, W_hh (H, 4H) bf16, bias (1, 4H) f32."""
    wih, whh, bih, bhh = raw
    return (_reorder_ifog(wih, hid).T.astype(jnp.bfloat16),
            _reorder_ifog(whh, hid).T.astype(jnp.bfloat16),
            _reorder_ifog(bih + bhh, hid).reshape(1, 4 * hid))


def _round_up(x, m):
    return -(-x // m) * m


def _choose_batch_tile(batch):
    # Sublane-aligned (8) tile. For larger batches pick the biggest tile <= 128
    # that still gives >= 2 grid steps so v7x can shard the "parallel" batch
    # axis across both TensorCores; this also fills more MXU rows per step.
    if batch <= 8:
        return 8
    return min(128, _round_up(-(-batch // 2), 8))


@functools.partial(jax.jit, static_argnames=("num_classes",))
def elmo_classifier_forward(input_ids, params, *, num_classes):
    B, S = input_ids.shape
    E = params["embedding"].shape[1]
    hd = E // 2
    BT = _choose_batch_tile(B)
    B_pad = _round_up(B, BT)

    # Pad the batch and gather embeddings directly in time-major order.
    # TODO(synk): move the gather in-kernel (scalar-prefetched ids + pl.ANY
    # embedding table with per-row DMA) to avoid the HBM round-trip of (S,B,E).
    ids = jnp.pad(input_ids, ((0, B_pad - B), (0, 0)))
    x = jnp.take(params["embedding"], ids.T, axis=0)          # (S, B_pad, E) f32

    # Kernel-layout weights: [i,f,o,g] gate order, bf16 MXU operands, fused
    # fwd/bwd W_ih and block-diagonal W_hh per BiLSTM layer.
    w1ih, w1hh, b1 = _prep_bilstm(params["lstm1_f"], params["lstm1_b"], hd)
    w2ih, w2hh, b2 = _prep_bilstm(params["lstm2_f"], params["lstm2_b"], hd)
    wcih, wchh, bc = _prep_lstm(params["lstm_cls"], 2 * E)

    # Decoder lane-padded to 128 output columns so the final store is dense.
    wd = params["decoder_w"].T                                # (2E, C)
    wd_pad = jnp.zeros((2 * E, LANE_PAD), jnp.float32).at[:, :num_classes].set(wd)
    wd_pad = wd_pad.astype(jnp.bfloat16)
    bd_pad = jnp.zeros((1, LANE_PAD), jnp.float32).at[:, :num_classes].set(
        params["decoder_b"].reshape(1, num_classes))

    weights = (w1ih, w1hh, b1, w2ih, w2hh, b2, wcih, wchh, bc, wd_pad, bd_pad)

    def const_spec(arr):
        # Constant block across the batch grid (weights stay resident in VMEM).
        # TODO(synk): single-buffer these (pl.Buffered(1)) and keep the large
        # classifier weights in HBM (pl.ANY) at real ELMo sizes on v7x.
        zeros = (0,) * arr.ndim
        return pl.BlockSpec(arr.shape, lambda b, _z=zeros: _z)

    in_specs = (
        [pl.BlockSpec((S, BT, E), lambda b: (0, b, 0)),                # x, tiled over batch
         pl.BlockSpec(memory_space=pltpu.MemorySpace.SMEM)]            # scalar mix weights
        + [const_spec(w) for w in weights]
    )
    out_spec = pl.BlockSpec((BT, LANE_PAD), lambda b: (b, 0))

    # TODO(synk): at real ELMo sizes chunk the hoisted projections over S and
    # set vmem_limit_bytes explicitly for v7x's 64 MiB VMEM.
    scratch = [
        pltpu.VMEM((S, BT, E), jnp.float32),        # l1 (bidirectional layer-1 output)
        pltpu.VMEM((S, BT, E), jnp.float32),        # l2 (bidirectional layer-2 output)
        pltpu.VMEM((S, BT, 8 * E), jnp.float32),    # hoisted projections (reused by all LSTMs)
    ]

    logits_pad = pl.pallas_call(
        elmo_classifier_kernel,
        out_shape=jax.ShapeDtypeStruct((B_pad, LANE_PAD), jnp.float32),
        grid=(B_pad // BT,),
        in_specs=in_specs,
        out_specs=out_spec,
        scratch_shapes=scratch,
        compiler_params=pltpu.CompilerParams(
            dimension_semantics=("parallel",)),
    )(x, params["scalar_weights"], *weights)

    return logits_pad[:B, :num_classes]


if __name__ == "__main__":
    key = jax.random.PRNGKey(0)
    k_param, k_ids = jax.random.split(key)

    vocab_size = 50
    embedding_dim = 32
    hidden_dim = 32        # must equal embedding_dim (module: classifier LSTM input dim)
    num_classes = 4
    batch, seq = 2, 8

    params = make_params(k_param, vocab_size, embedding_dim, hidden_dim, num_classes)
    input_ids = jax.random.randint(k_ids, (batch, seq), 0, vocab_size, dtype=jnp.int32)

    logits = elmo_classifier_forward(input_ids, params, num_classes=num_classes)
    jax.block_until_ready(logits)
    assert logits.shape == (batch, num_classes)
    print("KERNEL_OK")
</pallas_src>

<mosaic_0001>
module attributes {stable_mosaic.version = 11 : i64} {
  func.func @elmo_classifier_kernel(%arg0: i32, %arg1: memref<8x8x32xf32, #tpu.memory_space<vmem>>, %arg2: memref<3xf32, #tpu.memory_space<smem>>, %arg3: memref<32x128xbf16, #tpu.memory_space<vmem>>, %arg4: memref<32x128xbf16, #tpu.memory_space<vmem>>, %arg5: memref<1x128xf32, #tpu.memory_space<vmem>>, %arg6: memref<32x128xbf16, #tpu.memory_space<vmem>>, %arg7: memref<32x128xbf16, #tpu.memory_space<vmem>>, %arg8: memref<1x128xf32, #tpu.memory_space<vmem>>, %arg9: memref<32x256xbf16, #tpu.memory_space<vmem>>, %arg10: memref<64x256xbf16, #tpu.memory_space<vmem>>, %arg11: memref<1x256xf32, #tpu.memory_space<vmem>>, %arg12: memref<64x128xbf16, #tpu.memory_space<vmem>>, %arg13: memref<1x128xf32, #tpu.memory_space<vmem>>, %arg14: memref<8x128xf32, #tpu.memory_space<vmem>>, %arg15: memref<8x8x32xf32, #tpu.memory_space<vmem>>, %arg16: memref<8x8x32xf32, #tpu.memory_space<vmem>>, %arg17: memref<8x8x256xf32, #tpu.memory_space<vmem>>) attributes {dimension_semantics = [#tpu.dimension_semantics<parallel>], iteration_bounds = array<i64: 1>, scalar_prefetch = 0 : i64, scratch_operands = 3 : i64, tpu.core_type = #tpu.core_type<tc>, window_params = [{transform_indices = @transform_0, window_bounds = array<i64: 8, 8, 32>}, {transform_indices = @transform_1, window_bounds = array<i64: 3>}, {pipeline_mode = #tpu.pipeline_mode<synchronous>, transform_indices = @transform_2, window_bounds = array<i64: 32, 128>}, {pipeline_mode = #tpu.pipeline_mode<synchronous>, transform_indices = @transform_3, window_bounds = array<i64: 32, 128>}, {pipeline_mode = #tpu.pipeline_mode<synchronous>, transform_indices = @transform_4, window_bounds = array<i64: 1, 128>}, {pipeline_mode = #tpu.pipeline_mode<synchronous>, transform_indices = @transform_5, window_bounds = array<i64: 32, 128>}, {pipeline_mode = #tpu.pipeline_mode<synchronous>, transform_indices = @transform_6, window_bounds = array<i64: 32, 128>}, {pipeline_mode = #tpu.pipeline_mode<synchronous>, transform_indices = @transform_7, window_bounds = array<i64: 1, 128>}, {pipeline_mode = #tpu.pipeline_mode<synchronous>, transform_indices = @transform_8, window_bounds = array<i64: 32, 256>}, {pipeline_mode = #tpu.pipeline_mode<synchronous>, transform_indices = @transform_9, window_bounds = array<i64: 64, 256>}, {pipeline_mode = #tpu.pipeline_mode<synchronous>, transform_indices = @transform_10, window_bounds = array<i64: 1, 256>}, {pipeline_mode = #tpu.pipeline_mode<synchronous>, transform_indices = @transform_11, window_bounds = array<i64: 64, 128>}, {pipeline_mode = #tpu.pipeline_mode<synchronous>, transform_indices = @transform_12, window_bounds = array<i64: 1, 128>}, {transform_indices = @transform_13, window_bounds = array<i64: 8, 128>}]} {
    %c0 = arith.constant 0 : index
    %c0_0 = arith.constant 0 : index
    %c0_1 = arith.constant 0 : index
    %0 = vector.load %arg1[%c0, %c0_0, %c0_1] : memref<8x8x32xf32, #tpu.memory_space<vmem>>, vector<8x8x32xf32>
    %1 = vector.shape_cast %0 : vector<8x8x32xf32> to vector<64x32xf32>
    %2 = arith.truncf %1 : vector<64x32xf32> to vector<64x32xbf16>
    %c0_2 = arith.constant 0 : index
    %c0_3 = arith.constant 0 : index
    %3 = vector.load %arg3[%c0_2, %c0_3] : memref<32x128xbf16, #tpu.memory_space<vmem>>, vector<32x128xbf16>
    %cst = arith.constant dense<0.000000e+00> : vector<64x128xf32>
    %4 = tpu.matmul %2, %3, %cst {dimension_numbers = #tpu.dot_dimension_numbers<[1], [0], [0], [1], [0, 0, 1, 1], [], []>} : vector<64x32xbf16>, vector<32x128xbf16>, vector<64x128xf32> -> vector<64x128xf32>
    %c0_4 = arith.constant 0 : index
    %c0_5 = arith.constant 0 : index
    %5 = vector.load %arg5[%c0_4, %c0_5] : memref<1x128xf32, #tpu.memory_space<vmem>>, vector<1x128xf32>
    %6 = vector.broadcast %5 : vector<1x128xf32> to vector<64x128xf32>
    %7 = arith.addf %4, %6 : vector<64x128xf32>
    %8 = vector.shape_cast %7 : vector<64x128xf32> to vector<8x8x128xf32>
    %c0_6 = arith.constant 0 : index
    %c0_7 = arith.constant 0 : index
    %c0_8 = arith.constant 0 : index
    %9 = vector.load %arg17[%c0_6, %c0_7, %c0_8] : memref<8x8x256xf32, #tpu.memory_space<vmem>>, vector<8x8x128xf32>
    tpu.vector_store %arg17[%c0_6, %c0_7, %c0_8], %8 {strides = array<i32>} : memref<8x8x256xf32, #tpu.memory_space<vmem>>, vector<8x8x128xf32>,
    %c0_9 = arith.constant 0 : index
    %c0_10 = arith.constant 0 : index
    %10 = vector.load %arg4[%c0_9, %c0_10] : memref<32x128xbf16, #tpu.memory_space<vmem>>, vector<32x128xbf16>
    %cst_11 = arith.constant 0.000000e+00 : f32
    %11 = vector.broadcast %cst_11 : f32 to vector<8x16xf32>
    %c0_i32 = arith.constant 0 : i32
    %c7_i32 = arith.constant 7 : i32
    %12 = arith.subi %c7_i32, %c0_i32 : i32
    %13 = tpu.concatenate %11, %11 in 1 : vector<8x16xf32>, vector<8x16xf32> -> vector<8x32xf32>
    %14 = arith.truncf %13 : vector<8x32xf32> to vector<8x32xbf16>
    %cst_12 = arith.constant dense<0.000000e+00> : vector<8x128xf32>
    %15 = tpu.matmul %14, %10, %cst_12 {dimension_numbers = #tpu.dot_dimension_numbers<[1], [0], [0], [1], [0, 0, 1, 1], [], []>} : vector<8x32xbf16>, vector<32x128xbf16>, vector<8x128xf32> -> vector<8x128xf32>
    %16 = arith.index_cast %c0_i32 : i32 to index
    %c0_13 = arith.constant 0 : index
    %c0_14 = arith.constant 0 : index
    %17 = vector.load %arg17[%16, %c0_13, %c0_14] : memref<8x8x256xf32, #tpu.memory_space<vmem>>, vector<1x8x64xf32>
    %18 = vector.shape_cast %17 : vector<1x8x64xf32> to vector<8x64xf32>
    %19 = vector.extract_strided_slice %15 {offsets = [0, 0], sizes = [8, 64], strides = [1, 1]} : vector<8x128xf32> to vector<8x64xf32>
    %20 = arith.addf %18, %19 : vector<8x64xf32>
    %21 = arith.index_cast %12 : i32 to index
    %c0_15 = arith.constant 0 : index
    %c64 = arith.constant 64 : index
    %22 = vector.load %arg17[%21, %c0_15, %c64] : memref<8x8x256xf32, #tpu.memory_space<vmem>>, vector<1x8x64xf32>
    %23 = vector.shape_cast %22 : vector<1x8x64xf32> to vector<8x64xf32>
    %24 = vector.extract_strided_slice %15 {offsets = [0, 64], sizes = [8, 64], strides = [1, 1]} : vector<8x128xf32> to vector<8x64xf32>
    %25 = arith.addf %23, %24 : vector<8x64xf32>
    %26 = vector.extract_strided_slice %20 {offsets = [0, 0], sizes = [8, 48], strides = [1, 1]} : vector<8x64xf32> to vector<8x48xf32>
    %27 = arith.negf %26 : vector<8x48xf32>
    %28 = math.exp %27 : vector<8x48xf32>
    %cst_16 = arith.constant 1.000000e+00 : f32
    %29 = vector.broadcast %cst_16 : f32 to vector<8x48xf32>
    %30 = arith.addf %29, %28 : vector<8x48xf32>
    %31 = arith.divf %29, %30 : vector<8x48xf32>
    %32 = vector.extract_strided_slice %31 {offsets = [0, 0], sizes = [8, 16], strides = [1, 1]} : vector<8x48xf32> to vector<8x16xf32>
    %33 = vector.extract_strided_slice %31 {offsets = [0, 16], sizes = [8, 16], strides = [1, 1]} : vector<8x48xf32> to vector<8x16xf32>
    %34 = vector.extract_strided_slice %31 {offsets = [0, 32], sizes = [8, 16], strides = [1, 1]} : vector<8x48xf32> to vector<8x16xf32>
    %35 = vector.extract_strided_slice %20 {offsets = [0, 48], sizes = [8, 16], strides = [1, 1]} : vector<8x64xf32> to vector<8x16xf32>
    %36 = math.tanh %35 : vector<8x16xf32>
    %37 = arith.mulf %33, %11 : vector<8x16xf32>
    %38 = arith.mulf %32, %36 : vector<8x16xf32>
    %39 = arith.addf %37, %38 : vector<8x16xf32>
    %40 = math.tanh %39 : vector<8x16xf32>
    %41 = arith.mulf %34, %40 : vector<8x16xf32>
    %42 = vector.extract_strided_slice %25 {offsets = [0, 0], sizes = [8, 48], strides = [1, 1]} : vector<8x64xf32> to vector<8x48xf32>
    %43 = arith.negf %42 : vector<8x48xf32>
    %44 = math.exp %43 : vector<8x48xf32>
    %cst_17 = arith.constant 1.000000e+00 : f32
    %45 = vector.broadcast %cst_17 : f32 to vector<8x48xf32>
    %46 = arith.addf %45, %44 : vector<8x48xf32>
    %47 = arith.divf %45, %46 : vector<8x48xf32>
    %48 = vector.extract_strided_slice %47 {offsets = [0, 0], sizes = [8, 16], strides = [1, 1]} : vector<8x48xf32> to vector<8x16xf32>
    %49 = vector.extract_strided_slice %47 {offsets = [0, 16], sizes = [8, 16], strides = [1, 1]} : vector<8x48xf32> to vector<8x16xf32>
    %50 = vector.extract_strided_slice %47 {offsets = [0, 32], sizes = [8, 16], strides = [1, 1]} : vector<8x48xf32> to vector<8x16xf32>
    %51 = vector.extract_strided_slice %25 {offsets = [0, 48], sizes = [8, 16], strides = [1, 1]} : vector<8x64xf32> to vector<8x16xf32>
    %52 = math.tanh %51 : vector<8x16xf32>
    %53 = arith.mulf %49, %11 : vector<8x16xf32>
    %54 = arith.mulf %48, %52 : vector<8x16xf32>
    %55 = arith.addf %53, %54 : vector<8x16xf32>
    %56 = math.tanh %55 : vector<8x16xf32>
    %57 = arith.mulf %50, %56 : vector<8x16xf32>
    %58 = arith.index_cast %c0_i32 : i32 to index
    %c0_18 = arith.constant 0 : index
    %c0_19 = arith.constant 0 : index
    %59 = vector.load %arg15[%58, %c0_18, %c0_19] : memref<8x8x32xf32, #tpu.memory_space<vmem>>, vector<1x8x16xf32>
    %60 = vector.shape_cast %59 : vector<1x8x16xf32> to vector<8x16xf32>
    %61 = vector.shape_cast %41 : vector<8x16xf32> to vector<1x8x16xf32>
    tpu.vector_store %arg15[%58, %c0_18, %c0_19], %61 {strides = array<i32>} : memref<8x8x32xf32, #tpu.memory_space<vmem>>, vector<1x8x16xf32>,
    %62 = arith.index_cast %12 : i32 to index
    %c0_20 = arith.constant 0 : index
    %c16 = arith.constant 16 : index
    %63 = vector.load %arg15[%62, %c0_20, %c16] : memref<8x8x32xf32, #tpu.memory_space<vmem>>, vector<1x8x16xf32>
    %64 = vector.shape_cast %63 : vector<1x8x16xf32> to vector<8x16xf32>
    %65 = vector.shape_cast %57 : vector<8x16xf32> to vector<1x8x16xf32>
    tpu.vector_store %arg15[%62, %c0_20, %c16], %65 {strides = array<i32>} : memref<8x8x32xf32, #tpu.memory_space<vmem>>, vector<1x8x16xf32>,
    %c1_i32 = arith.constant 1 : i32
    %c7_i32_21 = arith.constant 7 : i32
    %66 = arith.subi %c7_i32_21, %c1_i32 : i32
    %67 = tpu.concatenate %41, %57 in 1 : vector<8x16xf32>, vector<8x16xf32> -> vector<8x32xf32>
    %68 = arith.truncf %67 : vector<8x32xf32> to vector<8x32xbf16>
    %cst_22 = arith.constant dense<0.000000e+00> : vector<8x128xf32>
    %69 = tpu.matmul %68, %10, %cst_22 {dimension_numbers = #tpu.dot_dimension_numbers<[1], [0], [0], [1], [0, 0, 1, 1], [], []>} : vector<8x32xbf16>, vector<32x128xbf16>, vector<8x128xf32> -> vector<8x128xf32>
    %70 = arith.index_cast %c1_i32 : i32 to index
    %c0_23 = arith.constant 0 : index
    %c0_24 = arith.constant 0 : index
    %71 = vector.load %arg17[%70, %c0_23, %c0_24] : memref<8x8x256xf32, #tpu.memory_space<vmem>>, vector<1x8x64xf32>
    %72 = vector.shape_cast %71 : vector<1x8x64xf32> to vector<8x64xf32>
    %73 = vector.extract_strided_slice %69 {offsets = [0, 0], sizes = [8, 64], strides = [1, 1]} : vector<8x128xf32> to vector<8x64xf32>
    %74 = arith.addf %72, %73 : vector<8x64xf32>
    %75 = arith.index_cast %66 : i32 to index
    %c0_25 = arith.constant 0 : index
    %c64_26 = arith.constant 64 : index
    %76 = vector.load %arg17[%75, %c0_25, %c64_26] : memref<8x8x256xf32, #tpu.memory_space<vmem>>, vector<1x8x64xf32>
    %77 = vector.shape_cast %76 : vector<1x8x64xf32> to vector<8x64xf32>
    %78 = vector.extract_strided_slice %69 {offsets = [0, 64], sizes = [8, 64], strides = [1, 1]} : vector<8x128xf32> to vector<8x64xf32>
    %79 = arith.addf %77, %78 : vector<8x64xf32>
    %80 = vector.extract_strided_slice %74 {offsets = [0, 0], sizes = [8, 48], strides = [1, 1]} : vector<8x64xf32> to vector<8x48xf32>
    %81 = arith.negf %80 : vector<8x48xf32>
    %82 = math.exp %81 : vector<8x48xf32>
    %cst_27 = arith.constant 1.000000e+00 : f32
    %83 = vector.broadcast %cst_27 : f32 to vector<8x48xf32>
    %84 = arith.addf %83, %82 : vector<8x48xf32>
    %85 = arith.divf %83, %84 : vector<8x48xf32>
    %86 = vector.extract_strided_slice %85 {offsets = [0, 0], sizes = [8, 16], strides = [1, 1]} : vector<8x48xf32> to vector<8x16xf32>
    %87 = vector.extract_strided_slice %85 {offsets = [0, 16], sizes = [8, 16], strides = [1, 1]} : vector<8x48xf32> to vector<8x16xf32>
    %88 = vector.extract_strided_slice %85 {offsets = [0, 32], sizes = [8, 16], strides = [1, 1]} : vector<8x48xf32> to vector<8x16xf32>
    %89 = vector.extract_strided_slice %74 {offsets = [0, 48], sizes = [8, 16], strides = [1, 1]} : vector<8x64xf32> to vector<8x16xf32>
    %90 = math.tanh %89 : vector<8x16xf32>
    %91 = arith.mulf %87, %39 : vector<8x16xf32>
    %92 = arith.mulf %86, %90 : vector<8x16xf32>
    %93 = arith.addf %91, %92 : vector<8x16xf32>
    %94 = math.tanh %93 : vector<8x16xf32>
    %95 = arith.mulf %88, %94 : vector<8x16xf32>
    %96 = vector.extract_strided_slice %79 {offsets = [0, 0], sizes = [8, 48], strides = [1, 1]} : vector<8x64xf32> to vector<8x48xf32>
    %97 = arith.negf %96 : vector<8x48xf32>
    %98 = math.exp %97 : vector<8x48xf32>
    %cst_28 = arith.constant 1.000000e+00 : f32
    %99 = vector.broadcast %cst_28 : f32 to vector<8x48xf32>
    %100 = arith.addf %99, %98 : vector<8x48xf32>
    %101 = arith.divf %99, %100 : vector<8x48xf32>
    %102 = vector.extract_strided_slice %101 {offsets = [0, 0], sizes = [8, 16], strides = [1, 1]} : vector<8x48xf32> to vector<8x16xf32>
    %103 = vector.extract_strided_slice %101 {offsets = [0, 16], sizes = [8, 16], strides = [1, 1]} : vector<8x48xf32> to vector<8x16xf32>
    %104 = vector.extract_strided_slice %101 {offsets = [0, 32], sizes = [8, 16], strides = [1, 1]} : vector<8x48xf32> to vector<8x16xf32>
    %105 = vector.extract_strided_slice %79 {offsets = [0, 48], sizes = [8, 16], strides = [1, 1]} : vector<8x64xf32> to vector<8x16xf32>
    %106 = math.tanh %105 : vector<8x16xf32>
    %107 = arith.mulf %103, %55 : vector<8x16xf32>
    %108 = arith.mulf %102, %106 : vector<8x16xf32>
    %109 = arith.addf %107, %108 : vector<8x16xf32>
    %110 = math.tanh %109 : vector<8x16xf32>
    %111 = arith.mulf %104, %110 : vector<8x16xf32>
    %112 = arith.index_cast %c1_i32 : i32 to index
    %c0_29 = arith.constant 0 : index
    %c0_30 = arith.constant 0 : index
    %113 = vector.load %arg15[%112, %c0_29, %c0_30] : memref<8x8x32xf32, #tpu.memory_space<vmem>>, vector<1x8x16xf32>
    %114 = vector.shape_cast %113 : vector<1x8x16xf32> to vector<8x16xf32>
    %115 = vector.shape_cast %95 : vector<8x16xf32> to vector<1x8x16xf32>
    tpu.vector_store %arg15[%112, %c0_29, %c0_30], %115 {strides = array<i32>} : memref<8x8x32xf32, #tpu.memory_space<vmem>>, vector<1x8x16xf32>,
    %116 = arith.index_cast %66 : i32 to index
    %c0_31 = arith.constant 0 : index
    %c16_32 = arith.constant 16 : index
    %117 = vector.load %arg15[%116, %c0_31, %c16_32] : memref<8x8x32xf32, #tpu.memory_space<vmem>>, vector<1x8x16xf32>
    %118 = vector.shape_cast %117 : vector<1x8x16xf32> to vector<8x16xf32>
    %119 = vector.shape_cast %111 : vector<8x16xf32> to vector<1x8x16xf32>
    tpu.vector_store %arg15[%116, %c0_31, %c16_32], %119 {strides = array<i32>} : memref<8x8x32xf32, #tpu.memory_space<vmem>>, vector<1x8x16xf32>,
    %c2_i32 = arith.constant 2 : i32
    %c7_i32_33 = arith.constant 7 : i32
    %120 = arith.subi %c7_i32_33, %c2_i32 : i32
    %121 = tpu.concatenate %95, %111 in 1 : vector<8x16xf32>, vector<8x16xf32> -> vector<8x32xf32>
    %122 = arith.truncf %121 : vector<8x32xf32> to vector<8x32xbf16>
    %cst_34 = arith.constant dense<0.000000e+00> : vector<8x128xf32>
    %123 = tpu.matmul %122, %10, %cst_34 {dimension_numbers = #tpu.dot_dimension_numbers<[1], [0], [0], [1], [0, 0, 1, 1], [], []>} : vector<8x32xbf16>, vector<32x128xbf16>, vector<8x128xf32> -> vector<8x128xf32>
    %124 = arith.index_cast %c2_i32 : i32 to index
    %c0_35 = arith.constant 0 : index
    %c0_36 = arith.constant 0 : index
    %125 = vector.load %arg17[%124, %c0_35, %c0_36] : memref<8x8x256xf32, #tpu.memory_space<vmem>>, vector<1x8x64xf32>
    %126 = vector.shape_cast %125 : vector<1x8x64xf32> to vector<8x64xf32>
    %127 = vector.extract_strided_slice %123 {offsets = [0, 0], sizes = [8, 64], strides = [1, 1]} : vector<8x128xf32> to vector<8x64xf32>
    %128 = arith.addf %126, %127 : vector<8x64xf32>
    %129 = arith.index_cast %120 : i32 to index
    %c0_37 = arith.constant 0 : index
    %c64_38 = arith.constant 64 : index
    %130 = vector.load %arg17[%129, %c0_37, %c64_38] : memref<8x8x256xf32, #tpu.memory_space<vmem>>, vector<1x8x64xf32>
    %131 = vector.shape_cast %130 : vector<1x8x64xf32> to vector<8x64xf32>
    %132 = vector.extract_strided_slice %123 {offsets = [0, 64], sizes = [8, 64], strides = [1, 1]} : vector<8x128xf32> to vector<8x64xf32>
    %133 = arith.addf %131, %132 : vector<8x64xf32>
    %134 = vector.extract_strided_slice %128 {offsets = [0, 0], sizes = [8, 48], strides = [1, 1]} : vector<8x64xf32> to vector<8x48xf32>
    %135 = arith.negf %134 : vector<8x48xf32>
    %136 = math.exp %135 : vector<8x48xf32>
    %cst_39 = arith.constant 1.000000e+00 : f32
    %137 = vector.broadcast %cst_39 : f32 to vector<8x48xf32>
    %138 = arith.addf %137, %136 : vector<8x48xf32>
    %139 = arith.divf %137, %138 : vector<8x48xf32>
    %140 = vector.extract_strided_slice %139 {offsets = [0, 0], sizes = [8, 16], strides = [1, 1]} : vector<8x48xf32> to vector<8x16xf32>
    %141 = vector.extract_strided_slice %139 {offsets = [0, 16], sizes = [8, 16], strides = [1, 1]} : vector<8x48xf32> to vector<8x16xf32>
    %142 = vector.extract_strided_slice %139 {offsets = [0, 32], sizes = [8, 16], strides = [1, 1]} : vector<8x48xf32> to vector<8x16xf32>
    %143 = vector.extract_strided_slice %128 {offsets = [0, 48], sizes = [8, 16], strides = [1, 1]} : vector<8x64xf32> to vector<8x16xf32>
    %144 = math.tanh %143 : vector<8x16xf32>
    %145 = arith.mulf %141, %93 : vector<8x16xf32>
    %146 = arith.mulf %140, %144 : vector<8x16xf32>
    %147 = arith.addf %145, %146 : vector<8x16xf32>
    %148 = math.tanh %147 : vector<8x16xf32>
    %149 = arith.mulf %142, %148 : vector<8x16xf32>
    %150 = vector.extract_strided_slice %133 {offsets = [0, 0], sizes = [8, 48], strides = [1, 1]} : vector<8x64xf32> to vector<8x48xf32>
    %151 = arith.negf %150 : vector<8x48xf32>
    %152 = math.exp %151 : vector<8x48xf32>
    %cst_40 = arith.constant 1.000000e+00 : f32
    %153 = vector.broadcast %cst_40 : f32 to vector<8x48xf32>
    %154 = arith.addf %153, %152 : vector<8x48xf32>
    %155 = arith.divf %153, %154 : vector<8x48xf32>
    %156 = vector.extract_strided_slice %155 {offsets = [0, 0], sizes = [8, 16], strides = [1, 1]} : vector<8x48xf32> to vector<8x16xf32>
    %157 = vector.extract_strided_slice %155 {offsets = [0, 16], sizes = [8, 16], strides = [1, 1]} : vector<8x48xf32> to vector<8x16xf32>
    %158 = vector.extract_strided_slice %155 {offsets = [0, 32], sizes = [8, 16], strides = [1, 1]} : vector<8x48xf32> to vector<8x16xf32>
    %159 = vector.extract_strided_slice %133 {offsets = [0, 48], sizes = [8, 16], strides = [1, 1]} : vector<8x64xf32> to vector<8x16xf32>
    %160 = math.tanh %159 : vector<8x16xf32>
    %161 = arith.mulf %157, %109 : vector<8x16xf32>
    %162 = arith.mulf %156, %160 : vector<8x16xf32>
    %163 = arith.addf %161, %162 : vector<8x16xf32>
    %164 = math.tanh %163 : vector<8x16xf32>
    %165 = arith.mulf %158, %164 : vector<8x16xf32>
    %166 = arith.index_cast %c2_i32 : i32 to index
    %c0_41 = arith.constant 0 : index
    %c0_42 = arith.constant 0 : index
    %167 = vector.load %arg15[%166, %c0_41, %c0_42] : memref<8x8x32xf32, #tpu.memory_space<vmem>>, vector<1x8x16xf32>
    %168 = vector.shape_cast %167 : vector<1x8x16xf32> to vector<8x16xf32>
    %169 = vector.shape_cast %149 : vector<8x16xf32> to vector<1x8x16xf32>
    tpu.vector_store %arg15[%166, %c0_41, %c0_42], %169 {strides = array<i32>} : memref<8x8x32xf32, #tpu.memory_space<vmem>>, vector<1x8x16xf32>,
    %170 = arith.index_cast %120 : i32 to index
    %c0_43 = arith.constant 0 : index
    %c16_44 = arith.constant 16 : index
    %171 = vector.load %arg15[%170, %c0_43, %c16_44] : memref<8x8x32xf32, #tpu.memory_space<vmem>>, vector<1x8x16xf32>
    %172 = vector.shape_cast %171 : vector<1x8x16xf32> to vector<8x16xf32>
    %173 = vector.shape_cast %165 : vector<8x16xf32> to vector<1x8x16xf32>
    tpu.vector_store %arg15[%170, %c0_43, %c16_44], %173 {strides = array<i32>} : memref<8x8x32xf32, #tpu.memory_space<vmem>>, vector<1x8x16xf32>,
    %c3_i32 = arith.constant 3 : i32
    %c7_i32_45 = arith.constant 7 : i32
    %174 = arith.subi %c7_i32_45, %c3_i32 : i32
    %175 = tpu.concatenate %149, %165 in 1 : vector<8x16xf32>, vector<8x16xf32> -> vector<8x32xf32>
    %176 = arith.truncf %175 : vector<8x32xf32> to vector<8x32xbf16>
    %cst_46 = arith.constant dense<0.000000e+00> : vector<8x128xf32>
    %177 = tpu.matmul %176, %10, %cst_46 {dimension_numbers = #tpu.dot_dimension_numbers<[1], [0], [0], [1], [0, 0, 1, 1], [], []>} : vector<8x32xbf16>, vector<32x128xbf16>, vector<8x128xf32> -> vector<8x128xf32>
    %178 = arith.index_cast %c3_i32 : i32 to index
    %c0_47 = arith.constant 0 : index
    %c0_48 = arith.constant 0 : index
    %179 = vector.load %arg17[%178, %c0_47, %c0_48] : memref<8x8x256xf32, #tpu.memory_space<vmem>>, vector<1x8x64xf32>
    %180 = vector.shape_cast %179 : vector<1x8x64xf32> to vector<8x64xf32>
    %181 = vector.extract_strided_slice %177 {offsets = [0, 0], sizes = [8, 64], strides = [1, 1]} : vector<8x128xf32> to vector<8x64xf32>
    %182 = arith.addf %180, %181 : vector<8x64xf32>
    %183 = arith.index_cast %174 : i32 to index
    %c0_49 = arith.constant 0 : index
    %c64_50 = arith.constant 64 : index
    %184 = vector.load %arg17[%183, %c0_49, %c64_50] : memref<8x8x256xf32, #tpu.memory_space<vmem>>, vector<1x8x64xf32>
    %185 = vector.shape_cast %184 : vector<1x8x64xf32> to vector<8x64xf32>
    %186 = vector.extract_strided_slice %177 {offsets = [0, 64], sizes = [8, 64], strides = [1, 1]} : vector<8x128xf32> to vector<8x64xf32>
    %187 = arith.addf %185, %186 : vector<8x64xf32>
    %188 = vector.extract_strided_slice %182 {offsets = [0, 0], sizes = [8, 48], strides = [1, 1]} : vector<8x64xf32> to vector<8x48xf32>
    %189 = arith.negf %188 : vector<8x48xf32>
    %190 = math.exp %189 : vector<8x48xf32>
    %cst_51 = arith.constant 1.000000e+00 : f32
    %191 = vector.broadcast %cst_51 : f32 to vector<8x48xf32>
    %192 = arith.addf %191, %190 : vector<8x48xf32>
    %193 = arith.divf %191, %192 : vector<8x48xf32>
    %194 = vector.extract_strided_slice %193 {offsets = [0, 0], sizes = [8, 16], strides = [1, 1]} : vector<8x48xf32> to vector<8x16xf32>
    %195 = vector.extract_strided_slice %193 {offsets = [0, 16], sizes = [8, 16], strides = [1, 1]} : vector<8x48xf32> to vector<8x16xf32>
    %196 = vector.extract_strided_slice %193 {offsets = [0, 32], sizes = [8, 16], strides = [1, 1]} : vector<8x48xf32> to vector<8x16xf32>
    %197 = vector.extract_strided_slice %182 {offsets = [0, 48], sizes = [8, 16], strides = [1, 1]} : vector<8x64xf32> to vector<8x16xf32>
    %198 = math.tanh %197 : vector<8x16xf32>
    %199 = arith.mulf %195, %147 : vector<8x16xf32>
    %200 = arith.mulf %194, %198 : vector<8x16xf32>
    %201 = arith.addf %199, %200 : vector<8x16xf32>
    %202 = math.tanh %201 : vector<8x16xf32>
    %203 = arith.mulf %196, %202 : vector<8x16xf32>
    %204 = vector.extract_strided_slice %187 {offsets = [0, 0], sizes = [8, 48], strides = [1, 1]} : vector<8x64xf32> to vector<8x48xf32>
    %205 = arith.negf %204 : vector<8x48xf32>
    %206 = math.exp %205 : vector<8x48xf32>
    %cst_52 = arith.constant 1.000000e+00 : f32
    %207 = vector.broadcast %cst_52 : f32 to vector<8x48xf32>
    %208 = arith.addf %207, %206 : vector<8x48xf32>
    %209 = arith.divf %207, %208 : vector<8x48xf32>
    %210 = vector.extract_strided_slice %209 {offsets = [0, 0], sizes = [8, 16], strides = [1, 1]} : vector<8x48xf32> to vector<8x16xf32>
    %211 = vector.extract_strided_slice %209 {offsets = [0, 16], sizes = [8, 16], strides = [1, 1]} : vector<8x48xf32> to vector<8x16xf32>
    %212 = vector.extract_strided_slice %209 {offsets = [0, 32], sizes = [8, 16], strides = [1, 1]} : vector<8x48xf32> to vector<8x16xf32>
    %213 = vector.extract_strided_slice %187 {offsets = [0, 48], sizes = [8, 16], strides = [1, 1]} : vector<8x64xf32> to vector<8x16xf32>
    %214 = math.tanh %213 : vector<8x16xf32>
    %215 = arith.mulf %211, %163 : vector<8x16xf32>
    %216 = arith.mulf %210, %214 : vector<8x16xf32>
    %217 = arith.addf %215, %216 : vector<8x16xf32>
    %218 = math.tanh %217 : vector<8x16xf32>
    %219 = arith.mulf %212, %218 : vector<8x16xf32>
    %220 = arith.index_cast %c3_i32 : i32 to index
    %c0_53 = arith.constant 0 : index
    %c0_54 = arith.constant 0 : index
    %221 = vector.load %arg15[%220, %c0_53, %c0_54] : memref<8x8x32xf32, #tpu.memory_space<vmem>>, vector<1x8x16xf32>
    %222 = vector.shape_cast %221 : vector<1x8x16xf32> to vector<8x16xf32>
    %223 = vector.shape_cast %203 : vector<8x16xf32> to vector<1x8x16xf32>
    tpu.vector_store %arg15[%220, %c0_53, %c0_54], %223 {strides = array<i32>} : memref<8x8x32xf32, #tpu.memory_space<vmem>>, vector<1x8x16xf32>,
    %224 = arith.index_cast %174 : i32 to index
    %c0_55 = arith.constant 0 : index
    %c16_56 = arith.constant 16 : index
    %225 = vector.load %arg15[%224, %c0_55, %c16_56] : memref<8x8x32xf32, #tpu.memory_space<vmem>>, vector<1x8x16xf32>
    %226 = vector.shape_cast %225 : vector<1x8x16xf32> to vector<8x16xf32>
    %227 = vector.shape_cast %219 : vector<8x16xf32> to vector<1x8x16xf32>
    tpu.vector_store %arg15[%224, %c0_55, %c16_56], %227 {strides = array<i32>} : memref<8x8x32xf32, #tpu.memory_space<vmem>>, vector<1x8x16xf32>,
    %c4_i32 = arith.constant 4 : i32
    %c7_i32_57 = arith.constant 7 : i32
    %228 = arith.subi %c7_i32_57, %c4_i32 : i32
    %229 = tpu.concatenate %203, %219 in 1 : vector<8x16xf32>, vector<8x16xf32> -> vector<8x32xf32>
    %230 = arith.truncf %229 : vector<8x32xf32> to vector<8x32xbf16>
    %cst_58 = arith.constant dense<0.000000e+00> : vector<8x128xf32>
    %231 = tpu.matmul %230, %10, %cst_58 {dimension_numbers = #tpu.dot_dimension_numbers<[1], [0], [0], [1], [0, 0, 1, 1], [], []>} : vector<8x32xbf16>, vector<32x128xbf16>, vector<8x128xf32> -> vector<8x128xf32>
    %232 = arith.index_cast %c4_i32 : i32 to index
    %c0_59 = arith.constant 0 : index
    %c0_60 = arith.constant 0 : index
    %233 = vector.load %arg17[%232, %c0_59, %c0_60] : memref<8x8x256xf32, #tpu.memory_space<vmem>>, vector<1x8x64xf32>
    %234 = vector.shape_cast %233 : vector<1x8x64xf32> to vector<8x64xf32>
    %235 = vector.extract_strided_slice %231 {offsets = [0, 0], sizes = [8, 64], strides = [1, 1]} : vector<8x128xf32> to vector<8x64xf32>
    %236 = arith.addf %234, %235 : vector<8x64xf32>
    %237 = arith.index_cast %228 : i32 to index
    %c0_61 = arith.constant 0 : index
    %c64_62 = arith.constant 64 : index
    %238 = vector.load %arg17[%237, %c0_61, %c64_62] : memref<8x8x256xf32, #tpu.memory_space<vmem>>, vector<1x8x64xf32>
    %239 = vector.shape_cast %238 : vector<1x8x64xf32> to vector<8x64xf32>
    %240 = vector.extract_strided_slice %231 {offsets = [0, 64], sizes = [8, 64], strides = [1, 1]} : vector<8x128xf32> to vector<8x64xf32>
    %241 = arith.addf %239, %240 : vector<8x64xf32>
    %242 = vector.extract_strided_slice %236 {offsets = [0, 0], sizes = [8, 48], strides = [1, 1]} : vector<8x64xf32> to vector<8x48xf32>
    %243 = arith.negf %242 : vector<8x48xf32>
    %244 = math.exp %243 : vector<8x48xf32>
    %cst_63 = arith.constant 1.000000e+00 : f32
    %245 = vector.broadcast %cst_63 : f32 to vector<8x48xf32>
    %246 = arith.addf %245, %244 : vector<8x48xf32>
    %247 = arith.divf %245, %246 : vector<8x48xf32>
    %248 = vector.extract_strided_slice %247 {offsets = [0, 0], sizes = [8, 16], strides = [1, 1]} : vector<8x48xf32> to vector<8x16xf32>
    %249 = vector.extract_strided_slice %247 {offsets = [0, 16], sizes = [8, 16], strides = [1, 1]} : vector<8x48xf32> to vector<8x16xf32>
    %250 = vector.extract_strided_slice %247 {offsets = [0, 32], sizes = [8, 16], strides = [1, 1]} : vector<8x48xf32> to vector<8x16xf32>
    %251 = vector.extract_strided_slice %236 {offsets = [0, 48], sizes = [8, 16], strides = [1, 1]} : vector<8x64xf32> to vector<8x16xf32>
    %252 = math.tanh %251 : vector<8x16xf32>
    %253 = arith.mulf %249, %201 : vector<8x16xf32>
    %254 = arith.mulf %248, %252 : vector<8x16xf32>
    %255 = arith.addf %253, %254 : vector<8x16xf32>
    %256 = math.tanh %255 : vector<8x16xf32>
    %257 = arith.mulf %250, %256 : vector<8x16xf32>
    %258 = vector.extract_strided_slice %241 {offsets = [0, 0], sizes = [8, 48], strides = [1, 1]} : vector<8x64xf32> to vector<8x48xf32>
    %259 = arith.negf %258 : vector<8x48xf32>
    %260 = math.exp %259 : vector<8x48xf32>
    %cst_64 = arith.constant 1.000000e+00 : f32
    %261 = vector.broadcast %cst_64 : f32 to vector<8x48xf32>
    %262 = arith.addf %261, %260 : vector<8x48xf32>
    %263 = arith.divf %261, %262 : vector<8x48xf32>
    %264 = vector.extract_strided_slice %263 {offsets = [0, 0], sizes = [8, 16], strides = [1, 1]} : vector<8x48xf32> to vector<8x16xf32>
    %265 = vector.extract_strided_slice %263 {offsets = [0, 16], sizes = [8, 16], strides = [1, 1]} : vector<8x48xf32> to vector<8x16xf32>
    %266 = vector.extract_strided_slice %263 {offsets = [0, 32], sizes = [8, 16], strides = [1, 1]} : vector<8x48xf32> to vector<8x16xf32>
    %267 = vector.extract_strided_slice %241 {offsets = [0, 48], sizes = [8, 16], strides = [1, 1]} : vector<8x64xf32> to vector<8x16xf32>
    %268 = math.tanh %267 : vector<8x16xf32>
    %269 = arith.mulf %265, %217 : vector<8x16xf32>
    %270 = arith.mulf %264, %268 : vector<8x16xf32>
    %271 = arith.addf %269, %270 : vector<8x16xf32>
    %272 = math.tanh %271 : vector<8x16xf32>
    %273 = arith.mulf %266, %272 : vector<8x16xf32>
    %274 = arith.index_cast %c4_i32 : i32 to index
    %c0_65 = arith.constant 0 : index
    %c0_66 = arith.constant 0 : index
    %275 = vector.load %arg15[%274, %c0_65, %c0_66] : memref<8x8x32xf32, #tpu.memory_space<vmem>>, vector<1x8x16xf32>
    %276 = vector.shape_cast %275 : vector<1x8x16xf32> to vector<8x16xf32>
    %277 = vector.shape_cast %257 : vector<8x16xf32> to vector<1x8x16xf32>
    tpu.vector_store %arg15[%274, %c0_65, %c0_66], %277 {strides = array<i32>} : memref<8x8x32xf32, #tpu.memory_space<vmem>>, vector<1x8x16xf32>,
    %278 = arith.index_cast %228 : i32 to index
    %c0_67 = arith.constant 0 : index
    %c16_68 = arith.constant 16 : index
    %279 = vector.load %arg15[%278, %c0_67, %c16_68] : memref<8x8x32xf32, #tpu.memory_space<vmem>>, vector<1x8x16xf32>
    %280 = vector.shape_cast %279 : vector<1x8x16xf32> to vector<8x16xf32>
    %281 = vector.shape_cast %273 : vector<8x16xf32> to vector<1x8x16xf32>
    tpu.vector_store %arg15[%278, %c0_67, %c16_68], %281 {strides = array<i32>} : memref<8x8x32xf32, #tpu.memory_space<vmem>>, vector<1x8x16xf32>,
    %c5_i32 = arith.constant 5 : i32
    %c7_i32_69 = arith.constant 7 : i32
    %282 = arith.subi %c7_i32_69, %c5_i32 : i32
    %283 = tpu.concatenate %257, %273 in 1 : vector<8x16xf32>, vector<8x16xf32> -> vector<8x32xf32>
    %284 = arith.truncf %283 : vector<8x32xf32> to vector<8x32xbf16>
    %cst_70 = arith.constant dense<0.000000e+00> : vector<8x128xf32>
    %285 = tpu.matmul %284, %10, %cst_70 {dimension_numbers = #tpu.dot_dimension_numbers<[1], [0], [0], [1], [0, 0, 1, 1], [], []>} : vector<8x32xbf16>, vector<32x128xbf16>, vector<8x128xf32> -> vector<8x128xf32>
    %286 = arith.index_cast %c5_i32 : i32 to index
    %c0_71 = arith.constant 0 : index
    %c0_72 = arith.constant 0 : index
    %287 = vector.load %arg17[%286, %c0_71, %c0_72] : memref<8x8x256xf32, #tpu.memory_space<vmem>>, vector<1x8x64xf32>
    %288 = vector.shape_cast %287 : vector<1x8x64xf32> to vector<8x64xf32>
    %289 = vector.extract_strided_slice %285 {offsets = [0, 0], sizes = [8, 64], strides = [1, 1]} : vector<8x128xf32> to vector<8x64xf32>
    %290 = arith.addf %288, %289 : vector<8x64xf32>
    %291 = arith.index_cast %282 : i32 to index
    %c0_73 = arith.constant 0 : index
    %c64_74 = arith.constant 64 : index
    %292 = vector.load %arg17[%291, %c0_73, %c64_74] : memref<8x8x256xf32, #tpu.memory_space<vmem>>, vector<1x8x64xf32>
    %293 = vector.shape_cast %292 : vector<1x8x64xf32> to vector<8x64xf32>
    %294 = vector.extract_strided_slice %285 {offsets = [0, 64], sizes = [8, 64], strides = [1, 1]} : vector<8x128xf32> to vector<8x64xf32>
    %295 = arith.addf %293, %294 : vector<8x64xf32>
    %296 = vector.extract_strided_slice %290 {offsets = [0, 0], sizes = [8, 48], strides = [1, 1]} : vector<8x64xf32> to vector<8x48xf32>
    %297 = arith.negf %296 : vector<8x48xf32>
    %298 = math.exp %297 : vector<8x48xf32>
    %cst_75 = arith.constant 1.000000e+00 : f32
    %299 = vector.broadcast %cst_75 : f32 to vector<8x48xf32>
    %300 = arith.addf %299, %298 : vector<8x48xf32>
    %301 = arith.divf %299, %300 : vector<8x48xf32>
    %302 = vector.extract_strided_slice %301 {offsets = [0, 0], sizes = [8, 16], strides = [1, 1]} : vector<8x48xf32> to vector<8x16xf32>
    %303 = vector.extract_strided_slice %301 {offsets = [0, 16], sizes = [8, 16], strides = [1, 1]} : vector<8x48xf32> to vector<8x16xf32>
    %304 = vector.extract_strided_slice %301 {offsets = [0, 32], sizes = [8, 16], strides = [1, 1]} : vector<8x48xf32> to vector<8x16xf32>
    %305 = vector.extract_strided_slice %290 {offsets = [0, 48], sizes = [8, 16], strides = [1, 1]} : vector<8x64xf32> to vector<8x16xf32>
    %306 = math.tanh %305 : vector<8x16xf32>
    %307 = arith.mulf %303, %255 : vector<8x16xf32>
    %308 = arith.mulf %302, %306 : vector<8x16xf32>
    %309 = arith.addf %307, %308 : vector<8x16xf32>
    %310 = math.tanh %309 : vector<8x16xf32>
    %311 = arith.mulf %304, %310 : vector<8x16xf32>
    %312 = vector.extract_strided_slice %295 {offsets = [0, 0], sizes = [8, 48], strides = [1, 1]} : vector<8x64xf32> to vector<8x48xf32>
    %313 = arith.negf %312 : vector<8x48xf32>
    %314 = math.exp %313 : vector<8x48xf32>
    %cst_76 = arith.constant 1.000000e+00 : f32
    %315 = vector.broadcast %cst_76 : f32 to vector<8x48xf32>
    %316 = arith.addf %315, %314 : vector<8x48xf32>
    %317 = arith.divf %315, %316 : vector<8x48xf32>
    %318 = vector.extract_strided_slice %317 {offsets = [0, 0], sizes = [8, 16], strides = [1, 1]} : vector<8x48xf32> to vector<8x16xf32>
    %319 = vector.extract_strided_slice %317 {offsets = [0, 16], sizes = [8, 16], strides = [1, 1]} : vector<8x48xf32> to vector<8x16xf32>
    %320 = vector.extract_strided_slice %317 {offsets = [0, 32], sizes = [8, 16], strides = [1, 1]} : vector<8x48xf32> to vector<8x16xf32>
    %321 = vector.extract_strided_slice %295 {offsets = [0, 48], sizes = [8, 16], strides = [1, 1]} : vector<8x64xf32> to vector<8x16xf32>
    %322 = math.tanh %321 : vector<8x16xf32>
    %323 = arith.mulf %319, %271 : vector<8x16xf32>
    %324 = arith.mulf %318, %322 : vector<8x16xf32>
    %325 = arith.addf %323, %324 : vector<8x16xf32>
    %326 = math.tanh %325 : vector<8x16xf32>
    %327 = arith.mulf %320, %326 : vector<8x16xf32>
    %328 = arith.index_cast %c5_i32 : i32 to index
    %c0_77 = arith.constant 0 : index
    %c0_78 = arith.constant 0 : index
    %329 = vector.load %arg15[%328, %c0_77, %c0_78] : memref<8x8x32xf32, #tpu.memory_space<vmem>>, vector<1x8x16xf32>
    %330 = vector.shape_cast %329 : vector<1x8x16xf32> to vector<8x16xf32>
    %331 = vector.shape_cast %311 : vector<8x16xf32> to vector<1x8x16xf32>
    tpu.vector_store %arg15[%328, %c0_77, %c0_78], %331 {strides = array<i32>} : memref<8x8x32xf32, #tpu.memory_space<vmem>>, vector<1x8x16xf32>,
    %332 = arith.index_cast %282 : i32 to index
    %c0_79 = arith.constant 0 : index
    %c16_80 = arith.constant 16 : index
    %333 = vector.load %arg15[%332, %c0_79, %c16_80] : memref<8x8x32xf32, #tpu.memory_space<vmem>>, vector<1x8x16xf32>
    %334 = vector.shape_cast %333 : vector<1x8x16xf32> to vector<8x16xf32>
    %335 = vector.shape_cast %327 : vector<8x16xf32> to vector<1x8x16xf32>
    tpu.vector_store %arg15[%332, %c0_79, %c16_80], %335 {strides = array<i32>} : memref<8x8x32xf32, #tpu.memory_space<vmem>>, vector<1x8x16xf32>,
    %c6_i32 = arith.constant 6 : i32
    %c7_i32_81 = arith.constant 7 : i32
    %336 = arith.subi %c7_i32_81, %c6_i32 : i32
    %337 = tpu.concatenate %311, %327 in 1 : vector<8x16xf32>, vector<8x16xf32> -> vector<8x32xf32>
    %338 = arith.truncf %337 : vector<8x32xf32> to vector<8x32xbf16>
    %cst_82 = arith.constant dense<0.000000e+00> : vector<8x128xf32>
    %339 = tpu.matmul %338, %10, %cst_82 {dimension_numbers = #tpu.dot_dimension_numbers<[1], [0], [0], [1], [0, 0, 1, 1], [], []>} : vector<8x32xbf16>, vector<32x128xbf16>, vector<8x128xf32> -> vector<8x128xf32>
    %340 = arith.index_cast %c6_i32 : i32 to index
    %c0_83 = arith.constant 0 : index
    %c0_84 = arith.constant 0 : index
    %341 = vector.load %arg17[%340, %c0_83, %c0_84] : memref<8x8x256xf32, #tpu.memory_space<vmem>>, vector<1x8x64xf32>
    %342 = vector.shape_cast %341 : vector<1x8x64xf32> to vector<8x64xf32>
    %343 = vector.extract_strided_slice %339 {offsets = [0, 0], sizes = [8, 64], strides = [1, 1]} : vector<8x128xf32> to vector<8x64xf32>
    %344 = arith.addf %342, %343 : vector<8x64xf32>
    %345 = arith.index_cast %336 : i32 to index
    %c0_85 = arith.constant 0 : index
    %c64_86 = arith.constant 64 : index
    %346 = vector.load %arg17[%345, %c0_85, %c64_86] : memref<8x8x256xf32, #tpu.memory_space<vmem>>, vector<1x8x64xf32>
    %347 = vector.shape_cast %346 : vector<1x8x64xf32> to vector<8x64xf32>
    %348 = vector.extract_strided_slice %339 {offsets = [0, 64], sizes = [8, 64], strides = [1, 1]} : vector<8x128xf32> to vector<8x64xf32>
    %349 = arith.addf %347, %348 : vector<8x64xf32>
    %350 = vector.extract_strided_slice %344 {offsets = [0, 0], sizes = [8, 48], strides = [1, 1]} : vector<8x64xf32> to vector<8x48xf32>
    %351 = arith.negf %350 : vector<8x48xf32>
    %352 = math.exp %351 : vector<8x48xf32>
    %cst_87 = arith.constant 1.000000e+00 : f32
    %353 = vector.broadcast %cst_87 : f32 to vector<8x48xf32>
    %354 = arith.addf %353, %352 : vector<8x48xf32>
    %355 = arith.divf %353, %354 : vector<8x48xf32>
    %356 = vector.extract_strided_slice %355 {offsets = [0, 0], sizes = [8, 16], strides = [1, 1]} : vector<8x48xf32> to vector<8x16xf32>
    %357 = vector.extract_strided_slice %355 {offsets = [0, 16], sizes = [8, 16], strides = [1, 1]} : vector<8x48xf32> to vector<8x16xf32>
    %358 = vector.extract_strided_slice %355 {offsets = [0, 32], sizes = [8, 16], strides = [1, 1]} : vector<8x48xf32> to vector<8x16xf32>
    %359 = vector.extract_strided_slice %344 {offsets = [0, 48], sizes = [8, 16], strides = [1, 1]} : vector<8x64xf32> to vector<8x16xf32>
    %360 = math.tanh %359 : vector<8x16xf32>
    %361 = arith.mulf %357, %309 : vector<8x16xf32>
    %362 = arith.mulf %356, %360 : vector<8x16xf32>
    %363 = arith.addf %361, %362 : vector<8x16xf32>
    %364 = math.tanh %363 : vector<8x16xf32>
    %365 = arith.mulf %358, %364 : vector<8x16xf32>
    %366 = vector.extract_strided_slice %349 {offsets = [0, 0], sizes = [8, 48], strides = [1, 1]} : vector<8x64xf32> to vector<8x48xf32>
    %367 = arith.negf %366 : vector<8x48xf32>
    %368 = math.exp %367 : vector<8x48xf32>
    %cst_88 = arith.constant 1.000000e+00 : f32
    %369 = vector.broadcast %cst_88 : f32 to vector<8x48xf32>
    %370 = arith.addf %369, %368 : vector<8x48xf32>
    %371 = arith.divf %369, %370 : vector<8x48xf32>
    %372 = vector.extract_strided_slice %371 {offsets = [0, 0], sizes = [8, 16], strides = [1, 1]} : vector<8x48xf32> to vector<8x16xf32>
    %373 = vector.extract_strided_slice %371 {offsets = [0, 16], sizes = [8, 16], strides = [1, 1]} : vector<8x48xf32> to vector<8x16xf32>
    %374 = vector.extract_strided_slice %371 {offsets = [0, 32], sizes = [8, 16], strides = [1, 1]} : vector<8x48xf32> to vector<8x16xf32>
    %375 = vector.extract_strided_slice %349 {offsets = [0, 48], sizes = [8, 16], strides = [1, 1]} : vector<8x64xf32> to vector<8x16xf32>
    %376 = math.tanh %375 : vector<8x16xf32>
    %377 = arith.mulf %373, %325 : vector<8x16xf32>
    %378 = arith.mulf %372, %376 : vector<8x16xf32>
    %379 = arith.addf %377, %378 : vector<8x16xf32>
    %380 = math.tanh %379 : vector<8x16xf32>
    %381 = arith.mulf %374, %380 : vector<8x16xf32>
    %382 = arith.index_cast %c6_i32 : i32 to index
    %c0_89 = arith.constant 0 : index
    %c0_90 = arith.constant 0 : index
    %383 = vector.load %arg15[%382, %c0_89, %c0_90] : memref<8x8x32xf32, #tpu.memory_space<vmem>>, vector<1x8x16xf32>
    %384 = vector.shape_cast %383 : vector<1x8x16xf32> to vector<8x16xf32>
    %385 = vector.shape_cast %365 : vector<8x16xf32> to vector<1x8x16xf32>
    tpu.vector_store %arg15[%382, %c0_89, %c0_90], %385 {strides = array<i32>} : memref<8x8x32xf32, #tpu.memory_space<vmem>>, vector<1x8x16xf32>,
    %386 = arith.index_cast %336 : i32 to index
    %c0_91 = arith.constant 0 : index
    %c16_92 = arith.constant 16 : index
    %387 = vector.load %arg15[%386, %c0_91, %c16_92] : memref<8x8x32xf32, #tpu.memory_space<vmem>>, vector<1x8x16xf32>
    %388 = vector.shape_cast %387 : vector<1x8x16xf32> to vector<8x16xf32>
    %389 = vector.shape_cast %381 : vector<8x16xf32> to vector<1x8x16xf32>
    tpu.vector_store %arg15[%386, %c0_91, %c16_92], %389 {strides = array<i32>} : memref<8x8x32xf32, #tpu.memory_space<vmem>>, vector<1x8x16xf32>,
    %c7_i32_93 = arith.constant 7 : i32
    %c7_i32_94 = arith.constant 7 : i32
    %390 = arith.subi %c7_i32_94, %c7_i32_93 : i32
    %391 = tpu.concatenate %365, %381 in 1 : vector<8x16xf32>, vector<8x16xf32> -> vector<8x32xf32>
    %392 = arith.truncf %391 : vector<8x32xf32> to vector<8x32xbf16>
    %cst_95 = arith.constant dense<0.000000e+00> : vector<8x128xf32>
    %393 = tpu.matmul %392, %10, %cst_95 {dimension_numbers = #tpu.dot_dimension_numbers<[1], [0], [0], [1], [0, 0, 1, 1], [], []>} : vector<8x32xbf16>, vector<32x128xbf16>, vector<8x128xf32> -> vector<8x128xf32>
    %394 = arith.index_cast %c7_i32_93 : i32 to index
    %c0_96 = arith.constant 0 : index
    %c0_97 = arith.constant 0 : index
    %395 = vector.load %arg17[%394, %c0_96, %c0_97] : memref<8x8x256xf32, #tpu.memory_space<vmem>>, vector<1x8x64xf32>
    %396 = vector.shape_cast %395 : vector<1x8x64xf32> to vector<8x64xf32>
    %397 = vector.extract_strided_slice %393 {offsets = [0, 0], sizes = [8, 64], strides = [1, 1]} : vector<8x128xf32> to vector<8x64xf32>
    %398 = arith.addf %396, %397 : vector<8x64xf32>
    %399 = arith.index_cast %390 : i32 to index
    %c0_98 = arith.constant 0 : index
    %c64_99 = arith.constant 64 : index
    %400 = vector.load %arg17[%399, %c0_98, %c64_99] : memref<8x8x256xf32, #tpu.memory_space<vmem>>, vector<1x8x64xf32>
    %401 = vector.shape_cast %400 : vector<1x8x64xf32> to vector<8x64xf32>
    %402 = vector.extract_strided_slice %393 {offsets = [0, 64], sizes = [8, 64], strides = [1, 1]} : vector<8x128xf32> to vector<8x64xf32>
    %403 = arith.addf %401, %402 : vector<8x64xf32>
    %404 = vector.extract_strided_slice %398 {offsets = [0, 0], sizes = [8, 48], strides = [1, 1]} : vector<8x64xf32> to vector<8x48xf32>
    %405 = arith.negf %404 : vector<8x48xf32>
    %406 = math.exp %405 : vector<8x48xf32>
    %cst_100 = arith.constant 1.000000e+00 : f32
    %407 = vector.broadcast %cst_100 : f32 to vector<8x48xf32>
    %408 = arith.addf %407, %406 : vector<8x48xf32>
    %409 = arith.divf %407, %408 : vector<8x48xf32>
    %410 = vector.extract_strided_slice %409 {offsets = [0, 0], sizes = [8, 16], strides = [1, 1]} : vector<8x48xf32> to vector<8x16xf32>
    %411 = vector.extract_strided_slice %409 {offsets = [0, 16], sizes = [8, 16], strides = [1, 1]} : vector<8x48xf32> to vector<8x16xf32>
    %412 = vector.extract_strided_slice %409 {offsets = [0, 32], sizes = [8, 16], strides = [1, 1]} : vector<8x48xf32> to vector<8x16xf32>
    %413 = vector.extract_strided_slice %398 {offsets = [0, 48], sizes = [8, 16], strides = [1, 1]} : vector<8x64xf32> to vector<8x16xf32>
    %414 = math.tanh %413 : vector<8x16xf32>
    %415 = arith.mulf %411, %363 : vector<8x16xf32>
    %416 = arith.mulf %410, %414 : vector<8x16xf32>
    %417 = arith.addf %415, %416 : vector<8x16xf32>
    %418 = math.tanh %417 : vector<8x16xf32>
    %419 = arith.mulf %412, %418 : vector<8x16xf32>
    %420 = vector.extract_strided_slice %403 {offsets = [0, 0], sizes = [8, 48], strides = [1, 1]} : vector<8x64xf32> to vector<8x48xf32>
    %421 = arith.negf %420 : vector<8x48xf32>
    %422 = math.exp %421 : vector<8x48xf32>
    %cst_101 = arith.constant 1.000000e+00 : f32
    %423 = vector.broadcast %cst_101 : f32 to vector<8x48xf32>
    %424 = arith.addf %423, %422 : vector<8x48xf32>
    %425 = arith.divf %423, %424 : vector<8x48xf32>
    %426 = vector.extract_strided_slice %425 {offsets = [0, 0], sizes = [8, 16], strides = [1, 1]} : vector<8x48xf32> to vector<8x16xf32>
    %427 = vector.extract_strided_slice %425 {offsets = [0, 16], sizes = [8, 16], strides = [1, 1]} : vector<8x48xf32> to vector<8x16xf32>
    %428 = vector.extract_strided_slice %425 {offsets = [0, 32], sizes = [8, 16], strides = [1, 1]} : vector<8x48xf32> to vector<8x16xf32>
    %429 = vector.extract_strided_slice %403 {offsets = [0, 48], sizes = [8, 16], strides = [1, 1]} : vector<8x64xf32> to vector<8x16xf32>
    %430 = math.tanh %429 : vector<8x16xf32>
    %431 = arith.mulf %427, %379 : vector<8x16xf32>
    %432 = arith.mulf %426, %430 : vector<8x16xf32>
    %433 = arith.addf %431, %432 : vector<8x16xf32>
    %434 = math.tanh %433 : vector<8x16xf32>
    %435 = arith.mulf %428, %434 : vector<8x16xf32>
    %436 = arith.index_cast %c7_i32_93 : i32 to index
    %c0_102 = arith.constant 0 : index
    %c0_103 = arith.constant 0 : index
    %437 = vector.load %arg15[%436, %c0_102, %c0_103] : memref<8x8x32xf32, #tpu.memory_space<vmem>>, vector<1x8x16xf32>
    %438 = vector.shape_cast %437 : vector<1x8x16xf32> to vector<8x16xf32>
    %439 = vector.shape_cast %419 : vector<8x16xf32> to vector<1x8x16xf32>
    tpu.vector_store %arg15[%436, %c0_102, %c0_103], %439 {strides = array<i32>} : memref<8x8x32xf32, #tpu.memory_space<vmem>>, vector<1x8x16xf32>,
    %440 = arith.index_cast %390 : i32 to index
    %c0_104 = arith.constant 0 : index
    %c16_105 = arith.constant 16 : index
    %441 = vector.load %arg15[%440, %c0_104, %c16_105] : memref<8x8x32xf32, #tpu.memory_space<vmem>>, vector<1x8x16xf32>
    %442 = vector.shape_cast %441 : vector<1x8x16xf32> to vector<8x16xf32>
    %443 = vector.shape_cast %435 : vector<8x16xf32> to vector<1x8x16xf32>
    tpu.vector_store %arg15[%440, %c0_104, %c16_105], %443 {strides = array<i32>} : memref<8x8x32xf32, #tpu.memory_space<vmem>>, vector<1x8x16xf32>,
    %c8_i32 = arith.constant 8 : i32
    %c0_106 = arith.constant 0 : index
    %c0_107 = arith.constant 0 : index
    %c0_108 = arith.constant 0 : index
    %444 = vector.load %arg15[%c0_106, %c0_107, %c0_108] : memref<8x8x32xf32, #tpu.memory_space<vmem>>, vector<8x8x32xf32>
    %445 = vector.shape_cast %444 : vector<8x8x32xf32> to vector<64x32xf32>
    %446 = arith.truncf %445 : vector<64x32xf32> to vector<64x32xbf16>
    %c0_109 = arith.constant 0 : index
    %c0_110 = arith.constant 0 : index
    %447 = vector.load %arg6[%c0_109, %c0_110] : memref<32x128xbf16, #tpu.memory_space<vmem>>, vector<32x128xbf16>
    %cst_111 = arith.constant dense<0.000000e+00> : vector<64x128xf32>
    %448 = tpu.matmul %446, %447, %cst_111 {dimension_numbers = #tpu.dot_dimension_numbers<[1], [0], [0], [1], [0, 0, 1, 1], [], []>} : vector<64x32xbf16>, vector<32x128xbf16>, vector<64x128xf32> -> vector<64x128xf32>
    %c0_112 = arith.constant 0 : index
    %c0_113 = arith.constant 0 : index
    %449 = vector.load %arg8[%c0_112, %c0_113] : memref<1x128xf32, #tpu.memory_space<vmem>>, vector<1x128xf32>
    %450 = vector.broadcast %449 : vector<1x128xf32> to vector<64x128xf32>
    %451 = arith.addf %448, %450 : vector<64x128xf32>
    %452 = vector.shape_cast %451 : vector<64x128xf32> to vector<8x8x128xf32>
    %c0_114 = arith.constant 0 : index
    %c0_115 = arith.constant 0 : index
    %c0_116 = arith.constant 0 : index
    %453 = vector.load %arg17[%c0_114, %c0_115, %c0_116] : memref<8x8x256xf32, #tpu.memory_space<vmem>>, vector<8x8x128xf32>
    tpu.vector_store %arg17[%c0_114, %c0_115, %c0_116], %452 {strides = array<i32>} : memref<8x8x256xf32, #tpu.memory_space<vmem>>, vector<8x8x128xf32>,
    %c0_117 = arith.constant 0 : index
    %c0_118 = arith.constant 0 : index
    %454 = vector.load %arg7[%c0_117, %c0_118] : memref<32x128xbf16, #tpu.memory_space<vmem>>, vector<32x128xbf16>
    %cst_119 = arith.constant 0.000000e+00 : f32
    %455 = vector.broadcast %cst_119 : f32 to vector<8x16xf32>
    %c0_i32_120 = arith.constant 0 : i32
    %c7_i32_121 = arith.constant 7 : i32
    %456 = arith.subi %c7_i32_121, %c0_i32_120 : i32
    %457 = tpu.concatenate %455, %455 in 1 : vector<8x16xf32>, vector<8x16xf32> -> vector<8x32xf32>
    %458 = arith.truncf %457 : vector<8x32xf32> to vector<8x32xbf16>
    %cst_122 = arith.constant dense<0.000000e+00> : vector<8x128xf32>
    %459 = tpu.matmul %458, %454, %cst_122 {dimension_numbers = #tpu.dot_dimension_numbers<[1], [0], [0], [1], [0, 0, 1, 1], [], []>} : vector<8x32xbf16>, vector<32x128xbf16>, vector<8x128xf32> -> vector<8x128xf32>
    %460 = arith.index_cast %c0_i32_120 : i32 to index
    %c0_123 = arith.constant 0 : index
    %c0_124 = arith.constant 0 : index
    %461 = vector.load %arg17[%460, %c0_123, %c0_124] : memref<8x8x256xf32, #tpu.memory_space<vmem>>, vector<1x8x64xf32>
    %462 = vector.shape_cast %461 : vector<1x8x64xf32> to vector<8x64xf32>
    %463 = vector.extract_strided_slice %459 {offsets = [0, 0], sizes = [8, 64], strides = [1, 1]} : vector<8x128xf32> to vector<8x64xf32>
    %464 = arith.addf %462, %463 : vector<8x64xf32>
    %465 = arith.index_cast %456 : i32 to index
    %c0_125 = arith.constant 0 : index
    %c64_126 = arith.constant 64 : index
    %466 = vector.load %arg17[%465, %c0_125, %c64_126] : memref<8x8x256xf32, #tpu.memory_space<vmem>>, vector<1x8x64xf32>
    %467 = vector.shape_cast %466 : vector<1x8x64xf32> to vector<8x64xf32>
    %468 = vector.extract_strided_slice %459 {offsets = [0, 64], sizes = [8, 64], strides = [1, 1]} : vector<8x128xf32> to vector<8x64xf32>
    %469 = arith.addf %467, %468 : vector<8x64xf32>
    %470 = vector.extract_strided_slice %464 {offsets = [0, 0], sizes = [8, 48], strides = [1, 1]} : vector<8x64xf32> to vector<8x48xf32>
    %471 = arith.negf %470 : vector<8x48xf32>
    %472 = math.exp %471 : vector<8x48xf32>
    %cst_127 = arith.constant 1.000000e+00 : f32
    %473 = vector.broadcast %cst_127 : f32 to vector<8x48xf32>
    %474 = arith.addf %473, %472 : vector<8x48xf32>
    %475 = arith.divf %473, %474 : vector<8x48xf32>
    %476 = vector.extract_strided_slice %475 {offsets = [0, 0], sizes = [8, 16], strides = [1, 1]} : vector<8x48xf32> to vector<8x16xf32>
    %477 = vector.extract_strided_slice %475 {offsets = [0, 16], sizes = [8, 16], strides = [1, 1]} : vector<8x48xf32> to vector<8x16xf32>
    %478 = vector.extract_strided_slice %475 {offsets = [0, 32], sizes = [8, 16], strides = [1, 1]} : vector<8x48xf32> to vector<8x16xf32>
    %479 = vector.extract_strided_slice %464 {offsets = [0, 48], sizes = [8, 16], strides = [1, 1]} : vector<8x64xf32> to vector<8x16xf32>
    %480 = math.tanh %479 : vector<8x16xf32>
    %481 = arith.mulf %477, %455 : vector<8x16xf32>
    %482 = arith.mulf %476, %480 : vector<8x16xf32>
    %483 = arith.addf %481, %482 : vector<8x16xf32>
    %484 = math.tanh %483 : vector<8x16xf32>
    %485 = arith.mulf %478, %484 : vector<8x16xf32>
    %486 = vector.extract_strided_slice %469 {offsets = [0, 0], sizes = [8, 48], strides = [1, 1]} : vector<8x64xf32> to vector<8x48xf32>
    %487 = arith.negf %486 : vector<8x48xf32>
    %488 = math.exp %487 : vector<8x48xf32>
    %cst_128 = arith.constant 1.000000e+00 : f32
    %489 = vector.broadcast %cst_128 : f32 to vector<8x48xf32>
    %490 = arith.addf %489, %488 : vector<8x48xf32>
    %491 = arith.divf %489, %490 : vector<8x48xf32>
    %492 = vector.extract_strided_slice %491 {offsets = [0, 0], sizes = [8, 16], strides = [1, 1]} : vector<8x48xf32> to vector<8x16xf32>
    %493 = vector.extract_strided_slice %491 {offsets = [0, 16], sizes = [8, 16], strides = [1, 1]} : vector<8x48xf32> to vector<8x16xf32>
    %494 = vector.extract_strided_slice %491 {offsets = [0, 32], sizes = [8, 16], strides = [1, 1]} : vector<8x48xf32> to vector<8x16xf32>
    %495 = vector.extract_strided_slice %469 {offsets = [0, 48], sizes = [8, 16], strides = [1, 1]} : vector<8x64xf32> to vector<8x16xf32>
    %496 = math.tanh %495 : vector<8x16xf32>
    %497 = arith.mulf %493, %455 : vector<8x16xf32>
    %498 = arith.mulf %492, %496 : vector<8x16xf32>
    %499 = arith.addf %497, %498 : vector<8x16xf32>
    %500 = math.tanh %499 : vector<8x16xf32>
    %501 = arith.mulf %494, %500 : vector<8x16xf32>
    %502 = arith.index_cast %c0_i32_120 : i32 to index
    %c0_129 = arith.constant 0 : index
    %c0_130 = arith.constant 0 : index
    %503 = vector.load %arg16[%502, %c0_129, %c0_130] : memref<8x8x32xf32, #tpu.memory_space<vmem>>, vector<1x8x16xf32>
    %504 = vector.shape_cast %503 : vector<1x8x16xf32> to vector<8x16xf32>
    %505 = vector.shape_cast %485 : vector<8x16xf32> to vector<1x8x16xf32>
    tpu.vector_store %arg16[%502, %c0_129, %c0_130], %505 {strides = array<i32>} : memref<8x8x32xf32, #tpu.memory_space<vmem>>, vector<1x8x16xf32>,
    %506 = arith.index_cast %456 : i32 to index
    %c0_131 = arith.constant 0 : index
    %c16_132 = arith.constant 16 : index
    %507 = vector.load %arg16[%506, %c0_131, %c16_132] : memref<8x8x32xf32, #tpu.memory_space<vmem>>, vector<1x8x16xf32>
    %508 = vector.shape_cast %507 : vector<1x8x16xf32> to vector<8x16xf32>
    %509 = vector.shape_cast %501 : vector<8x16xf32> to vector<1x8x16xf32>
    tpu.vector_store %arg16[%506, %c0_131, %c16_132], %509 {strides = array<i32>} : memref<8x8x32xf32, #tpu.memory_space<vmem>>, vector<1x8x16xf32>,
    %c1_i32_133 = arith.constant 1 : i32
    %c7_i32_134 = arith.constant 7 : i32
    %510 = arith.subi %c7_i32_134, %c1_i32_133 : i32
    %511 = tpu.concatenate %485, %501 in 1 : vector<8x16xf32>, vector<8x16xf32> -> vector<8x32xf32>
    %512 = arith.truncf %511 : vector<8x32xf32> to vector<8x32xbf16>
    %cst_135 = arith.constant dense<0.000000e+00> : vector<8x128xf32>
    %513 = tpu.matmul %512, %454, %cst_135 {dimension_numbers = #tpu.dot_dimension_numbers<[1], [0], [0], [1], [0, 0, 1, 1], [], []>} : vector<8x32xbf16>, vector<32x128xbf16>, vector<8x128xf32> -> vector<8x128xf32>
    %514 = arith.index_cast %c1_i32_133 : i32 to index
    %c0_136 = arith.constant 0 : index
    %c0_137 = arith.constant 0 : index
    %515 = vector.load %arg17[%514, %c0_136, %c0_137] : memref<8x8x256xf32, #tpu.memory_space<vmem>>, vector<1x8x64xf32>
    %516 = vector.shape_cast %515 : vector<1x8x64xf32> to vector<8x64xf32>
    %517 = vector.extract_strided_slice %513 {offsets = [0, 0], sizes = [8, 64], strides = [1, 1]} : vector<8x128xf32> to vector<8x64xf32>
    %518 = arith.addf %516, %517 : vector<8x64xf32>
    %519 = arith.index_cast %510 : i32 to index
    %c0_138 = arith.constant 0 : index
    %c64_139 = arith.constant 64 : index
    %520 = vector.load %arg17[%519, %c0_138, %c64_139] : memref<8x8x256xf32, #tpu.memory_space<vmem>>, vector<1x8x64xf32>
    %521 = vector.shape_cast %520 : vector<1x8x64xf32> to vector<8x64xf32>
    %522 = vector.extract_strided_slice %513 {offsets = [0, 64], sizes = [8, 64], strides = [1, 1]} : vector<8x128xf32> to vector<8x64xf32>
    %523 = arith.addf %521, %522 : vector<8x64xf32>
    %524 = vector.extract_strided_slice %518 {offsets = [0, 0], sizes = [8, 48], strides = [1, 1]} : vector<8x64xf32> to vector<8x48xf32>
    %525 = arith.negf %524 : vector<8x48xf32>
    %526 = math.exp %525 : vector<8x48xf32>
    %cst_140 = arith.constant 1.000000e+00 : f32
    %527 = vector.broadcast %cst_140 : f32 to vector<8x48xf32>
    %528 = arith.addf %527, %526 : vector<8x48xf32>
    %529 = arith.divf %527, %528 : vector<8x48xf32>
    %530 = vector.extract_strided_slice %529 {offsets = [0, 0], sizes = [8, 16], strides = [1, 1]} : vector<8x48xf32> to vector<8x16xf32>
    %531 = vector.extract_strided_slice %529 {offsets = [0, 16], sizes = [8, 16], strides = [1, 1]} : vector<8x48xf32> to vector<8x16xf32>
    %532 = vector.extract_strided_slice %529 {offsets = [0, 32], sizes = [8, 16], strides = [1, 1]} : vector<8x48xf32> to vector<8x16xf32>
    %533 = vector.extract_strided_slice %518 {offsets = [0, 48], sizes = [8, 16], strides = [1, 1]} : vector<8x64xf32> to vector<8x16xf32>
    %534 = math.tanh %533 : vector<8x16xf32>
    %535 = arith.mulf %531, %483 : vector<8x16xf32>
    %536 = arith.mulf %530, %534 : vector<8x16xf32>
    %537 = arith.addf %535, %536 : vector<8x16xf32>
    %538 = math.tanh %537 : vector<8x16xf32>
    %539 = arith.mulf %532, %538 : vector<8x16xf32>
    %540 = vector.extract_strided_slice %523 {offsets = [0, 0], sizes = [8, 48], strides = [1, 1]} : vector<8x64xf32> to vector<8x48xf32>
    %541 = arith.negf %540 : vector<8x48xf32>
    %542 = math.exp %541 : vector<8x48xf32>
    %cst_141 = arith.constant 1.000000e+00 : f32
    %543 = vector.broadcast %cst_141 : f32 to vector<8x48xf32>
    %544 = arith.addf %543, %542 : vector<8x48xf32>
    %545 = arith.divf %543, %544 : vector<8x48xf32>
    %546 = vector.extract_strided_slice %545 {offsets = [0, 0], sizes = [8, 16], strides = [1, 1]} : vector<8x48xf32> to vector<8x16xf32>
    %547 = vector.extract_strided_slice %545 {offsets = [0, 16], sizes = [8, 16], strides = [1, 1]} : vector<8x48xf32> to vector<8x16xf32>
    %548 = vector.extract_strided_slice %545 {offsets = [0, 32], sizes = [8, 16], strides = [1, 1]} : vector<8x48xf32> to vector<8x16xf32>
    %549 = vector.extract_strided_slice %523 {offsets = [0, 48], sizes = [8, 16], strides = [1, 1]} : vector<8x64xf32> to vector<8x16xf32>
    %550 = math.tanh %549 : vector<8x16xf32>
    %551 = arith.mulf %547, %499 : vector<8x16xf32>
    %552 = arith.mulf %546, %550 : vector<8x16xf32>
    %553 = arith.addf %551, %552 : vector<8x16xf32>
    %554 = math.tanh %553 : vector<8x16xf32>
    %555 = arith.mulf %548, %554 : vector<8x16xf32>
    %556 = arith.index_cast %c1_i32_133 : i32 to index
    %c0_142 = arith.constant 0 : index
    %c0_143 = arith.constant 0 : index
    %557 = vector.load %arg16[%556, %c0_142, %c0_143] : memref<8x8x32xf32, #tpu.memory_space<vmem>>, vector<1x8x16xf32>
    %558 = vector.shape_cast %557 : vector<1x8x16xf32> to vector<8x16xf32>
    %559 = vector.shape_cast %539 : vector<8x16xf32> to vector<1x8x16xf32>
    tpu.vector_store %arg16[%556, %c0_142, %c0_143], %559 {strides = array<i32>} : memref<8x8x32xf32, #tpu.memory_space<vmem>>, vector<1x8x16xf32>,
    %560 = arith.index_cast %510 : i32 to index
    %c0_144 = arith.constant 0 : index
    %c16_145 = arith.constant 16 : index
    %561 = vector.load %arg16[%560, %c0_144, %c16_145] : memref<8x8x32xf32, #tpu.memory_space<vmem>>, vector<1x8x16xf32>
    %562 = vector.shape_cast %561 : vector<1x8x16xf32> to vector<8x16xf32>
    %563 = vector.shape_cast %555 : vector<8x16xf32> to vector<1x8x16xf32>
    tpu.vector_store %arg16[%560, %c0_144, %c16_145], %563 {strides = array<i32>} : memref<8x8x32xf32, #tpu.memory_space<vmem>>, vector<1x8x16xf32>,
    %c2_i32_146 = arith.constant 2 : i32
    %c7_i32_147 = arith.constant 7 : i32
    %564 = arith.subi %c7_i32_147, %c2_i32_146 : i32
    %565 = tpu.concatenate %539, %555 in 1 : vector<8x16xf32>, vector<8x16xf32> -> vector<8x32xf32>
    %566 = arith.truncf %565 : vector<8x32xf32> to vector<8x32xbf16>
    %cst_148 = arith.constant dense<0.000000e+00> : vector<8x128xf32>
    %567 = tpu.matmul %566, %454, %cst_148 {dimension_numbers = #tpu.dot_dimension_numbers<[1], [0], [0], [1], [0, 0, 1, 1], [], []>} : vector<8x32xbf16>, vector<32x128xbf16>, vector<8x128xf32> -> vector<8x128xf32>
    %568 = arith.index_cast %c2_i32_146 : i32 to index
    %c0_149 = arith.constant 0 : index
    %c0_150 = arith.constant 0 : index
    %569 = vector.load %arg17[%568, %c0_149, %c0_150] : memref<8x8x256xf32, #tpu.memory_space<vmem>>, vector<1x8x64xf32>
    %570 = vector.shape_cast %569 : vector<1x8x64xf32> to vector<8x64xf32>
    %571 = vector.extract_strided_slice %567 {offsets = [0, 0], sizes = [8, 64], strides = [1, 1]} : vector<8x128xf32> to vector<8x64xf32>
    %572 = arith.addf %570, %571 : vector<8x64xf32>
    %573 = arith.index_cast %564 : i32 to index
    %c0_151 = arith.constant 0 : index
    %c64_152 = arith.constant 64 : index
    %574 = vector.load %arg17[%573, %c0_151, %c64_152] : memref<8x8x256xf32, #tpu.memory_space<vmem>>, vector<1x8x64xf32>
    %575 = vector.shape_cast %574 : vector<1x8x64xf32> to vector<8x64xf32>
    %576 = vector.extract_strided_slice %567 {offsets = [0, 64], sizes = [8, 64], strides = [1, 1]} : vector<8x128xf32> to vector<8x64xf32>
    %577 = arith.addf %575, %576 : vector<8x64xf32>
    %578 = vector.extract_strided_slice %572 {offsets = [0, 0], sizes = [8, 48], strides = [1, 1]} : vector<8x64xf32> to vector<8x48xf32>
    %579 = arith.negf %578 : vector<8x48xf32>
    %580 = math.exp %579 : vector<8x48xf32>
    %cst_153 = arith.constant 1.000000e+00 : f32
    %581 = vector.broadcast %cst_153 : f32 to vector<8x48xf32>
    %582 = arith.addf %581, %580 : vector<8x48xf32>
    %583 = arith.divf %581, %582 : vector<8x48xf32>
    %584 = vector.extract_strided_slice %583 {offsets = [0, 0], sizes = [8, 16], strides = [1, 1]} : vector<8x48xf32> to vector<8x16xf32>
    %585 = vector.extract_strided_slice %583 {offsets = [0, 16], sizes = [8, 16], strides = [1, 1]} : vector<8x48xf32> to vector<8x16xf32>
    %586 = vector.extract_strided_slice %583 {offsets = [0, 32], sizes = [8, 16], strides = [1, 1]} : vector<8x48xf32> to vector<8x16xf32>
    %587 = vector.extract_strided_slice %572 {offsets = [0, 48], sizes = [8, 16], strides = [1, 1]} : vector<8x64xf32> to vector<8x16xf32>
    %588 = math.tanh %587 : vector<8x16xf32>
    %589 = arith.mulf %585, %537 : vector<8x16xf32>
    %590 = arith.mulf %584, %588 : vector<8x16xf32>
    %591 = arith.addf %589, %590 : vector<8x16xf32>
    %592 = math.tanh %591 : vector<8x16xf32>
    %593 = arith.mulf %586, %592 : vector<8x16xf32>
    %594 = vector.extract_strided_slice %577 {offsets = [0, 0], sizes = [8, 48], strides = [1, 1]} : vector<8x64xf32> to vector<8x48xf32>
    %595 = arith.negf %594 : vector<8x48xf32>
    %596 = math.exp %595 : vector<8x48xf32>
    %cst_154 = arith.constant 1.000000e+00 : f32
    %597 = vector.broadcast %cst_154 : f32 to vector<8x48xf32>
    %598 = arith.addf %597, %596 : vector<8x48xf32>
    %599 = arith.divf %597, %598 : vector<8x48xf32>
    %600 = vector.extract_strided_slice %599 {offsets = [0, 0], sizes = [8, 16], strides = [1, 1]} : vector<8x48xf32> to vector<8x16xf32>
    %601 = vector.extract_strided_slice %599 {offsets = [0, 16], sizes = [8, 16], strides = [1, 1]} : vector<8x48xf32> to vector<8x16xf32>
    %602 = vector.extract_strided_slice %599 {offsets = [0, 32], sizes = [8, 16], strides = [1, 1]} : vector<8x48xf32> to vector<8x16xf32>
    %603 = vector.extract_strided_slice %577 {offsets = [0, 48], sizes = [8, 16], strides = [1, 1]} : vector<8x64xf32> to vector<8x16xf32>
    %604 = math.tanh %603 : vector<8x16xf32>
    %605 = arith.mulf %601, %553 : vector<8x16xf32>
    %606 = arith.mulf %600, %604 : vector<8x16xf32>
    %607 = arith.addf %605, %606 : vector<8x16xf32>
    %608 = math.tanh %607 : vector<8x16xf32>
    %609 = arith.mulf %602, %608 : vector<8x16xf32>
    %610 = arith.index_cast %c2_i32_146 : i32 to index
    %c0_155 = arith.constant 0 : index
    %c0_156 = arith.constant 0 : index
    %611 = vector.load %arg16[%610, %c0_155, %c0_156] : memref<8x8x32xf32, #tpu.memory_space<vmem>>, vector<1x8x16xf32>
    %612 = vector.shape_cast %611 : vector<1x8x16xf32> to vector<8x16xf32>
    %613 = vector.shape_cast %593 : vector<8x16xf32> to vector<1x8x16xf32>
    tpu.vector_store %arg16[%610, %c0_155, %c0_156], %613 {strides = array<i32>} : memref<8x8x32xf32, #tpu.memory_space<vmem>>, vector<1x8x16xf32>,
    %614 = arith.index_cast %564 : i32 to index
    %c0_157 = arith.constant 0 : index
    %c16_158 = arith.constant 16 : index
    %615 = vector.load %arg16[%614, %c0_157, %c16_158] : memref<8x8x32xf32, #tpu.memory_space<vmem>>, vector<1x8x16xf32>
    %616 = vector.shape_cast %615 : vector<1x8x16xf32> to vector<8x16xf32>
    %617 = vector.shape_cast %609 : vector<8x16xf32> to vector<1x8x16xf32>
    tpu.vector_store %arg16[%614, %c0_157, %c16_158], %617 {strides = array<i32>} : memref<8x8x32xf32, #tpu.memory_space<vmem>>, vector<1x8x16xf32>,
    %c3_i32_159 = arith.constant 3 : i32
    %c7_i32_160 = arith.constant 7 : i32
    %618 = arith.subi %c7_i32_160, %c3_i32_159 : i32
    %619 = tpu.concatenate %593, %609 in 1 : vector<8x16xf32>, vector<8x16xf32> -> vector<8x32xf32>
    %620 = arith.truncf %619 : vector<8x32xf32> to vector<8x32xbf16>
    %cst_161 = arith.constant dense<0.000000e+00> : vector<8x128xf32>
    %621 = tpu.matmul %620, %454, %cst_161 {dimension_numbers = #tpu.dot_dimension_numbers<[1], [0], [0], [1], [0, 0, 1, 1], [], []>} : vector<8x32xbf16>, vector<32x128xbf16>, vector<8x128xf32> -> vector<8x128xf32>
    %622 = arith.index_cast %c3_i32_159 : i32 to index
    %c0_162 = arith.constant 0 : index
    %c0_163 = arith.constant 0 : index
    %623 = vector.load %arg17[%622, %c0_162, %c0_163] : memref<8x8x256xf32, #tpu.memory_space<vmem>>, vector<1x8x64xf32>
    %624 = vector.shape_cast %623 : vector<1x8x64xf32> to vector<8x64xf32>
    %625 = vector.extract_strided_slice %621 {offsets = [0, 0], sizes = [8, 64], strides = [1, 1]} : vector<8x128xf32> to vector<8x64xf32>
    %626 = arith.addf %624, %625 : vector<8x64xf32>
    %627 = arith.index_cast %618 : i32 to index
    %c0_164 = arith.constant 0 : index
    %c64_165 = arith.constant 64 : index
    %628 = vector.load %arg17[%627, %c0_164, %c64_165] : memref<8x8x256xf32, #tpu.memory_space<vmem>>, vector<1x8x64xf32>
    %629 = vector.shape_cast %628 : vector<1x8x64xf32> to vector<8x64xf32>
    %630 = vector.extract_strided_slice %621 {offsets = [0, 64], sizes = [8, 64], strides = [1, 1]} : vector<8x128xf32> to vector<8x64xf32>
    %631 = arith.addf %629, %630 : vector<8x64xf32>
    %632 = vector.extract_strided_slice %626 {offsets = [0, 0], sizes = [8, 48], strides = [1, 1]} : vector<8x64xf32> to vector<8x48xf32>
    %633 = arith.negf %632 : vector<8x48xf32>
    %634 = math.exp %633 : vector<8x48xf32>
    %cst_166 = arith.constant 1.000000e+00 : f32
    %635 = vector.broadcast %cst_166 : f32 to vector<8x48xf32>
    %636 = arith.addf %635, %634 : vector<8x48xf32>
    %637 = arith.divf %635, %636 : vector<8x48xf32>
    %638 = vector.extract_strided_slice %637 {offsets = [0, 0], sizes = [8, 16], strides = [1, 1]} : vector<8x48xf32> to vector<8x16xf32>
    %639 = vector.extract_strided_slice %637 {offsets = [0, 16], sizes = [8, 16], strides = [1, 1]} : vector<8x48xf32> to vector<8x16xf32>
    %640 = vector.extract_strided_slice %637 {offsets = [0, 32], sizes = [8, 16], strides = [1, 1]} : vector<8x48xf32> to vector<8x16xf32>
    %641 = vector.extract_strided_slice %626 {offsets = [0, 48], sizes = [8, 16], strides = [1, 1]} : vector<8x64xf32> to vector<8x16xf32>
    %642 = math.tanh %641 : vector<8x16xf32>
    %643 = arith.mulf %639, %591 : vector<8x16xf32>
    %644 = arith.mulf %638, %642 : vector<8x16xf32>
    %645 = arith.addf %643, %644 : vector<8x16xf32>
    %646 = math.tanh %645 : vector<8x16xf32>
    %647 = arith.mulf %640, %646 : vector<8x16xf32>
    %648 = vector.extract_strided_slice %631 {offsets = [0, 0], sizes = [8, 48], strides = [1, 1]} : vector<8x64xf32> to vector<8x48xf32>
    %649 = arith.negf %648 : vector<8x48xf32>
    %650 = math.exp %649 : vector<8x48xf32>
    %cst_167 = arith.constant 1.000000e+00 : f32
    %651 = vector.broadcast %cst_167 : f32 to vector<8x48xf32>
    %652 = arith.addf %651, %650 : vector<8x48xf32>
    %653 = arith.divf %651, %652 : vector<8x48xf32>
    %654 = vector.extract_strided_slice %653 {offsets = [0, 0], sizes = [8, 16], strides = [1, 1]} : vector<8x48xf32> to vector<8x16xf32>
    %655 = vector.extract_strided_slice %653 {offsets = [0, 16], sizes = [8, 16], strides = [1, 1]} : vector<8x48xf32> to vector<8x16xf32>
    %656 = vector.extract_strided_slice %653 {offsets = [0, 32], sizes = [8, 16], strides = [1, 1]} : vector<8x48xf32> to vector<8x16xf32>
    %657 = vector.extract_strided_slice %631 {offsets = [0, 48], sizes = [8, 16], strides = [1, 1]} : vector<8x64xf32> to vector<8x16xf32>
    %658 = math.tanh %657 : vector<8x16xf32>
    %659 = arith.mulf %655, %607 : vector<8x16xf32>
    %660 = arith.mulf %654, %658 : vector<8x16xf32>
    %661 = arith.addf %659, %660 : vector<8x16xf32>
    %662 = math.tanh %661 : vector<8x16xf32>
    %663 = arith.mulf %656, %662 : vector<8x16xf32>
    %664 = arith.index_cast %c3_i32_159 : i32 to index
    %c0_168 = arith.constant 0 : index
    %c0_169 = arith.constant 0 : index
    %665 = vector.load %arg16[%664, %c0_168, %c0_169] : memref<8x8x32xf32, #tpu.memory_space<vmem>>, vector<1x8x16xf32>
    %666 = vector.shape_cast %665 : vector<1x8x16xf32> to vector<8x16xf32>
    %667 = vector.shape_cast %647 : vector<8x16xf32> to vector<1x8x16xf32>
    tpu.vector_store %arg16[%664, %c0_168, %c0_169], %667 {strides = array<i32>} : memref<8x8x32xf32, #tpu.memory_space<vmem>>, vector<1x8x16xf32>,
    %668 = arith.index_cast %618 : i32 to index
    %c0_170 = arith.constant 0 : index
    %c16_171 = arith.constant 16 : index
    %669 = vector.load %arg16[%668, %c0_170, %c16_171] : memref<8x8x32xf32, #tpu.memory_space<vmem>>, vector<1x8x16xf32>
    %670 = vector.shape_cast %669 : vector<1x8x16xf32> to vector<8x16xf32>
    %671 = vector.shape_cast %663 : vector<8x16xf32> to vector<1x8x16xf32>
    tpu.vector_store %arg16[%668, %c0_170, %c16_171], %671 {strides = array<i32>} : memref<8x8x32xf32, #tpu.memory_space<vmem>>, vector<1x8x16xf32>,
    %c4_i32_172 = arith.constant 4 : i32
    %c7_i32_173 = arith.constant 7 : i32
    %672 = arith.subi %c7_i32_173, %c4_i32_172 : i32
    %673 = tpu.concatenate %647, %663 in 1 : vector<8x16xf32>, vector<8x16xf32> -> vector<8x32xf32>
    %674 = arith.truncf %673 : vector<8x32xf32> to vector<8x32xbf16>
    %cst_174 = arith.constant dense<0.000000e+00> : vector<8x128xf32>
    %675 = tpu.matmul %674, %454, %cst_174 {dimension_numbers = #tpu.dot_dimension_numbers<[1], [0], [0], [1], [0, 0, 1, 1], [], []>} : vector<8x32xbf16>, vector<32x128xbf16>, vector<8x128xf32> -> vector<8x128xf32>
    %676 = arith.index_cast %c4_i32_172 : i32 to index
    %c0_175 = arith.constant 0 : index
    %c0_176 = arith.constant 0 : index
    %677 = vector.load %arg17[%676, %c0_175, %c0_176] : memref<8x8x256xf32, #tpu.memory_space<vmem>>, vector<1x8x64xf32>
    %678 = vector.shape_cast %677 : vector<1x8x64xf32> to vector<8x64xf32>
    %679 = vector.extract_strided_slice %675 {offsets = [0, 0], sizes = [8, 64], strides = [1, 1]} : vector<8x128xf32> to vector<8x64xf32>
    %680 = arith.addf %678, %679 : vector<8x64xf32>
    %681 = arith.index_cast %672 : i32 to index
    %c0_177 = arith.constant 0 : index
    %c64_178 = arith.constant 64 : index
    %682 = vector.load %arg17[%681, %c0_177, %c64_178] : memref<8x8x256xf32, #tpu.memory_space<vmem>>, vector<1x8x64xf32>
    %683 = vector.shape_cast %682 : vector<1x8x64xf32> to vector<8x64xf32>
    %684 = vector.extract_strided_slice %675 {offsets = [0, 64], sizes = [8, 64], strides = [1, 1]} : vector<8x128xf32> to vector<8x64xf32>
    %685 = arith.addf %683, %684 : vector<8x64xf32>
    %686 = vector.extract_strided_slice %680 {offsets = [0, 0], sizes = [8, 48], strides = [1, 1]} : vector<8x64xf32> to vector<8x48xf32>
    %687 = arith.negf %686 : vector<8x48xf32>
    %688 = math.exp %687 : vector<8x48xf32>
    %cst_179 = arith.constant 1.000000e+00 : f32
    %689 = vector.broadcast %cst_179 : f32 to vector<8x48xf32>
    %690 = arith.addf %689, %688 : vector<8x48xf32>
    %691 = arith.divf %689, %690 : vector<8x48xf32>
    %692 = vector.extract_strided_slice %691 {offsets = [0, 0], sizes = [8, 16], strides = [1, 1]} : vector<8x48xf32> to vector<8x16xf32>
    %693 = vector.extract_strided_slice %691 {offsets = [0, 16], sizes = [8, 16], strides = [1, 1]} : vector<8x48xf32> to vector<8x16xf32>
    %694 = vector.extract_strided_slice %691 {offsets = [0, 32], sizes = [8, 16], strides = [1, 1]} : vector<8x48xf32> to vector<8x16xf32>
    %695 = vector.extract_strided_slice %680 {offsets = [0, 48], sizes = [8, 16], strides = [1, 1]} : vector<8x64xf32> to vector<8x16xf32>
    %696 = math.tanh %695 : vector<8x16xf32>
    %697 = arith.mulf %693, %645 : vector<8x16xf32>
    %698 = arith.mulf %692, %696 : vector<8x16xf32>
    %699 = arith.addf %697, %698 : vector<8x16xf32>
    %700 = math.tanh %699 : vector<8x16xf32>
    %701 = arith.mulf %694, %700 : vector<8x16xf32>
    %702 = vector.extract_strided_slice %685 {offsets = [0, 0], sizes = [8, 48], strides = [1, 1]} : vector<8x64xf32> to vector<8x48xf32>
    %703 = arith.negf %702 : vector<8x48xf32>
    %704 = math.exp %703 : vector<8x48xf32>
    %cst_180 = arith.constant 1.000000e+00 : f32
    %705 = vector.broadcast %cst_180 : f32 to vector<8x48xf32>
    %706 = arith.addf %705, %704 : vector<8x48xf32>
    %707 = arith.divf %705, %706 : vector<8x48xf32>
    %708 = vector.extract_strided_slice %707 {offsets = [0, 0], sizes = [8, 16], strides = [1, 1]} : vector<8x48xf32> to vector<8x16xf32>
    %709 = vector.extract_strided_slice %707 {offsets = [0, 16], sizes = [8, 16], strides = [1, 1]} : vector<8x48xf32> to vector<8x16xf32>
    %710 = vector.extract_strided_slice %707 {offsets = [0, 32], sizes = [8, 16], strides = [1, 1]} : vector<8x48xf32> to vector<8x16xf32>
    %711 = vector.extract_strided_slice %685 {offsets = [0, 48], sizes = [8, 16], strides = [1, 1]} : vector<8x64xf32> to vector<8x16xf32>
    %712 = math.tanh %711 : vector<8x16xf32>
    %713 = arith.mulf %709, %661 : vector<8x16xf32>
    %714 = arith.mulf %708, %712 : vector<8x16xf32>
    %715 = arith.addf %713, %714 : vector<8x16xf32>
    %716 = math.tanh %715 : vector<8x16xf32>
    %717 = arith.mulf %710, %716 : vector<8x16xf32>
    %718 = arith.index_cast %c4_i32_172 : i32 to index
    %c0_181 = arith.constant 0 : index
    %c0_182 = arith.constant 0 : index
    %719 = vector.load %arg16[%718, %c0_181, %c0_182] : memref<8x8x32xf32, #tpu.memory_space<vmem>>, vector<1x8x16xf32>
    %720 = vector.shape_cast %719 : vector<1x8x16xf32> to vector<8x16xf32>
    %721 = vector.shape_cast %701 : vector<8x16xf32> to vector<1x8x16xf32>
    tpu.vector_store %arg16[%718, %c0_181, %c0_182], %721 {strides = array<i32>} : memref<8x8x32xf32, #tpu.memory_space<vmem>>, vector<1x8x16xf32>,
    %722 = arith.index_cast %672 : i32 to index
    %c0_183 = arith.constant 0 : index
    %c16_184 = arith.constant 16 : index
    %723 = vector.load %arg16[%722, %c0_183, %c16_184] : memref<8x8x32xf32, #tpu.memory_space<vmem>>, vector<1x8x16xf32>
    %724 = vector.shape_cast %723 : vector<1x8x16xf32> to vector<8x16xf32>
    %725 = vector.shape_cast %717 : vector<8x16xf32> to vector<1x8x16xf32>
    tpu.vector_store %arg16[%722, %c0_183, %c16_184], %725 {strides = array<i32>} : memref<8x8x32xf32, #tpu.memory_space<vmem>>, vector<1x8x16xf32>,
    %c5_i32_185 = arith.constant 5 : i32
    %c7_i32_186 = arith.constant 7 : i32
    %726 = arith.subi %c7_i32_186, %c5_i32_185 : i32
    %727 = tpu.concatenate %701, %717 in 1 : vector<8x16xf32>, vector<8x16xf32> -> vector<8x32xf32>
    %728 = arith.truncf %727 : vector<8x32xf32> to vector<8x32xbf16>
    %cst_187 = arith.constant dense<0.000000e+00> : vector<8x128xf32>
    %729 = tpu.matmul %728, %454, %cst_187 {dimension_numbers = #tpu.dot_dimension_numbers<[1], [0], [0], [1], [0, 0, 1, 1], [], []>} : vector<8x32xbf16>, vector<32x128xbf16>, vector<8x128xf32> -> vector<8x128xf32>
    %730 = arith.index_cast %c5_i32_185 : i32 to index
    %c0_188 = arith.constant 0 : index
    %c0_189 = arith.constant 0 : index
    %731 = vector.load %arg17[%730, %c0_188, %c0_189] : memref<8x8x256xf32, #tpu.memory_space<vmem>>, vector<1x8x64xf32>
    %732 = vector.shape_cast %731 : vector<1x8x64xf32> to vector<8x64xf32>
    %733 = vector.extract_strided_slice %729 {offsets = [0, 0], sizes = [8, 64], strides = [1, 1]} : vector<8x128xf32> to vector<8x64xf32>
    %734 = arith.addf %732, %733 : vector<8x64xf32>
    %735 = arith.index_cast %726 : i32 to index
    %c0_190 = arith.constant 0 : index
    %c64_191 = arith.constant 64 : index
    %736 = vector.load %arg17[%735, %c0_190, %c64_191] : memref<8x8x256xf32, #tpu.memory_space<vmem>>, vector<1x8x64xf32>
    %737 = vector.shape_cast %736 : vector<1x8x64xf32> to vector<8x64xf32>
    %738 = vector.extract_strided_slice %729 {offsets = [0, 64], sizes = [8, 64], strides = [1, 1]} : vector<8x128xf32> to vector<8x64xf32>
    %739 = arith.addf %737, %738 : vector<8x64xf32>
    %740 = vector.extract_strided_slice %734 {offsets = [0, 0], sizes = [8, 48], strides = [1, 1]} : vector<8x64xf32> to vector<8x48xf32>
    %741 = arith.negf %740 : vector<8x48xf32>
    %742 = math.exp %741 : vector<8x48xf32>
    %cst_192 = arith.constant 1.000000e+00 : f32
    %743 = vector.broadcast %cst_192 : f32 to vector<8x48xf32>
    %744 = arith.addf %743, %742 : vector<8x48xf32>
    %745 = arith.divf %743, %744 : vector<8x48xf32>
    %746 = vector.extract_strided_slice %745 {offsets = [0, 0], sizes = [8, 16], strides = [1, 1]} : vector<8x48xf32> to vector<8x16xf32>
    %747 = vector.extract_strided_slice %745 {offsets = [0, 16], sizes = [8, 16], strides = [1, 1]} : vector<8x48xf32> to vector<8x16xf32>
    %748 = vector.extract_strided_slice %745 {offsets = [0, 32], sizes = [8, 16], strides = [1, 1]} : vector<8x48xf32> to vector<8x16xf32>
    %749 = vector.extract_strided_slice %734 {offsets = [0, 48], sizes = [8, 16], strides = [1, 1]} : vector<8x64xf32> to vector<8x16xf32>
    %750 = math.tanh %749 : vector<8x16xf32>
    %751 = arith.mulf %747, %699 : vector<8x16xf32>
    %752 = arith.mulf %746, %750 : vector<8x16xf32>
    %753 = arith.addf %751, %752 : vector<8x16xf32>
    %754 = math.tanh %753 : vector<8x16xf32>
    %755 = arith.mulf %748, %754 : vector<8x16xf32>
    %756 = vector.extract_strided_slice %739 {offsets = [0, 0], sizes = [8, 48], strides = [1, 1]} : vector<8x64xf32> to vector<8x48xf32>
    %757 = arith.negf %756 : vector<8x48xf32>
    %758 = math.exp %757 : vector<8x48xf32>
    %cst_193 = arith.constant 1.000000e+00 : f32
    %759 = vector.broadcast %cst_193 : f32 to vector<8x48xf32>
    %760 = arith.addf %759, %758 : vector<8x48xf32>
    %761 = arith.divf %759, %760 : vector<8x48xf32>
    %762 = vector.extract_strided_slice %761 {offsets = [0, 0], sizes = [8, 16], strides = [1, 1]} : vector<8x48xf32> to vector<8x16xf32>
    %763 = vector.extract_strided_slice %761 {offsets = [0, 16], sizes = [8, 16], strides = [1, 1]} : vector<8x48xf32> to vector<8x16xf32>
    %764 = vector.extract_strided_slice %761 {offsets = [0, 32], sizes = [8, 16], strides = [1, 1]} : vector<8x48xf32> to vector<8x16xf32>
    %765 = vector.extract_strided_slice %739 {offsets = [0, 48], sizes = [8, 16], strides = [1, 1]} : vector<8x64xf32> to vector<8x16xf32>
    %766 = math.tanh %765 : vector<8x16xf32>
    %767 = arith.mulf %763, %715 : vector<8x16xf32>
    %768 = arith.mulf %762, %766 : vector<8x16xf32>
    %769 = arith.addf %767, %768 : vector<8x16xf32>
    %770 = math.tanh %769 : vector<8x16xf32>
    %771 = arith.mulf %764, %770 : vector<8x16xf32>
    %772 = arith.index_cast %c5_i32_185 : i32 to index
    %c0_194 = arith.constant 0 : index
    %c0_195 = arith.constant 0 : index
    %773 = vector.load %arg16[%772, %c0_194, %c0_195] : memref<8x8x32xf32, #tpu.memory_space<vmem>>, vector<1x8x16xf32>
    %774 = vector.shape_cast %773 : vector<1x8x16xf32> to vector<8x16xf32>
    %775 = vector.shape_cast %755 : vector<8x16xf32> to vector<1x8x16xf32>
    tpu.vector_store %arg16[%772, %c0_194, %c0_195], %775 {strides = array<i32>} : memref<8x8x32xf32, #tpu.memory_space<vmem>>, vector<1x8x16xf32>,
    %776 = arith.index_cast %726 : i32 to index
    %c0_196 = arith.constant 0 : index
    %c16_197 = arith.constant 16 : index
    %777 = vector.load %arg16[%776, %c0_196, %c16_197] : memref<8x8x32xf32, #tpu.memory_space<vmem>>, vector<1x8x16xf32>
    %778 = vector.shape_cast %777 : vector<1x8x16xf32> to vector<8x16xf32>
    %779 = vector.shape_cast %771 : vector<8x16xf32> to vector<1x8x16xf32>
    tpu.vector_store %arg16[%776, %c0_196, %c16_197], %779 {strides = array<i32>} : memref<8x8x32xf32, #tpu.memory_space<vmem>>, vector<1x8x16xf32>,
    %c6_i32_198 = arith.constant 6 : i32
    %c7_i32_199 = arith.constant 7 : i32
    %780 = arith.subi %c7_i32_199, %c6_i32_198 : i32
    %781 = tpu.concatenate %755, %771 in 1 : vector<8x16xf32>, vector<8x16xf32> -> vector<8x32xf32>
    %782 = arith.truncf %781 : vector<8x32xf32> to vector<8x32xbf16>
    %cst_200 = arith.constant dense<0.000000e+00> : vector<8x128xf32>
    %783 = tpu.matmul %782, %454, %cst_200 {dimension_numbers = #tpu.dot_dimension_numbers<[1], [0], [0], [1], [0, 0, 1, 1], [], []>} : vector<8x32xbf16>, vector<32x128xbf16>, vector<8x128xf32> -> vector<8x128xf32>
    %784 = arith.index_cast %c6_i32_198 : i32 to index
    %c0_201 = arith.constant 0 : index
    %c0_202 = arith.constant 0 : index
    %785 = vector.load %arg17[%784, %c0_201, %c0_202] : memref<8x8x256xf32, #tpu.memory_space<vmem>>, vector<1x8x64xf32>
    %786 = vector.shape_cast %785 : vector<1x8x64xf32> to vector<8x64xf32>
    %787 = vector.extract_strided_slice %783 {offsets = [0, 0], sizes = [8, 64], strides = [1, 1]} : vector<8x128xf32> to vector<8x64xf32>
    %788 = arith.addf %786, %787 : vector<8x64xf32>
    %789 = arith.index_cast %780 : i32 to index
    %c0_203 = arith.constant 0 : index
    %c64_204 = arith.constant 64 : index
    %790 = vector.load %arg17[%789, %c0_203, %c64_204] : memref<8x8x256xf32, #tpu.memory_space<vmem>>, vector<1x8x64xf32>
    %791 = vector.shape_cast %790 : vector<1x8x64xf32> to vector<8x64xf32>
    %792 = vector.extract_strided_slice %783 {offsets = [0, 64], sizes = [8, 64], strides = [1, 1]} : vector<8x128xf32> to vector<8x64xf32>
    %793 = arith.addf %791, %792 : vector<8x64xf32>
    %794 = vector.extract_strided_slice %788 {offsets = [0, 0], sizes = [8, 48], strides = [1, 1]} : vector<8x64xf32> to vector<8x48xf32>
    %795 = arith.negf %794 : vector<8x48xf32>
    %796 = math.exp %795 : vector<8x48xf32>
    %cst_205 = arith.constant 1.000000e+00 : f32
    %797 = vector.broadcast %cst_205 : f32 to vector<8x48xf32>
    %798 = arith.addf %797, %796 : vector<8x48xf32>
    %799 = arith.divf %797, %798 : vector<8x48xf32>
    %800 = vector.extract_strided_slice %799 {offsets = [0, 0], sizes = [8, 16], strides = [1, 1]} : vector<8x48xf32> to vector<8x16xf32>
    %801 = vector.extract_strided_slice %799 {offsets = [0, 16], sizes = [8, 16], strides = [1, 1]} : vector<8x48xf32> to vector<8x16xf32>
    %802 = vector.extract_strided_slice %799 {offsets = [0, 32], sizes = [8, 16], strides = [1, 1]} : vector<8x48xf32> to vector<8x16xf32>
    %803 = vector.extract_strided_slice %788 {offsets = [0, 48], sizes = [8, 16], strides = [1, 1]} : vector<8x64xf32> to vector<8x16xf32>
    %804 = math.tanh %803 : vector<8x16xf32>
    %805 = arith.mulf %801, %753 : vector<8x16xf32>
    %806 = arith.mulf %800, %804 : vector<8x16xf32>
    %807 = arith.addf %805, %806 : vector<8x16xf32>
    %808 = math.tanh %807 : vector<8x16xf32>
    %809 = arith.mulf %802, %808 : vector<8x16xf32>
    %810 = vector.extract_strided_slice %793 {offsets = [0, 0], sizes = [8, 48], strides = [1, 1]} : vector<8x64xf32> to vector<8x48xf32>
    %811 = arith.negf %810 : vector<8x48xf32>
    %812 = math.exp %811 : vector<8x48xf32>
    %cst_206 = arith.constant 1.000000e+00 : f32
    %813 = vector.broadcast %cst_206 : f32 to vector<8x48xf32>
    %814 = arith.addf %813, %812 : vector<8x48xf32>
    %815 = arith.divf %813, %814 : vector<8x48xf32>
    %816 = vector.extract_strided_slice %815 {offsets = [0, 0], sizes = [8, 16], strides = [1, 1]} : vector<8x48xf32> to vector<8x16xf32>
    %817 = vector.extract_strided_slice %815 {offsets = [0, 16], sizes = [8, 16], strides = [1, 1]} : vector<8x48xf32> to vector<8x16xf32>
    %818 = vector.extract_strided_slice %815 {offsets = [0, 32], sizes = [8, 16], strides = [1, 1]} : vector<8x48xf32> to vector<8x16xf32>
    %819 = vector.extract_strided_slice %793 {offsets = [0, 48], sizes = [8, 16], strides = [1, 1]} : vector<8x64xf32> to vector<8x16xf32>
    %820 = math.tanh %819 : vector<8x16xf32>
    %821 = arith.mulf %817, %769 : vector<8x16xf32>
    %822 = arith.mulf %816, %820 : vector<8x16xf32>
    %823 = arith.addf %821, %822 : vector<8x16xf32>
    %824 = math.tanh %823 : vector<8x16xf32>
    %825 = arith.mulf %818, %824 : vector<8x16xf32>
    %826 = arith.index_cast %c6_i32_198 : i32 to index
    %c0_207 = arith.constant 0 : index
    %c0_208 = arith.constant 0 : index
    %827 = vector.load %arg16[%826, %c0_207, %c0_208] : memref<8x8x32xf32, #tpu.memory_space<vmem>>, vector<1x8x16xf32>
    %828 = vector.shape_cast %827 : vector<1x8x16xf32> to vector<8x16xf32>
    %829 = vector.shape_cast %809 : vector<8x16xf32> to vector<1x8x16xf32>
    tpu.vector_store %arg16[%826, %c0_207, %c0_208], %829 {strides = array<i32>} : memref<8x8x32xf32, #tpu.memory_space<vmem>>, vector<1x8x16xf32>,
    %830 = arith.index_cast %780 : i32 to index
    %c0_209 = arith.constant 0 : index
    %c16_210 = arith.constant 16 : index
    %831 = vector.load %arg16[%830, %c0_209, %c16_210] : memref<8x8x32xf32, #tpu.memory_space<vmem>>, vector<1x8x16xf32>
    %832 = vector.shape_cast %831 : vector<1x8x16xf32> to vector<8x16xf32>
    %833 = vector.shape_cast %825 : vector<8x16xf32> to vector<1x8x16xf32>
    tpu.vector_store %arg16[%830, %c0_209, %c16_210], %833 {strides = array<i32>} : memref<8x8x32xf32, #tpu.memory_space<vmem>>, vector<1x8x16xf32>,
    %c7_i32_211 = arith.constant 7 : i32
    %c7_i32_212 = arith.constant 7 : i32
    %834 = arith.subi %c7_i32_212, %c7_i32_211 : i32
    %835 = tpu.concatenate %809, %825 in 1 : vector<8x16xf32>, vector<8x16xf32> -> vector<8x32xf32>
    %836 = arith.truncf %835 : vector<8x32xf32> to vector<8x32xbf16>
    %cst_213 = arith.constant dense<0.000000e+00> : vector<8x128xf32>
    %837 = tpu.matmul %836, %454, %cst_213 {dimension_numbers = #tpu.dot_dimension_numbers<[1], [0], [0], [1], [0, 0, 1, 1], [], []>} : vector<8x32xbf16>, vector<32x128xbf16>, vector<8x128xf32> -> vector<8x128xf32>
    %838 = arith.index_cast %c7_i32_211 : i32 to index
    %c0_214 = arith.constant 0 : index
    %c0_215 = arith.constant 0 : index
    %839 = vector.load %arg17[%838, %c0_214, %c0_215] : memref<8x8x256xf32, #tpu.memory_space<vmem>>, vector<1x8x64xf32>
    %840 = vector.shape_cast %839 : vector<1x8x64xf32> to vector<8x64xf32>
    %841 = vector.extract_strided_slice %837 {offsets = [0, 0], sizes = [8, 64], strides = [1, 1]} : vector<8x128xf32> to vector<8x64xf32>
    %842 = arith.addf %840, %841 : vector<8x64xf32>
    %843 = arith.index_cast %834 : i32 to index
    %c0_216 = arith.constant 0 : index
    %c64_217 = arith.constant 64 : index
    %844 = vector.load %arg17[%843, %c0_216, %c64_217] : memref<8x8x256xf32, #tpu.memory_space<vmem>>, vector<1x8x64xf32>
    %845 = vector.shape_cast %844 : vector<1x8x64xf32> to vector<8x64xf32>
    %846 = vector.extract_strided_slice %837 {offsets = [0, 64], sizes = [8, 64], strides = [1, 1]} : vector<8x128xf32> to vector<8x64xf32>
    %847 = arith.addf %845, %846 : vector<8x64xf32>
    %848 = vector.extract_strided_slice %842 {offsets = [0, 0], sizes = [8, 48], strides = [1, 1]} : vector<8x64xf32> to vector<8x48xf32>
    %849 = arith.negf %848 : vector<8x48xf32>
    %850 = math.exp %849 : vector<8x48xf32>
    %cst_218 = arith.constant 1.000000e+00 : f32
    %851 = vector.broadcast %cst_218 : f32 to vector<8x48xf32>
    %852 = arith.addf %851, %850 : vector<8x48xf32>
    %853 = arith.divf %851, %852 : vector<8x48xf32>
    %854 = vector.extract_strided_slice %853 {offsets = [0, 0], sizes = [8, 16], strides = [1, 1]} : vector<8x48xf32> to vector<8x16xf32>
    %855 = vector.extract_strided_slice %853 {offsets = [0, 16], sizes = [8, 16], strides = [1, 1]} : vector<8x48xf32> to vector<8x16xf32>
    %856 = vector.extract_strided_slice %853 {offsets = [0, 32], sizes = [8, 16], strides = [1, 1]} : vector<8x48xf32> to vector<8x16xf32>
    %857 = vector.extract_strided_slice %842 {offsets = [0, 48], sizes = [8, 16], strides = [1, 1]} : vector<8x64xf32> to vector<8x16xf32>
    %858 = math.tanh %857 : vector<8x16xf32>
    %859 = arith.mulf %855, %807 : vector<8x16xf32>
    %860 = arith.mulf %854, %858 : vector<8x16xf32>
    %861 = arith.addf %859, %860 : vector<8x16xf32>
    %862 = math.tanh %861 : vector<8x16xf32>
    %863 = arith.mulf %856, %862 : vector<8x16xf32>
    %864 = vector.extract_strided_slice %847 {offsets = [0, 0], sizes = [8, 48], strides = [1, 1]} : vector<8x64xf32> to vector<8x48xf32>
    %865 = arith.negf %864 : vector<8x48xf32>
    %866 = math.exp %865 : vector<8x48xf32>
    %cst_219 = arith.constant 1.000000e+00 : f32
    %867 = vector.broadcast %cst_219 : f32 to vector<8x48xf32>
    %868 = arith.addf %867, %866 : vector<8x48xf32>
    %869 = arith.divf %867, %868 : vector<8x48xf32>
    %870 = vector.extract_strided_slice %869 {offsets = [0, 0], sizes = [8, 16], strides = [1, 1]} : vector<8x48xf32> to vector<8x16xf32>
    %871 = vector.extract_strided_slice %869 {offsets = [0, 16], sizes = [8, 16], strides = [1, 1]} : vector<8x48xf32> to vector<8x16xf32>
    %872 = vector.extract_strided_slice %869 {offsets = [0, 32], sizes = [8, 16], strides = [1, 1]} : vector<8x48xf32> to vector<8x16xf32>
    %873 = vector.extract_strided_slice %847 {offsets = [0, 48], sizes = [8, 16], strides = [1, 1]} : vector<8x64xf32> to vector<8x16xf32>
    %874 = math.tanh %873 : vector<8x16xf32>
    %875 = arith.mulf %871, %823 : vector<8x16xf32>
    %876 = arith.mulf %870, %874 : vector<8x16xf32>
    %877 = arith.addf %875, %876 : vector<8x16xf32>
    %878 = math.tanh %877 : vector<8x16xf32>
    %879 = arith.mulf %872, %878 : vector<8x16xf32>
    %880 = arith.index_cast %c7_i32_211 : i32 to index
    %c0_220 = arith.constant 0 : index
    %c0_221 = arith.constant 0 : index
    %881 = vector.load %arg16[%880, %c0_220, %c0_221] : memref<8x8x32xf32, #tpu.memory_space<vmem>>, vector<1x8x16xf32>
    %882 = vector.shape_cast %881 : vector<1x8x16xf32> to vector<8x16xf32>
    %883 = vector.shape_cast %863 : vector<8x16xf32> to vector<1x8x16xf32>
    tpu.vector_store %arg16[%880, %c0_220, %c0_221], %883 {strides = array<i32>} : memref<8x8x32xf32, #tpu.memory_space<vmem>>, vector<1x8x16xf32>,
    %884 = arith.index_cast %834 : i32 to index
    %c0_222 = arith.constant 0 : index
    %c16_223 = arith.constant 16 : index
    %885 = vector.load %arg16[%884, %c0_222, %c16_223] : memref<8x8x32xf32, #tpu.memory_space<vmem>>, vector<1x8x16xf32>
    %886 = vector.shape_cast %885 : vector<1x8x16xf32> to vector<8x16xf32>
    %887 = vector.shape_cast %879 : vector<8x16xf32> to vector<1x8x16xf32>
    tpu.vector_store %arg16[%884, %c0_222, %c16_223], %887 {strides = array<i32>} : memref<8x8x32xf32, #tpu.memory_space<vmem>>, vector<1x8x16xf32>,
    %c8_i32_224 = arith.constant 8 : i32
    %c0_225 = arith.constant 0 : index
    %888 = memref.load %arg2[%c0_225] : memref<3xf32, #tpu.memory_space<smem>>
    %889 = vector.broadcast %888 : f32 to vector<8x8x32xf32>
    %890 = arith.mulf %889, %444 : vector<8x8x32xf32>
    %c1 = arith.constant 1 : index
    %891 = memref.load %arg2[%c1] : memref<3xf32, #tpu.memory_space<smem>>
    %c0_226 = arith.constant 0 : index
    %c0_227 = arith.constant 0 : index
    %c0_228 = arith.constant 0 : index
    %892 = vector.load %arg16[%c0_226, %c0_227, %c0_228] : memref<8x8x32xf32, #tpu.memory_space<vmem>>, vector<8x8x32xf32>
    %893 = vector.broadcast %891 : f32 to vector<8x8x32xf32>
    %894 = arith.mulf %893, %892 : vector<8x8x32xf32>
    %895 = arith.addf %890, %894 : vector<8x8x32xf32>
    %c2 = arith.constant 2 : index
    %896 = memref.load %arg2[%c2] : memref<3xf32, #tpu.memory_space<smem>>
    %897 = vector.broadcast %896 : f32 to vector<8x8x32xf32>
    %898 = arith.mulf %897, %0 : vector<8x8x32xf32>
    %899 = arith.addf %895, %898 : vector<8x8x32xf32>
    %900 = vector.shape_cast %899 : vector<8x8x32xf32> to vector<64x32xf32>
    %901 = arith.truncf %900 : vector<64x32xf32> to vector<64x32xbf16>
    %c0_229 = arith.constant 0 : index
    %c0_230 = arith.constant 0 : index
    %902 = vector.load %arg9[%c0_229, %c0_230] : memref<32x256xbf16, #tpu.memory_space<vmem>>, vector<32x256xbf16>
    %cst_231 = arith.constant dense<0.000000e+00> : vector<64x256xf32>
    %903 = tpu.matmul %901, %902, %cst_231 {dimension_numbers = #tpu.dot_dimension_numbers<[1], [0], [0], [1], [0, 0, 1, 1], [], []>} : vector<64x32xbf16>, vector<32x256xbf16>, vector<64x256xf32> -> vector<64x256xf32>
    %c0_232 = arith.constant 0 : index
    %c0_233 = arith.constant 0 : index
    %904 = vector.load %arg11[%c0_232, %c0_233] : memref<1x256xf32, #tpu.memory_space<vmem>>, vector<1x256xf32>
    %905 = vector.broadcast %904 : vector<1x256xf32> to vector<64x256xf32>
    %906 = arith.addf %903, %905 : vector<64x256xf32>
    %907 = vector.shape_cast %906 : vector<64x256xf32> to vector<8x8x256xf32>
    %c0_234 = arith.constant 0 : index
    %c0_235 = arith.constant 0 : index
    %c0_236 = arith.constant 0 : index
    %908 = vector.load %arg17[%c0_234, %c0_235, %c0_236] : memref<8x8x256xf32, #tpu.memory_space<vmem>>, vector<8x8x256xf32>
    tpu.vector_store %arg17[%c0_234, %c0_235, %c0_236], %907 {strides = array<i32>} : memref<8x8x256xf32, #tpu.memory_space<vmem>>, vector<8x8x256xf32>,
    %c0_237 = arith.constant 0 : index
    %c0_238 = arith.constant 0 : index
    %909 = vector.load %arg10[%c0_237, %c0_238] : memref<64x256xbf16, #tpu.memory_space<vmem>>, vector<64x256xbf16>
    %cst_239 = arith.constant 0.000000e+00 : f32
    %910 = vector.broadcast %cst_239 : f32 to vector<8x64xf32>
    %c0_i32_240 = arith.constant 0 : i32
    %911 = arith.index_cast %c0_i32_240 : i32 to index
    %c0_241 = arith.constant 0 : index
    %c0_242 = arith.constant 0 : index
    %912 = vector.load %arg17[%911, %c0_241, %c0_242] : memref<8x8x256xf32, #tpu.memory_space<vmem>>, vector<1x8x256xf32>
    %913 = vector.shape_cast %912 : vector<1x8x256xf32> to vector<8x256xf32>
    %914 = arith.truncf %910 : vector<8x64xf32> to vector<8x64xbf16>
    %cst_243 = arith.constant dense<0.000000e+00> : vector<8x256xf32>
    %915 = tpu.matmul %914, %909, %cst_243 {dimension_numbers = #tpu.dot_dimension_numbers<[1], [0], [0], [1], [0, 0, 1, 1], [], []>} : vector<8x64xbf16>, vector<64x256xbf16>, vector<8x256xf32> -> vector<8x256xf32>
    %916 = arith.addf %913, %915 : vector<8x256xf32>
    %917 = vector.extract_strided_slice %916 {offsets = [0, 0], sizes = [8, 192], strides = [1, 1]} : vector<8x256xf32> to vector<8x192xf32>
    %918 = arith.negf %917 : vector<8x192xf32>
    %919 = math.exp %918 : vector<8x192xf32>
    %cst_244 = arith.constant 1.000000e+00 : f32
    %920 = vector.broadcast %cst_244 : f32 to vector<8x192xf32>
    %921 = arith.addf %920, %919 : vector<8x192xf32>
    %922 = arith.divf %920, %921 : vector<8x192xf32>
    %923 = vector.extract_strided_slice %922 {offsets = [0, 0], sizes = [8, 64], strides = [1, 1]} : vector<8x192xf32> to vector<8x64xf32>
    %924 = vector.extract_strided_slice %922 {offsets = [0, 64], sizes = [8, 64], strides = [1, 1]} : vector<8x192xf32> to vector<8x64xf32>
    %925 = vector.extract_strided_slice %922 {offsets = [0, 128], sizes = [8, 64], strides = [1, 1]} : vector<8x192xf32> to vector<8x64xf32>
    %926 = vector.extract_strided_slice %916 {offsets = [0, 192], sizes = [8, 64], strides = [1, 1]} : vector<8x256xf32> to vector<8x64xf32>
    %927 = math.tanh %926 : vector<8x64xf32>
    %928 = arith.mulf %924, %910 : vector<8x64xf32>
    %929 = arith.mulf %923, %927 : vector<8x64xf32>
    %930 = arith.addf %928, %929 : vector<8x64xf32>
    %931 = math.tanh %930 : vector<8x64xf32>
    %932 = arith.mulf %925, %931 : vector<8x64xf32>
    %c1_i32_245 = arith.constant 1 : i32
    %933 = arith.index_cast %c1_i32_245 : i32 to index
    %c0_246 = arith.constant 0 : index
    %c0_247 = arith.constant 0 : index
    %934 = vector.load %arg17[%933, %c0_246, %c0_247] : memref<8x8x256xf32, #tpu.memory_space<vmem>>, vector<1x8x256xf32>
    %935 = vector.shape_cast %934 : vector<1x8x256xf32> to vector<8x256xf32>
    %936 = arith.truncf %932 : vector<8x64xf32> to vector<8x64xbf16>
    %cst_248 = arith.constant dense<0.000000e+00> : vector<8x256xf32>
    %937 = tpu.matmul %936, %909, %cst_248 {dimension_numbers = #tpu.dot_dimension_numbers<[1], [0], [0], [1], [0, 0, 1, 1], [], []>} : vector<8x64xbf16>, vector<64x256xbf16>, vector<8x256xf32> -> vector<8x256xf32>
    %938 = arith.addf %935, %937 : vector<8x256xf32>
    %939 = vector.extract_strided_slice %938 {offsets = [0, 0], sizes = [8, 192], strides = [1, 1]} : vector<8x256xf32> to vector<8x192xf32>
    %940 = arith.negf %939 : vector<8x192xf32>
    %941 = math.exp %940 : vector<8x192xf32>
    %cst_249 = arith.constant 1.000000e+00 : f32
    %942 = vector.broadcast %cst_249 : f32 to vector<8x192xf32>
    %943 = arith.addf %942, %941 : vector<8x192xf32>
    %944 = arith.divf %942, %943 : vector<8x192xf32>
    %945 = vector.extract_strided_slice %944 {offsets = [0, 0], sizes = [8, 64], strides = [1, 1]} : vector<8x192xf32> to vector<8x64xf32>
    %946 = vector.extract_strided_slice %944 {offsets = [0, 64], sizes = [8, 64], strides = [1, 1]} : vector<8x192xf32> to vector<8x64xf32>
    %947 = vector.extract_strided_slice %944 {offsets = [0, 128], sizes = [8, 64], strides = [1, 1]} : vector<8x192xf32> to vector<8x64xf32>
    %948 = vector.extract_strided_slice %938 {offsets = [0, 192], sizes = [8, 64], strides = [1, 1]} : vector<8x256xf32> to vector<8x64xf32>
    %949 = math.tanh %948 : vector<8x64xf32>
    %950 = arith.mulf %946, %930 : vector<8x64xf32>
    %951 = arith.mulf %945, %949 : vector<8x64xf32>
    %952 = arith.addf %950, %951 : vector<8x64xf32>
    %953 = math.tanh %952 : vector<8x64xf32>
    %954 = arith.mulf %947, %953 : vector<8x64xf32>
    %c2_i32_250 = arith.constant 2 : i32
    %955 = arith.index_cast %c2_i32_250 : i32 to index
    %c0_251 = arith.constant 0 : index
    %c0_252 = arith.constant 0 : index
    %956 = vector.load %arg17[%955, %c0_251, %c0_252] : memref<8x8x256xf32, #tpu.memory_space<vmem>>, vector<1x8x256xf32>
    %957 = vector.shape_cast %956 : vector<1x8x256xf32> to vector<8x256xf32>
    %958 = arith.truncf %954 : vector<8x64xf32> to vector<8x64xbf16>
    %cst_253 = arith.constant dense<0.000000e+00> : vector<8x256xf32>
    %959 = tpu.matmul %958, %909, %cst_253 {dimension_numbers = #tpu.dot_dimension_numbers<[1], [0], [0], [1], [0, 0, 1, 1], [], []>} : vector<8x64xbf16>, vector<64x256xbf16>, vector<8x256xf32> -> vector<8x256xf32>
    %960 = arith.addf %957, %959 : vector<8x256xf32>
    %961 = vector.extract_strided_slice %960 {offsets = [0, 0], sizes = [8, 192], strides = [1, 1]} : vector<8x256xf32> to vector<8x192xf32>
    %962 = arith.negf %961 : vector<8x192xf32>
    %963 = math.exp %962 : vector<8x192xf32>
    %cst_254 = arith.constant 1.000000e+00 : f32
    %964 = vector.broadcast %cst_254 : f32 to vector<8x192xf32>
    %965 = arith.addf %964, %963 : vector<8x192xf32>
    %966 = arith.divf %964, %965 : vector<8x192xf32>
    %967 = vector.extract_strided_slice %966 {offsets = [0, 0], sizes = [8, 64], strides = [1, 1]} : vector<8x192xf32> to vector<8x64xf32>
    %968 = vector.extract_strided_slice %966 {offsets = [0, 64], sizes = [8, 64], strides = [1, 1]} : vector<8x192xf32> to vector<8x64xf32>
    %969 = vector.extract_strided_slice %966 {offsets = [0, 128], sizes = [8, 64], strides = [1, 1]} : vector<8x192xf32> to vector<8x64xf32>
    %970 = vector.extract_strided_slice %960 {offsets = [0, 192], sizes = [8, 64], strides = [1, 1]} : vector<8x256xf32> to vector<8x64xf32>
    %971 = math.tanh %970 : vector<8x64xf32>
    %972 = arith.mulf %968, %952 : vector<8x64xf32>
    %973 = arith.mulf %967, %971 : vector<8x64xf32>
    %974 = arith.addf %972, %973 : vector<8x64xf32>
    %975 = math.tanh %974 : vector<8x64xf32>
    %976 = arith.mulf %969, %975 : vector<8x64xf32>
    %c3_i32_255 = arith.constant 3 : i32
    %977 = arith.index_cast %c3_i32_255 : i32 to index
    %c0_256 = arith.constant 0 : index
    %c0_257 = arith.constant 0 : index
    %978 = vector.load %arg17[%977, %c0_256, %c0_257] : memref<8x8x256xf32, #tpu.memory_space<vmem>>, vector<1x8x256xf32>
    %979 = vector.shape_cast %978 : vector<1x8x256xf32> to vector<8x256xf32>
    %980 = arith.truncf %976 : vector<8x64xf32> to vector<8x64xbf16>
    %cst_258 = arith.constant dense<0.000000e+00> : vector<8x256xf32>
    %981 = tpu.matmul %980, %909, %cst_258 {dimension_numbers = #tpu.dot_dimension_numbers<[1], [0], [0], [1], [0, 0, 1, 1], [], []>} : vector<8x64xbf16>, vector<64x256xbf16>, vector<8x256xf32> -> vector<8x256xf32>
    %982 = arith.addf %979, %981 : vector<8x256xf32>
    %983 = vector.extract_strided_slice %982 {offsets = [0, 0], sizes = [8, 192], strides = [1, 1]} : vector<8x256xf32> to vector<8x192xf32>
    %984 = arith.negf %983 : vector<8x192xf32>
    %985 = math.exp %984 : vector<8x192xf32>
    %cst_259 = arith.constant 1.000000e+00 : f32
    %986 = vector.broadcast %cst_259 : f32 to vector<8x192xf32>
    %987 = arith.addf %986, %985 : vector<8x192xf32>
    %988 = arith.divf %986, %987 : vector<8x192xf32>
    %989 = vector.extract_strided_slice %988 {offsets = [0, 0], sizes = [8, 64], strides = [1, 1]} : vector<8x192xf32> to vector<8x64xf32>
    %990 = vector.extract_strided_slice %988 {offsets = [0, 64], sizes = [8, 64], strides = [1, 1]} : vector<8x192xf32> to vector<8x64xf32>
    %991 = vector.extract_strided_slice %988 {offsets = [0, 128], sizes = [8, 64], strides = [1, 1]} : vector<8x192xf32> to vector<8x64xf32>
    %992 = vector.extract_strided_slice %982 {offsets = [0, 192], sizes = [8, 64], strides = [1, 1]} : vector<8x256xf32> to vector<8x64xf32>
    %993 = math.tanh %992 : vector<8x64xf32>
    %994 = arith.mulf %990, %974 : vector<8x64xf32>
    %995 = arith.mulf %989, %993 : vector<8x64xf32>
    %996 = arith.addf %994, %995 : vector<8x64xf32>
    %997 = math.tanh %996 : vector<8x64xf32>
    %998 = arith.mulf %991, %997 : vector<8x64xf32>
    %c4_i32_260 = arith.constant 4 : i32
    %999 = arith.index_cast %c4_i32_260 : i32 to index
    %c0_261 = arith.constant 0 : index
    %c0_262 = arith.constant 0 : index
    %1000 = vector.load %arg17[%999, %c0_261, %c0_262] : memref<8x8x256xf32, #tpu.memory_space<vmem>>, vector<1x8x256xf32>
    %1001 = vector.shape_cast %1000 : vector<1x8x256xf32> to vector<8x256xf32>
    %1002 = arith.truncf %998 : vector<8x64xf32> to vector<8x64xbf16>
    %cst_263 = arith.constant dense<0.000000e+00> : vector<8x256xf32>
    %1003 = tpu.matmul %1002, %909, %cst_263 {dimension_numbers = #tpu.dot_dimension_numbers<[1], [0], [0], [1], [0, 0, 1, 1], [], []>} : vector<8x64xbf16>, vector<64x256xbf16>, vector<8x256xf32> -> vector<8x256xf32>
    %1004 = arith.addf %1001, %1003 : vector<8x256xf32>
    %1005 = vector.extract_strided_slice %1004 {offsets = [0, 0], sizes = [8, 192], strides = [1, 1]} : vector<8x256xf32> to vector<8x192xf32>
    %1006 = arith.negf %1005 : vector<8x192xf32>
    %1007 = math.exp %1006 : vector<8x192xf32>
    %cst_264 = arith.constant 1.000000e+00 : f32
    %1008 = vector.broadcast %cst_264 : f32 to vector<8x192xf32>
    %1009 = arith.addf %1008, %1007 : vector<8x192xf32>
    %1010 = arith.divf %1008, %1009 : vector<8x192xf32>
    %1011 = vector.extract_strided_slice %1010 {offsets = [0, 0], sizes = [8, 64], strides = [1, 1]} : vector<8x192xf32> to vector<8x64xf32>
    %1012 = vector.extract_strided_slice %1010 {offsets = [0, 64], sizes = [8, 64], strides = [1, 1]} : vector<8x192xf32> to vector<8x64xf32>
    %1013 = vector.extract_strided_slice %1010 {offsets = [0, 128], sizes = [8, 64], strides = [1, 1]} : vector<8x192xf32> to vector<8x64xf32>
    %1014 = vector.extract_strided_slice %1004 {offsets = [0, 192], sizes = [8, 64], strides = [1, 1]} : vector<8x256xf32> to vector<8x64xf32>
    %1015 = math.tanh %1014 : vector<8x64xf32>
    %1016 = arith.mulf %1012, %996 : vector<8x64xf32>
    %1017 = arith.mulf %1011, %1015 : vector<8x64xf32>
    %1018 = arith.addf %1016, %1017 : vector<8x64xf32>
    %1019 = math.tanh %1018 : vector<8x64xf32>
    %1020 = arith.mulf %1013, %1019 : vector<8x64xf32>
    %c5_i32_265 = arith.constant 5 : i32
    %1021 = arith.index_cast %c5_i32_265 : i32 to index
    %c0_266 = arith.constant 0 : index
    %c0_267 = arith.constant 0 : index
    %1022 = vector.load %arg17[%1021, %c0_266, %c0_267] : memref<8x8x256xf32, #tpu.memory_space<vmem>>, vector<1x8x256xf32>
    %1023 = vector.shape_cast %1022 : vector<1x8x256xf32> to vector<8x256xf32>
    %1024 = arith.truncf %1020 : vector<8x64xf32> to vector<8x64xbf16>
    %cst_268 = arith.constant dense<0.000000e+00> : vector<8x256xf32>
    %1025 = tpu.matmul %1024, %909, %cst_268 {dimension_numbers = #tpu.dot_dimension_numbers<[1], [0], [0], [1], [0, 0, 1, 1], [], []>} : vector<8x64xbf16>, vector<64x256xbf16>, vector<8x256xf32> -> vector<8x256xf32>
    %1026 = arith.addf %1023, %1025 : vector<8x256xf32>
    %1027 = vector.extract_strided_slice %1026 {offsets = [0, 0], sizes = [8, 192], strides = [1, 1]} : vector<8x256xf32> to vector<8x192xf32>
    %1028 = arith.negf %1027 : vector<8x192xf32>
    %1029 = math.exp %1028 : vector<8x192xf32>
    %cst_269 = arith.constant 1.000000e+00 : f32
    %1030 = vector.broadcast %cst_269 : f32 to vector<8x192xf32>
    %1031 = arith.addf %1030, %1029 : vector<8x192xf32>
    %1032 = arith.divf %1030, %1031 : vector<8x192xf32>
    %1033 = vector.extract_strided_slice %1032 {offsets = [0, 0], sizes = [8, 64], strides = [1, 1]} : vector<8x192xf32> to vector<8x64xf32>
    %1034 = vector.extract_strided_slice %1032 {offsets = [0, 64], sizes = [8, 64], strides = [1, 1]} : vector<8x192xf32> to vector<8x64xf32>
    %1035 = vector.extract_strided_slice %1032 {offsets = [0, 128], sizes = [8, 64], strides = [1, 1]} : vector<8x192xf32> to vector<8x64xf32>
    %1036 = vector.extract_strided_slice %1026 {offsets = [0, 192], sizes = [8, 64], strides = [1, 1]} : vector<8x256xf32> to vector<8x64xf32>
    %1037 = math.tanh %1036 : vector<8x64xf32>
    %1038 = arith.mulf %1034, %1018 : vector<8x64xf32>
    %1039 = arith.mulf %1033, %1037 : vector<8x64xf32>
    %1040 = arith.addf %1038, %1039 : vector<8x64xf32>
    %1041 = math.tanh %1040 : vector<8x64xf32>
    %1042 = arith.mulf %1035, %1041 : vector<8x64xf32>
    %c6_i32_270 = arith.constant 6 : i32
    %1043 = arith.index_cast %c6_i32_270 : i32 to index
    %c0_271 = arith.constant 0 : index
    %c0_272 = arith.constant 0 : index
    %1044 = vector.load %arg17[%1043, %c0_271, %c0_272] : memref<8x8x256xf32, #tpu.memory_space<vmem>>, vector<1x8x256xf32>
    %1045 = vector.shape_cast %1044 : vector<1x8x256xf32> to vector<8x256xf32>
    %1046 = arith.truncf %1042 : vector<8x64xf32> to vector<8x64xbf16>
    %cst_273 = arith.constant dense<0.000000e+00> : vector<8x256xf32>
    %1047 = tpu.matmul %1046, %909, %cst_273 {dimension_numbers = #tpu.dot_dimension_numbers<[1], [0], [0], [1], [0, 0, 1, 1], [], []>} : vector<8x64xbf16>, vector<64x256xbf16>, vector<8x256xf32> -> vector<8x256xf32>
    %1048 = arith.addf %1045, %1047 : vector<8x256xf32>
    %1049 = vector.extract_strided_slice %1048 {offsets = [0, 0], sizes = [8, 192], strides = [1, 1]} : vector<8x256xf32> to vector<8x192xf32>
    %1050 = arith.negf %1049 : vector<8x192xf32>
    %1051 = math.exp %1050 : vector<8x192xf32>
    %cst_274 = arith.constant 1.000000e+00 : f32
    %1052 = vector.broadcast %cst_274 : f32 to vector<8x192xf32>
    %1053 = arith.addf %1052, %1051 : vector<8x192xf32>
    %1054 = arith.divf %1052, %1053 : vector<8x192xf32>
    %1055 = vector.extract_strided_slice %1054 {offsets = [0, 0], sizes = [8, 64], strides = [1, 1]} : vector<8x192xf32> to vector<8x64xf32>
    %1056 = vector.extract_strided_slice %1054 {offsets = [0, 64], sizes = [8, 64], strides = [1, 1]} : vector<8x192xf32> to vector<8x64xf32>
    %1057 = vector.extract_strided_slice %1054 {offsets = [0, 128], sizes = [8, 64], strides = [1, 1]} : vector<8x192xf32> to vector<8x64xf32>
    %1058 = vector.extract_strided_slice %1048 {offsets = [0, 192], sizes = [8, 64], strides = [1, 1]} : vector<8x256xf32> to vector<8x64xf32>
    %1059 = math.tanh %1058 : vector<8x64xf32>
    %1060 = arith.mulf %1056, %1040 : vector<8x64xf32>
    %1061 = arith.mulf %1055, %1059 : vector<8x64xf32>
    %1062 = arith.addf %1060, %1061 : vector<8x64xf32>
    %1063 = math.tanh %1062 : vector<8x64xf32>
    %1064 = arith.mulf %1057, %1063 : vector<8x64xf32>
    %c7_i32_275 = arith.constant 7 : i32
    %1065 = arith.index_cast %c7_i32_275 : i32 to index
    %c0_276 = arith.constant 0 : index
    %c0_277 = arith.constant 0 : index
    %1066 = vector.load %arg17[%1065, %c0_276, %c0_277] : memref<8x8x256xf32, #tpu.memory_space<vmem>>, vector<1x8x256xf32>
    %1067 = vector.shape_cast %1066 : vector<1x8x256xf32> to vector<8x256xf32>
    %1068 = arith.truncf %1064 : vector<8x64xf32> to vector<8x64xbf16>
    %cst_278 = arith.constant dense<0.000000e+00> : vector<8x256xf32>
    %1069 = tpu.matmul %1068, %909, %cst_278 {dimension_numbers = #tpu.dot_dimension_numbers<[1], [0], [0], [1], [0, 0, 1, 1], [], []>} : vector<8x64xbf16>, vector<64x256xbf16>, vector<8x256xf32> -> vector<8x256xf32>
    %1070 = arith.addf %1067, %1069 : vector<8x256xf32>
    %1071 = vector.extract_strided_slice %1070 {offsets = [0, 0], sizes = [8, 192], strides = [1, 1]} : vector<8x256xf32> to vector<8x192xf32>
    %1072 = arith.negf %1071 : vector<8x192xf32>
    %1073 = math.exp %1072 : vector<8x192xf32>
    %cst_279 = arith.constant 1.000000e+00 : f32
    %1074 = vector.broadcast %cst_279 : f32 to vector<8x192xf32>
    %1075 = arith.addf %1074, %1073 : vector<8x192xf32>
    %1076 = arith.divf %1074, %1075 : vector<8x192xf32>
    %1077 = vector.extract_strided_slice %1076 {offsets = [0, 0], sizes = [8, 64], strides = [1, 1]} : vector<8x192xf32> to vector<8x64xf32>
    %1078 = vector.extract_strided_slice %1076 {offsets = [0, 64], sizes = [8, 64], strides = [1, 1]} : vector<8x192xf32> to vector<8x64xf32>
    %1079 = vector.extract_strided_slice %1076 {offsets = [0, 128], sizes = [8, 64], strides = [1, 1]} : vector<8x192xf32> to vector<8x64xf32>
    %1080 = vector.extract_strided_slice %1070 {offsets = [0, 192], sizes = [8, 64], strides = [1, 1]} : vector<8x256xf32> to vector<8x64xf32>
    %1081 = math.tanh %1080 : vector<8x64xf32>
    %1082 = arith.mulf %1078, %1062 : vector<8x64xf32>
    %1083 = arith.mulf %1077, %1081 : vector<8x64xf32>
    %1084 = arith.addf %1082, %1083 : vector<8x64xf32>
    %1085 = math.tanh %1084 : vector<8x64xf32>
    %1086 = arith.mulf %1079, %1085 : vector<8x64xf32>
    %c8_i32_280 = arith.constant 8 : i32
    %1087 = arith.truncf %1086 : vector<8x64xf32> to vector<8x64xbf16>
    %c0_281 = arith.constant 0 : index
    %c0_282 = arith.constant 0 : index
    %1088 = vector.load %arg12[%c0_281, %c0_282] : memref<64x128xbf16, #tpu.memory_space<vmem>>, vector<64x128xbf16>
    %cst_283 = arith.constant dense<0.000000e+00> : vector<8x128xf32>
    %1089 = tpu.matmul %1087, %1088, %cst_283 {dimension_numbers = #tpu.dot_dimension_numbers<[1], [0], [0], [1], [0, 0, 1, 1], [], []>} : vector<8x64xbf16>, vector<64x128xbf16>, vector<8x128xf32> -> vector<8x128xf32>
    %c0_284 = arith.constant 0 : index
    %c0_285 = arith.constant 0 : index
    %1090 = vector.load %arg13[%c0_284, %c0_285] : memref<1x128xf32, #tpu.memory_space<vmem>>, vector<1x128xf32>
    %1091 = vector.broadcast %1090 : vector<1x128xf32> to vector<8x128xf32>
    %1092 = arith.addf %1089, %1091 : vector<8x128xf32>
    %c0_286 = arith.constant 0 : index
    %c0_287 = arith.constant 0 : index
    %1093 = vector.load %arg14[%c0_286, %c0_287] : memref<8x128xf32, #tpu.memory_space<vmem>>, vector<8x128xf32>
    tpu.vector_store %arg14[%c0_286, %c0_287], %1092 {strides = array<i32>} : memref<8x128xf32, #tpu.memory_space<vmem>>, vector<8x128xf32>,
    return
  }
  func.func @transform_0(%arg0: i32) -> (i32, i32, i32) {
    %c0_i32 = arith.constant 0 : i32
    %c0_i32_0 = arith.constant 0 : i32
    %c0_i32_1 = arith.constant 0 : i32
    return %c0_i32, %arg0, %c0_i32_0 : i32, i32, i32
  }
  func.func @transform_1(%arg0: i32) -> i32 {
    %c0_i32 = arith.constant 0 : i32
    %c0_i32_0 = arith.constant 0 : i32
    return %c0_i32 : i32
  }
  func.func @transform_2(%arg0: i32) -> (i32, i32) {
    %c0_i32 = arith.constant 0 : i32
    %c0_i32_0 = arith.constant 0 : i32
    %c0_i32_1 = arith.constant 0 : i32
    return %c0_i32, %c0_i32_0 : i32, i32
  }
  func.func @transform_3(%arg0: i32) -> (i32, i32) {
    %c0_i32 = arith.constant 0 : i32
    %c0_i32_0 = arith.constant 0 : i32
    %c0_i32_1 = arith.constant 0 : i32
    return %c0_i32, %c0_i32_0 : i32, i32
  }
  func.func @transform_4(%arg0: i32) -> (i32, i32) {
    %c0_i32 = arith.constant 0 : i32
    %c0_i32_0 = arith.constant 0 : i32
    %c0_i32_1 = arith.constant 0 : i32
    return %c0_i32, %c0_i32_0 : i32, i32
  }
  func.func @transform_5(%arg0: i32) -> (i32, i32) {
    %c0_i32 = arith.constant 0 : i32
    %c0_i32_0 = arith.constant 0 : i32
    %c0_i32_1 = arith.constant 0 : i32
    return %c0_i32, %c0_i32_0 : i32, i32
  }
  func.func @transform_6(%arg0: i32) -> (i32, i32) {
    %c0_i32 = arith.constant 0 : i32
    %c0_i32_0 = arith.constant 0 : i32
    %c0_i32_1 = arith.constant 0 : i32
    return %c0_i32, %c0_i32_0 : i32, i32
  }
  func.func @transform_7(%arg0: i32) -> (i32, i32) {
    %c0_i32 = arith.constant 0 : i32
    %c0_i32_0 = arith.constant 0 : i32
    %c0_i32_1 = arith.constant 0 : i32
    return %c0_i32, %c0_i32_0 : i32, i32
  }
  func.func @transform_8(%arg0: i32) -> (i32, i32) {
    %c0_i32 = arith.constant 0 : i32
    %c0_i32_0 = arith.constant 0 : i32
    %c0_i32_1 = arith.constant 0 : i32
    return %c0_i32, %c0_i32_0 : i32, i32
  }
  func.func @transform_9(%arg0: i32) -> (i32, i32) {
    %c0_i32 = arith.constant 0 : i32
    %c0_i32_0 = arith.constant 0 : i32
    %c0_i32_1 = arith.constant 0 : i32
    return %c0_i32, %c0_i32_0 : i32, i32
  }
  func.func @transform_10(%arg0: i32) -> (i32, i32) {
    %c0_i32 = arith.constant 0 : i32
    %c0_i32_0 = arith.constant 0 : i32
    %c0_i32_1 = arith.constant 0 : i32
    return %c0_i32, %c0_i32_0 : i32, i32
  }
  func.func @transform_11(%arg0: i32) -> (i32, i32) {
    %c0_i32 = arith.constant 0 : i32
    %c0_i32_0 = arith.constant 0 : i32
    %c0_i32_1 = arith.constant 0 : i32
    return %c0_i32, %c0_i32_0 : i32, i32
  }
  func.func @transform_12(%arg0: i32) -> (i32, i32) {
    %c0_i32 = arith.constant 0 : i32
    %c0_i32_0 = arith.constant 0 : i32
    %c0_i32_1 = arith.constant 0 : i32
    return %c0_i32, %c0_i32_0 : i32, i32
  }
  func.func @transform_13(%arg0: i32) -> (i32, i32) {
    %c0_i32 = arith.constant 0 : i32
    %c0_i32_0 = arith.constant 0 : i32
    return %arg0, %c0_i32 : i32, i32
  }
}

</mosaic_0001>

<llo_original>
// kernel: elmo_classifier_forward.1
$region0: #{elmo_classifier_forward.1}
  #allocation0 [shape = 'u32[]', space=smem, size = 0x4, offset = 0x4, fixed_abs, tag = 'smem constant byte address 0x4 - core index']
  #allocation1 [shape = 'u32[144,128]{1,0:T(1,128)}', space=vmem, size = 0x12000, scoped, tag = 'internal scratch']
  #allocation2 [shape = 'f32[8,8,32]{2,1,0:T(8,128)}', space=vmem, size = 0x8000, scoped, tag = 'scratch operand']
  #allocation3 [shape = 'f32[8,8,32]{2,1,0:T(8,128)}', space=vmem, size = 0x8000, scoped, tag = 'scratch operand']
  #allocation4 [shape = 'f32[8,8,256]{2,1,0:T(8,128)}', space=vmem, size = 0x10000, scoped, tag = 'scratch operand']
  %s0 = inlined_call_operand.vmem [shape: f32[8,8,32], index: 0, kind: input, shape index: {}]
  %s1 = inlined_call_operand.vmem [shape: f32[3], index: 1, kind: input, shape index: {}]
  %s2 = inlined_call_operand.vmem [shape: bf16[32,128], index: 2, kind: input, shape index: {}]
  %s3 = inlined_call_operand.vmem [shape: bf16[32,128], index: 3, kind: input, shape index: {}]
  %s4 = inlined_call_operand.vmem [shape: f32[1,128], index: 4, kind: input, shape index: {}]
  %s5 = inlined_call_operand.vmem [shape: bf16[32,128], index: 5, kind: input, shape index: {}]
  %s6 = inlined_call_operand.vmem [shape: bf16[32,128], index: 6, kind: input, shape index: {}]
  %s7 = inlined_call_operand.vmem [shape: f32[1,128], index: 7, kind: input, shape index: {}]
  %s8 = inlined_call_operand.vmem [shape: bf16[32,256], index: 8, kind: input, shape index: {}]
  %s9 = inlined_call_operand.vmem [shape: bf16[64,256], index: 9, kind: input, shape index: {}]
  %s10 = inlined_call_operand.vmem [shape: f32[1,256], index: 10, kind: input, shape index: {}]
  %s11 = inlined_call_operand.vmem [shape: bf16[64,128], index: 11, kind: input, shape index: {}]
  %s12 = inlined_call_operand.vmem [shape: f32[1,128], index: 12, kind: input, shape index: {}]
  %s13 = inlined_call_operand.vmem [shape: f32[8,128], index: 13, kind: output, shape index: {}]
  %s14 = sld [smem:[#allocation0]]
  $region66: #{elmo_classifier_forward.1} parent=0
    _
  %s16 = ssub.s32 1, %s14
  %s17 = scalar_select 0, %s16, %s14
  $region1: #{elmo_classifier_forward.1} parent=0
    #allocation5 [shape = 'u8[512]{0}', space=smem, size = 0x200, scoped, tag = 'input window, operand 1, single buffered']
    #allocation6 [shape = 's32[1]{0}', space=sflag, size = 0x4, scoped, tag = 'scoped memory for elmo_classifier_forward.1']
    %18 = vsyncpa [#allocation6], 0
    // Predicated region
    $region2: #{elmo_classifier_forward.1} parent=1 // pred_check
      _
    $region3: #{elmo_classifier_forward.1} parent=1 // pred_check_branch
      %20 = sbr.rel (0) target = $region5
    $region4: #{elmo_classifier_forward.1} parent=1 // pred_region
      _
    $region5: #{elmo_classifier_forward.1} parent=1 // pred_fallthru
      _
    // Predicated region
    $region6: #{elmo_classifier_forward.1} parent=1 // pred_check
      _
    $region7: #{elmo_classifier_forward.1} parent=1 // pred_check_branch
      %22 = sbr.rel (0) target = $region9
    $region8: #{elmo_classifier_forward.1} parent=1 // pred_region
      %s24 = ssub.s32 16, 16
      %25 = vsyncadd [#allocation6], %s24
      %s27 = sshll.u32 %s1, 4
      %s28 = int_to_ptr.vmem [resolvable:$true] %s27
      %30 = dma.vmem_to_smem %s28, 16, [#allocation5], [#allocation6]
    $region9: #{elmo_classifier_forward.1} parent=1 // pred_fallthru
      _
    // Predicated region
    $region10: #{elmo_classifier_forward.1} parent=1 // pred_check
      _
    $region11: #{elmo_classifier_forward.1} parent=1 // pred_check_branch
      %32 = sbr.rel (0) target = $region13
    $region12: #{elmo_classifier_forward.1} parent=1 // pred_region
      _
    $region13: #{elmo_classifier_forward.1} parent=1 // pred_fallthru
      _
    // Predicated region
    $region14: #{elmo_classifier_forward.1} parent=1 // pred_check
      _
    $region15: #{elmo_classifier_forward.1} parent=1 // pred_check_branch
      %34 = sbr.rel (0) target = $region17
    $region16: #{elmo_classifier_forward.1} parent=1 // pred_region
      _
    $region17: #{elmo_classifier_forward.1} parent=1 // pred_fallthru
      _
    // Predicated region
    $region18: #{elmo_classifier_forward.1} parent=1 // pred_check
      _
    $region19: #{elmo_classifier_forward.1} parent=1 // pred_check_branch
      %36 = sbr.rel (0) target = $region21
    $region20: #{elmo_classifier_forward.1} parent=1 // pred_region
      _
    $region21: #{elmo_classifier_forward.1} parent=1 // pred_fallthru
      _
    // Predicated region
    $region22: #{elmo_classifier_forward.1} parent=1 // pred_check
      _
    $region23: #{elmo_classifier_forward.1} parent=1 // pred_check_branch
      %38 = sbr.rel (0) target = $region25
    $region24: #{elmo_classifier_forward.1} parent=1 // pred_region
      _
    $region25: #{elmo_classifier_forward.1} parent=1 // pred_fallthru
      _
    // Predicated region
    $region26: #{elmo_classifier_forward.1} parent=1 // pred_check
      _
    $region27: #{elmo_classifier_forward.1} parent=1 // pred_check_branch
      %40 = sbr.rel (0) target = $region29
    $region28: #{elmo_classifier_forward.1} parent=1 // pred_region
      _
    $region29: #{elmo_classifier_forward.1} parent=1 // pred_fallthru
      _
    // Predicated region
    $region30: #{elmo_classifier_forward.1} parent=1 // pred_check
      _
    $region31: #{elmo_classifier_forward.1} parent=1 // pred_check_branch
      %42 = sbr.rel (0) target = $region33
    $region32: #{elmo_classifier_forward.1} parent=1 // pred_region
      _
    $region33: #{elmo_classifier_forward.1} parent=1 // pred_fallthru
      _
    // Predicated region
    $region34: #{elmo_classifier_forward.1} parent=1 // pred_check
      _
    $region35: #{elmo_classifier_forward.1} parent=1 // pred_check_branch
      %44 = sbr.rel (0) target = $region37
    $region36: #{elmo_classifier_forward.1} parent=1 // pred_region
      _
    $region37: #{elmo_classifier_forward.1} parent=1 // pred_fallthru
      _
    // Predicated region
    $region38: #{elmo_classifier_forward.1} parent=1 // pred_check
      _
    $region39: #{elmo_classifier_forward.1} parent=1 // pred_check_branch
      %46 = sbr.rel (0) target = $region41
    $region40: #{elmo_classifier_forward.1} parent=1 // pred_region
      _
    $region41: #{elmo_classifier_forward.1} parent=1 // pred_fallthru
      _
    // Predicated region
    $region42: #{elmo_classifier_forward.1} parent=1 // pred_check
      _
    $region43: #{elmo_classifier_forward.1} parent=1 // pred_check_branch
      %48 = sbr.rel (0) target = $region45
    $region44: #{elmo_classifier_forward.1} parent=1 // pred_region
      _
    $region45: #{elmo_classifier_forward.1} parent=1 // pred_fallthru
      _
    // Predicated region
    $region46: #{elmo_classifier_forward.1} parent=1 // pred_check
      _
    $region47: #{elmo_classifier_forward.1} parent=1 // pred_check_branch
      %50 = sbr.rel (0) target = $region49
    $region48: #{elmo_classifier_forward.1} parent=1 // pred_region
      _
    $region49: #{elmo_classifier_forward.1} parent=1 // pred_fallthru
      _
    // Predicated region
    $region50: #{elmo_classifier_forward.1} parent=1 // pred_check
      _
    $region51: #{elmo_classifier_forward.1} parent=1 // pred_check_branch
      %52 = sbr.rel (0) target = $region53
    $region52: #{elmo_classifier_forward.1} parent=1 // pred_region
      _
    $region53: #{elmo_classifier_forward.1} parent=1 // pred_fallthru
      _
    // Predicated region
    $region54: #{elmo_classifier_forward.1} parent=1 // pred_check
      _
    $region55: #{elmo_classifier_forward.1} parent=1 // pred_check_branch
      %54 = sbr.rel (0) target = $region57
    $region56: #{elmo_classifier_forward.1} parent=1 // pred_region
      %55 = dma.done [#allocation6], 16
    $region57: #{elmo_classifier_forward.1} parent=1 // pred_fallthru
      _
    %56 = sfence
    %v58 = vld [vmem:[%s0] sm:$0xff]
    %v59 = vld [vmem:[%s0 + $0x8] sm:$0xff]
    %v60 = vld [vmem:[%s0 + $0x10] sm:$0xff]
    %v61 = vld [vmem:[%s0 + $0x18] sm:$0xff]
    %v62 = vld [vmem:[%s0 + $0x20] sm:$0xff]
    %v63 = vld [vmem:[%s0 + $0x28] sm:$0xff]
    %v64 = vld [vmem:[%s0 + $0x30] sm:$0xff]
    %v65 = vld [vmem:[%s0 + $0x38] sm:$0xff]
    %v66 = vpack.c.bf16 %v59, %v58
    %v67 = vpack.c.bf16 %v61, %v60
    %v68 = vpack.c.bf16 %v63, %v62
    %v69 = vpack.c.bf16 %v65, %v64
    %v70 = vld [vmem:[%s2] sm:$0xf]
    %v71 = vld [vmem:[%s2 + $0x4] sm:$0xf]
    %v72 = vld [vmem:[%s2 + $0x8] sm:$0xf]
    %v73 = vld [vmem:[%s2 + $0xc] sm:$0xf]
    %v74 = vld [vmem:[%s4] sm:$0x1]
    %v76 = vlaneseq
    %v77 = vshrl.u32 %v76, 7
    %v78 = vsub.s32 0, %v77
    %v79 = vrot.slane %v74, %v78
    %v85 = vunpack.c.l.b16 %v70
    %v86 = vunpack.c.l.b16 %v71
    %v87 = vunpack.c.l.b16 %v72
    %v88 = vunpack.c.l.b16 %v73
    %v89 = vpack.c.b16 %v86, %v85
    %v90 = vpack.c.b16 %v88, %v87
    %vm93 = vcmask 261120
    %v95 = vsel %vm93, %v66, 0
    %v98 = vsel %vm93, %v67, 0
    %v101 = vsel %vm93, %v68, 0
    %v104 = vsel %vm93, %v69, 0
    %106 = vmatprep.subr.bf16.mxu0 0
    %107 = vmatpush1.bf16.msra.mxu0 %v89
    %108 = vmatprep.subr.bf16.mxu0 0
    %109 = vmatpush1.bf16.msra.mxu0 %v90
    %110 = vmatprep.subr.bf16.mxu0 0
    %111 = vmatpush1.bf16.msra.mxu0 0
    %112 = vmatprep.subr.bf16.mxu0 0
    %113 = vmatpush1.bf16.msra.mxu0 0
    %114 = vmatprep.subr.bf16.mxu0 0
    %115 = vmatpush1.bf16.msra.mxu0 0
    %116 = vmatprep.subr.bf16.mxu0 0
    %117 = vmatpush1.bf16.msra.mxu0 0
    %118 = vmatprep.subr.bf16.mxu0 0
    %119 = vmatpush1.bf16.msra.mxu0 0
    %120 = vmatprep.subr.bf16.mxu0 0
    %121 = vmatpush1.bf16.msra.mxu0 0
    %122 = vmatprep.subr.bf16.mxu0 0
    %123 = vmatpush1.bf16.msra.mxu0 0
    %124 = vmatprep.subr.bf16.mxu0 0
    %125 = vmatpush1.bf16.msra.mxu0 0
    %126 = vmatprep.subr.bf16.mxu0 0
    %127 = vmatpush1.bf16.msra.mxu0 0
    %128 = vmatprep.subr.bf16.mxu0 0
    %129 = vmatpush1.bf16.msra.mxu0 0
    %130 = vmatprep.subr.bf16.mxu0 0
    %131 = vmatpush1.bf16.msra.mxu0 0
    %132 = vmatprep.subr.bf16.mxu0 0
    %133 = vmatpush1.bf16.msra.mxu0 0
    %134 = vmatprep.subr.bf16.mxu0 0
    %135 = vmatpush1.bf16.msra.mxu0 0
    %136 = vmatprep.subr.bf16.mxu0 0
    %137 = vmatpush1.bf16.msra.mxu0 0
    %138 = vmatprep.mubr.bf16.mxu0 0
    %139 = vmatmul.mubr.bf16.gmra.mrb[0].mxu0 %v95
    %v140 = vpop.f32.mrb[0].mxu0
    %v141 = vadd.f32 %v79, %v140
    %v142 = vpop.f32.mrb[0].mxu0
    %v143 = vpop.f32.mrb[0].mxu0
    %v144 = vadd.f32 %v79, %v143
    %v145 = vpop.f32.mrb[0].mxu0
    %146 = vmatprep.mubr.bf16.mxu0 0
    %147 = vmatmul.mubr.bf16.gmra.mrb[0].mxu0 %v98
    %v148 = vpop.f32.mrb[0].mxu0
    %v149 = vadd.f32 %v79, %v148
    %v150 = vpop.f32.mrb[0].mxu0
    %v151 = vpop.f32.mrb[0].mxu0
    %v152 = vadd.f32 %v79, %v151
    %v153 = vpop.f32.mrb[0].mxu0
    %154 = vmatprep.mubr.bf16.mxu0 0
    %155 = vmatmul.mubr.bf16.gmra.mrb[0].mxu0 %v101
    %v156 = vpop.f32.mrb[0].mxu0
    %v157 = vadd.f32 %v79, %v156
    %v158 = vpop.f32.mrb[0].mxu0
    %v159 = vpop.f32.mrb[0].mxu0
    %v160 = vadd.f32 %v79, %v159
    %v161 = vpop.f32.mrb[0].mxu0
    %162 = vmatprep.mubr.bf16.mxu0 0
    %163 = vmatmul.mubr.bf16.gmra.mrb[0].mxu0 %v104
    %v164 = vpop.f32.mrb[0].mxu0
    %v165 = vadd.f32 %v79, %v164
    %v166 = vpop.f32.mrb[0].mxu0
    %v167 = vpop.f32.mrb[0].mxu0
    %v168 = vadd.f32 %v79, %v167
    %v169 = vpop.f32.mrb[0].mxu0
    %170 = vdwg.mxu0
    %171 = vst [vmem:[#allocation4] sm:$0xff] %v141
    %172 = vst [vmem:[#allocation4 + $0x10] sm:$0xff] %v144
    %173 = vst [vmem:[#allocation4 + $0x20] sm:$0xff] %v149
    %174 = vst [vmem:[#allocation4 + $0x30] sm:$0xff] %v152
    %175 = vst [vmem:[#allocation4 + $0x40] sm:$0xff] %v157
    %176 = vst [vmem:[#allocation4 + $0x50] sm:$0xff] %v160
    %177 = vst [vmem:[#allocation4 + $0x60] sm:$0xff] %v165
    %178 = vst [vmem:[#allocation4 + $0x70] sm:$0xff] %v168
    %v179 = vld [vmem:[%s3] sm:$0xf]
    %v180 = vld [vmem:[%s3 + $0x4] sm:$0xf]
    %v181 = vld [vmem:[%s3 + $0x8] sm:$0xf]
    %v182 = vld [vmem:[%s3 + $0xc] sm:$0xf]
    %v183 = vpack.c.bf16 0.0, 0.0
    %v188 = vunpack.c.l.b16 %v179
    %v189 = vunpack.c.l.b16 %v180
    %v190 = vunpack.c.l.b16 %v181
    %v191 = vunpack.c.l.b16 %v182
    %v192 = vpack.c.b16 %v189, %v188
    %v193 = vpack.c.b16 %v191, %v190
    %v197 = vsel %vm93, %v183, 0
    %199 = vmatprep.subr.bf16.mxu0 0
    %200 = vmatpush1.bf16.msra.mxu0 %v192
    %201 = vmatprep.subr.bf16.mxu0 0
    %202 = vmatpush1.bf16.msra.mxu0 %v193
    %203 = vmatprep.subr.bf16.mxu0 0
    %204 = vmatpush1.bf16.msra.mxu0 0
    %205 = vmatprep.subr.bf16.mxu0 0
    %206 = vmatpush1.bf16.msra.mxu0 0
    %207 = vmatprep.subr.bf16.mxu0 0
    %208 = vmatpush1.bf16.msra.mxu0 0
    %209 = vmatprep.subr.bf16.mxu0 0
    %210 = vmatpush1.bf16.msra.mxu0 0
    %211 = vmatprep.subr.bf16.mxu0 0
    %212 = vmatpush1.bf16.msra.mxu0 0
    %213 = vmatprep.subr.bf16.mxu0 0
    %214 = vmatpush1.bf16.msra.mxu0 0
    %215 = vmatprep.subr.bf16.mxu0 0
    %216 = vmatpush1.bf16.msra.mxu0 0
    %217 = vmatprep.subr.bf16.mxu0 0
    %218 = vmatpush1.bf16.msra.mxu0 0
    %219 = vmatprep.subr.bf16.mxu0 0
    %220 = vmatpush1.bf16.msra.mxu0 0
    %221 = vmatprep.subr.bf16.mxu0 0
    %222 = vmatpush1.bf16.msra.mxu0 0
    %223 = vmatprep.subr.bf16.mxu0 0
    %224 = vmatpush1.bf16.msra.mxu0 0
    %225 = vmatprep.subr.bf16.mxu0 0
    %226 = vmatpush1.bf16.msra.mxu0 0
    %227 = vmatprep.subr.bf16.mxu0 0
    %228 = vmatpush1.bf16.msra.mxu0 0
    %229 = vmatprep.subr.bf16.mxu0 0
    %230 = vmatpush1.bf16.msra.mxu0 0
    %231 = vmatprep.mubr.bf16.mxu0 0
    %232 = vmatmul.mubr.bf16.gmra.mrb[0].mxu0 %v197
    %v233 = vpop.f32.mrb[0].mxu0
    %v234 = vadd.f32 0.0, %v233
    %v235 = vpop.f32.mrb[0].mxu0
    %v236 = vpop.f32.mrb[0].mxu0
    %v237 = vpop.f32.mrb[0].mxu0
    %238 = vdwg.mxu0
    %v239 = vld [vmem:[#allocation4] sm:$0xff]
    %v240 = vadd.f32 %v239, %v234
    %s241 = scalar_lea.vmem [#allocation4], 112
    %v242 = vld [vmem:[%s241] sm:$0xff]
    %v243 = vadd.f32 %v242, %v234
    %v244 = vxor.u32 %v240, 2147483648
    %v245 = vmul.f32 %v244, 1.442695
    %v246 = vpow.pop %v245
    %v247 = vadd.f32 %v246, 1.0
    %v248 = vrcp.pop %v247
    %v249 = vmul.f32 1.0, %v248
    %v250 = vtanh.pop %v240
    %v251 = vmul.f32 %v249, 0.0
    %253 = vrot.lane.b32.xlu0 %v250, 80
    %v254 = vpop.permute.xlu0 %253
    %v256 = vmul.f32 %v249, %v254
    %258 = vrot.lane.b32.xlu0 %v256, 16
    %v259 = vpop.permute.xlu0 %258
    %v261 = vadd.f32 %v251, %v259
    %v262 = vtanh.pop %v261
    %264 = vrot.lane.b32.xlu0 %v262, 16
    %v265 = vpop.permute.xlu0 %264
    %v267 = vmul.f32 %v249, %v265
    %v268 = vxor.u32 %v243, 2147483648
    %v269 = vmul.f32 %v268, 1.442695
    %v270 = vpow.pop %v269
    %v271 = vadd.f32 %v270, 1.0
    %v272 = vrcp.pop %v271
    %v273 = vmul.f32 1.0, %v272
    %v274 = vtanh.pop %v243
    %v275 = vmul.f32 %v273, 0.0
    %277 = vrot.lane.b32.xlu0 %v274, 80
    %v278 = vpop.permute.xlu0 %277
    %v280 = vmul.f32 %v273, %v278
    %282 = vrot.lane.b32.xlu0 %v280, 16
    %v283 = vpop.permute.xlu0 %282
    %v285 = vadd.f32 %v275, %v283
    %v286 = vtanh.pop %v285
    %288 = vrot.lane.b32.xlu0 %v286, 16
    %v289 = vpop.permute.xlu0 %288
    %v291 = vmul.f32 %v273, %v289
    %293 = vrot.lane.b32.xlu0 %v267, 96
    %v294 = vpop.permute.xlu0 %293
    %vm296 = vcmask 130048
    %297 = vst.msk [vmem:[#allocation2] sm:$0xff] %vm296, %v294
    %299 = vrot.lane.b32.xlu0 %v291, 48
    %v300 = vpop.permute.xlu0 %299
    %s302 = scalar_lea.vmem [#allocation2], 56
    %vm303 = vcmask 261248
    %304 = vst.msk [vmem:[%s302] sm:$0xff] %vm303, %v300
    %v305 = vsel %vm296, %v294, %v300
    %v306 = vpack.c.bf16 %v305, %v305
    %v308 = vsel %vm93, %v306, 0
    %310 = vmatprep.subr.bf16.mxu0 0
    %311 = vmatpush1.bf16.msra.mxu0 %v192
    %312 = vmatprep.subr.bf16.mxu0 0
    %313 = vmatpush1.bf16.msra.mxu0 %v193
    %314 = vmatprep.subr.bf16.mxu0 0
    %315 = vmatpush1.bf16.msra.mxu0 0
    %316 = vmatprep.subr.bf16.mxu0 0
    %317 = vmatpush1.bf16.msra.mxu0 0
    %318 = vmatprep.subr.bf16.mxu0 0
    %319 = vmatpush1.bf16.msra.mxu0 0
    %320 = vmatprep.subr.bf16.mxu0 0
    %321 = vmatpush1.bf16.msra.mxu0 0
    %322 = vmatprep.subr.bf16.mxu0 0
    %323 = vmatpush1.bf16.msra.mxu0 0
    %324 = vmatprep.subr.bf16.mxu0 0
    %325 = vmatpush1.bf16.msra.mxu0 0
    %326 = vmatprep.subr.bf16.mxu0 0
    %327 = vmatpush1.bf16.msra.mxu0 0
    %328 = vmatprep.subr.bf16.mxu0 0
    %329 = vmatpush1.bf16.msra.mxu0 0
    %330 = vmatprep.subr.bf16.mxu0 0
    %331 = vmatpush1.bf16.msra.mxu0 0
    %332 = vmatprep.subr.bf16.mxu0 0
    %333 = vmatpush1.bf16.msra.mxu0 0
    %334 = vmatprep.subr.bf16.mxu0 0
    %335 = vmatpush1.bf16.msra.mxu0 0
    %336 = vmatprep.subr.bf16.mxu0 0
    %337 = vmatpush1.bf16.msra.mxu0 0
    %338 = vmatprep.subr.bf16.mxu0 0
    %339 = vmatpush1.bf16.msra.mxu0 0
    %340 = vmatprep.subr.bf16.mxu0 0
    %341 = vmatpush1.bf16.msra.mxu0 0
    %342 = vmatprep.mubr.bf16.mxu0 0
    %343 = vmatmul.mubr.bf16.gmra.mrb[0].mxu0 %v308
    %v344 = vpop.f32.mrb[0].mxu0
    %v345 = vadd.f32 0.0, %v344
    %v346 = vpop.f32.mrb[0].mxu0
    %v347 = vpop.f32.mrb[0].mxu0
    %v348 = vpop.f32.mrb[0].mxu0
    %349 = vdwg.mxu0
    %s350 = scalar_lea.vmem [#allocation4], 16
    %v351 = vld [vmem:[%s350] sm:$0xff]
    %v352 = vadd.f32 %v351, %v345
    %s353 = scalar_lea.vmem [#allocation4], 96
    %v354 = vld [vmem:[%s353] sm:$0xff]
    %v355 = vadd.f32 %v354, %v345
    %v356 = vxor.u32 %v352, 2147483648
    %v357 = vmul.f32 %v356, 1.442695
    %v358 = vpow.pop %v357
    %v359 = vadd.f32 %v358, 1.0
    %v360 = vrcp.pop %v359
    %v361 = vmul.f32 1.0, %v360
    %v362 = vtanh.pop %v352
    %v363 = vmul.f32 %v361, %v261
    %365 = vrot.lane.b32.xlu0 %v362, 80
    %v366 = vpop.permute.xlu0 %365
    %v368 = vmul.f32 %v361, %v366
    %370 = vrot.lane.b32.xlu0 %v368, 16
    %v371 = vpop.permute.xlu0 %370
    %v373 = vadd.f32 %v363, %v371
    %v374 = vtanh.pop %v373
    %376 = vrot.lane.b32.xlu0 %v374, 16
    %v377 = vpop.permute.xlu0 %376
    %v379 = vmul.f32 %v361, %v377
    %v380 = vxor.u32 %v355, 2147483648
    %v381 = vmul.f32 %v380, 1.442695
    %v382 = vpow.pop %v381
    %v383 = vadd.f32 %v382, 1.0
    %v384 = vrcp.pop %v383
    %v385 = vmul.f32 1.0, %v384
    %v386 = vtanh.pop %v355
    %v387 = vmul.f32 %v385, %v285
    %389 = vrot.lane.b32.xlu0 %v386, 80
    %v390 = vpop.permute.xlu0 %389
    %v392 = vmul.f32 %v385, %v390
    %394 = vrot.lane.b32.xlu0 %v392, 16
    %v395 = vpop.permute.xlu0 %394
    %v397 = vadd.f32 %v387, %v395
    %v398 = vtanh.pop %v397
    %400 = vrot.lane.b32.xlu0 %v398, 16
    %v401 = vpop.permute.xlu0 %400
    %v403 = vmul.f32 %v385, %v401
    %405 = vrot.lane.b32.xlu0 %v379, 96
    %v406 = vpop.permute.xlu0 %405
    %s408 = scalar_lea.vmem [#allocation2], 8
    %409 = vst.msk [vmem:[%s408] sm:$0xff] %vm296, %v406
    %411 = vrot.lane.b32.xlu0 %v403, 48
    %v412 = vpop.permute.xlu0 %411
    %s414 = scalar_lea.vmem [#allocation2], 48
    %415 = vst.msk [vmem:[%s414] sm:$0xff] %vm303, %v412
    %v416 = vsel %vm296, %v406, %v412
    %v417 = vpack.c.bf16 %v416, %v416
    %v419 = vsel %vm93, %v417, 0
    %421 = vmatprep.subr.bf16.mxu0 0
    %422 = vmatpush1.bf16.msra.mxu0 %v192
    %423 = vmatprep.subr.bf16.mxu0 0
    %424 = vmatpush1.bf16.msra.mxu0 %v193
    %425 = vmatprep.subr.bf16.mxu0 0
    %426 = vmatpush1.bf16.msra.mxu0 0
    %427 = vmatprep.subr.bf16.mxu0 0
    %428 = vmatpush1.bf16.msra.mxu0 0
    %429 = vmatprep.subr.bf16.mxu0 0
    %430 = vmatpush1.bf16.msra.mxu0 0
    %431 = vmatprep.subr.bf16.mxu0 0
    %432 = vmatpush1.bf16.msra.mxu0 0
    %433 = vmatprep.subr.bf16.mxu0 0
    %434 = vmatpush1.bf16.msra.mxu0 0
    %435 = vmatprep.subr.bf16.mxu0 0
    %436 = vmatpush1.bf16.msra.mxu0 0
    %437 = vmatprep.subr.bf16.mxu0 0
    %438 = vmatpush1.bf16.msra.mxu0 0
    %439 = vmatprep.subr.bf16.mxu0 0
    %440 = vmatpush1.bf16.msra.mxu0 0
    %441 = vmatprep.subr.bf16.mxu0 0
    %442 = vmatpush1.bf16.msra.mxu0 0
    %443 = vmatprep.subr.bf16.mxu0 0
    %444 = vmatpush1.bf16.msra.mxu0 0
    %445 = vmatprep.subr.bf16.mxu0 0
    %446 = vmatpush1.bf16.msra.mxu0 0
    %447 = vmatprep.subr.bf16.mxu0 0
    %448 = vmatpush1.bf16.msra.mxu0 0
    %449 = vmatprep.subr.bf16.mxu0 0
    %450 = vmatpush1.bf16.msra.mxu0 0
    %451 = vmatprep.subr.bf16.mxu0 0
    %452 = vmatpush1.bf16.msra.mxu0 0
    %453 = vmatprep.mubr.bf16.mxu0 0
    %454 = vmatmul.mubr.bf16.gmra.mrb[0].mxu0 %v419
    %v455 = vpop.f32.mrb[0].mxu0
    %v456 = vadd.f32 0.0, %v455
    %v457 = vpop.f32.mrb[0].mxu0
    %v458 = vpop.f32.mrb[0].mxu0
    %v459 = vpop.f32.mrb[0].mxu0
    %460 = vdwg.mxu0
    %s461 = scalar_lea.vmem [#allocation4], 32
    %v462 = vld [vmem:[%s461] sm:$0xff]
    %v463 = vadd.f32 %v462, %v456
    %s464 = scalar_lea.vmem [#allocation4], 80
    %v465 = vld [vmem:[%s464] sm:$0xff]
    %v466 = vadd.f32 %v465, %v456
    %v467 = vxor.u32 %v463, 2147483648
    %v468 = vmul.f32 %v467, 1.442695
    %v469 = vpow.pop %v468
    %v470 = vadd.f32 %v469, 1.0
    %v471 = vrcp.pop %v470
    %v472 = vmul.f32 1.0, %v471
    %v473 = vtanh.pop %v463
    %v474 = vmul.f32 %v472, %v373
    %476 = vrot.lane.b32.xlu0 %v473, 80
    %v477 = vpop.permute.xlu0 %476
    %v479 = vmul.f32 %v472, %v477
    %481 = vrot.lane.b32.xlu0 %v479, 16
    %v482 = vpop.permute.xlu0 %481
    %v484 = vadd.f32 %v474, %v482
    %v485 = vtanh.pop %v484
    %487 = vrot.lane.b32.xlu0 %v485, 16
    %v488 = vpop.permute.xlu0 %487
    %v490 = vmul.f32 %v472, %v488
    %v491 = vxor.u32 %v466, 2147483648
    %v492 = vmul.f32 %v491, 1.442695
    %v493 = vpow.pop %v492
    %v494 = vadd.f32 %v493, 1.0
    %v495 = vrcp.pop %v494
    %v496 = vmul.f32 1.0, %v495
    %v497 = vtanh.pop %v466
    %v498 = vmul.f32 %v496, %v397
    %500 = vrot.lane.b32.xlu0 %v497, 80
    %v501 = vpop.permute.xlu0 %500
    %v503 = vmul.f32 %v496, %v501
    %505 = vrot.lane.b32.xlu0 %v503, 16
    %v506 = vpop.permute.xlu0 %505
    %v508 = vadd.f32 %v498, %v506
    %v509 = vtanh.pop %v508
    %511 = vrot.lane.b32.xlu0 %v509, 16
    %v512 = vpop.permute.xlu0 %511
    %v514 = vmul.f32 %v496, %v512
    %516 = vrot.lane.b32.xlu0 %v490, 96
    %v517 = vpop.permute.xlu0 %516
    %s519 = scalar_lea.vmem [#allocation2], 16
    %520 = vst.msk [vmem:[%s519] sm:$0xff] %vm296, %v517
    %522 = vrot.lane.b32.xlu0 %v514, 48
    %v523 = vpop.permute.xlu0 %522
    %s525 = scalar_lea.vmem [#allocation2], 40
    %526 = vst.msk [vmem:[%s525] sm:$0xff] %vm303, %v523
    %v527 = vsel %vm296, %v517, %v523
    %v528 = vpack.c.bf16 %v527, %v527
    %v530 = vsel %vm93, %v528, 0
    %532 = vmatprep.subr.bf16.mxu0 0
    %533 = vmatpush1.bf16.msra.mxu0 %v192
    %534 = vmatprep.subr.bf16.mxu0 0
    %535 = vmatpush1.bf16.msra.mxu0 %v193
    %536 = vmatprep.subr.bf16.mxu0 0
    %537 = vmatpush1.bf16.msra.mxu0 0
    %538 = vmatprep.subr.bf16.mxu0 0
    %539 = vmatpush1.bf16.msra.mxu0 0
    %540 = vmatprep.subr.bf16.mxu0 0
    %541 = vmatpush1.bf16.msra.mxu0 0
    %542 = vmatprep.subr.bf16.mxu0 0
    %543 = vmatpush1.bf16.msra.mxu0 0
    %544 = vmatprep.subr.bf16.mxu0 0
    %545 = vmatpush1.bf16.msra.mxu0 0
    %546 = vmatprep.subr.bf16.mxu0 0
    %547 = vmatpush1.bf16.msra.mxu0 0
    %548 = vmatprep.subr.bf16.mxu0 0
    %549 = vmatpush1.bf16.msra.mxu0 0
    %550 = vmatprep.subr.bf16.mxu0 0
    %551 = vmatpush1.bf16.msra.mxu0 0
    %552 = vmatprep.subr.bf16.mxu0 0
    %553 = vmatpush1.bf16.msra.mxu0 0
    %554 = vmatprep.subr.bf16.mxu0 0
    %555 = vmatpush1.bf16.msra.mxu0 0
    %556 = vmatprep.subr.bf16.mxu0 0
    %557 = vmatpush1.bf16.msra.mxu0 0
    %558 = vmatprep.subr.bf16.mxu0 0
    %559 = vmatpush1.bf16.msra.mxu0 0
    %560 = vmatprep.subr.bf16.mxu0 0
    %561 = vmatpush1.bf16.msra.mxu0 0
    %562 = vmatprep.subr.bf16.mxu0 0
    %563 = vmatpush1.bf16.msra.mxu0 0
    %564 = vmatprep.mubr.bf16.mxu0 0
    %565 = vmatmul.mubr.bf16.gmra.mrb[0].mxu0 %v530
    %v566 = vpop.f32.mrb[0].mxu0
    %v567 = vadd.f32 0.0, %v566
    %v568 = vpop.f32.mrb[0].mxu0
    %v569 = vpop.f32.mrb[0].mxu0
    %v570 = vpop.f32.mrb[0].mxu0
    %571 = vdwg.mxu0
    %s572 = scalar_lea.vmem [#allocation4], 48
    %v573 = vld [vmem:[%s572] sm:$0xff]
    %v574 = vadd.f32 %v573, %v567
    %s575 = scalar_lea.vmem [#allocation4], 64
    %v576 = vld [vmem:[%s575] sm:$0xff]
    %v577 = vadd.f32 %v576, %v567
    %v578 = vxor.u32 %v574, 2147483648
    %v579 = vmul.f32 %v578, 1.442695
    %v580 = vpow.pop %v579
    %v581 = vadd.f32 %v580, 1.0
    %v582 = vrcp.pop %v581
    %v583 = vmul.f32 1.0, %v582
    %v584 = vtanh.pop %v574
    %v585 = vmul.f32 %v583, %v484
    %587 = vrot.lane.b32.xlu0 %v584, 80
    %v588 = vpop.permute.xlu0 %587
    %v590 = vmul.f32 %v583, %v588
    %592 = vrot.lane.b32.xlu0 %v590, 16
    %v593 = vpop.permute.xlu0 %592
    %v595 = vadd.f32 %v585, %v593
    %v596 = vtanh.pop %v595
    %598 = vrot.lane.b32.xlu0 %v596, 16
    %v599 = vpop.permute.xlu0 %598
    %v601 = vmul.f32 %v583, %v599
    %v602 = vxor.u32 %v577, 2147483648
    %v603 = vmul.f32 %v602, 1.442695
    %v604 = vpow.pop %v603
    %v605 = vadd.f32 %v604, 1.0
    %v606 = vrcp.pop %v605
    %v607 = vmul.f32 1.0, %v606
    %v608 = vtanh.pop %v577
    %v609 = vmul.f32 %v607, %v508
    %611 = vrot.lane.b32.xlu0 %v608, 80
    %v612 = vpop.permute.xlu0 %611
    %v614 = vmul.f32 %v607, %v612
    %616 = vrot.lane.b32.xlu0 %v614, 16
    %v617 = vpop.permute.xlu0 %616
    %v619 = vadd.f32 %v609, %v617
    %v620 = vtanh.pop %v619
    %622 = vrot.lane.b32.xlu0 %v620, 16
    %v623 = vpop.permute.xlu0 %622
    %v625 = vmul.f32 %v607, %v623
    %627 = vrot.lane.b32.xlu0 %v601, 96
    %v628 = vpop.permute.xlu0 %627
    %s630 = scalar_lea.vmem [#allocation2], 24
    %631 = vst.msk [vmem:[%s630] sm:$0xff] %vm296, %v628
    %633 = vrot.lane.b32.xlu0 %v625, 48
    %v634 = vpop.permute.xlu0 %633
    %s636 = scalar_lea.vmem [#allocation2], 32
    %637 = vst.msk [vmem:[%s636] sm:$0xff] %vm303, %v634
    %v638 = vsel %vm296, %v628, %v634
    %v639 = vpack.c.bf16 %v638, %v638
    %v641 = vsel %vm93, %v639, 0
    %643 = vmatprep.subr.bf16.mxu0 0
    %644 = vmatpush1.bf16.msra.mxu0 %v192
    %645 = vmatprep.subr.bf16.mxu0 0
    %646 = vmatpush1.bf16.msra.mxu0 %v193
    %647 = vmatprep.subr.bf16.mxu0 0
    %648 = vmatpush1.bf16.msra.mxu0 0
    %649 = vmatprep.subr.bf16.mxu0 0
    %650 = vmatpush1.bf16.msra.mxu0 0
    %651 = vmatprep.subr.bf16.mxu0 0
    %652 = vmatpush1.bf16.msra.mxu0 0
    %653 = vmatprep.subr.bf16.mxu0 0
    %654 = vmatpush1.bf16.msra.mxu0 0
    %655 = vmatprep.subr.bf16.mxu0 0
    %656 = vmatpush1.bf16.msra.mxu0 0
    %657 = vmatprep.subr.bf16.mxu0 0
    %658 = vmatpush1.bf16.msra.mxu0 0
    %659 = vmatprep.subr.bf16.mxu0 0
    %660 = vmatpush1.bf16.msra.mxu0 0
    %661 = vmatprep.subr.bf16.mxu0 0
    %662 = vmatpush1.bf16.msra.mxu0 0
    %663 = vmatprep.subr.bf16.mxu0 0
    %664 = vmatpush1.bf16.msra.mxu0 0
    %665 = vmatprep.subr.bf16.mxu0 0
    %666 = vmatpush1.bf16.msra.mxu0 0
    %667 = vmatprep.subr.bf16.mxu0 0
    %668 = vmatpush1.bf16.msra.mxu0 0
    %669 = vmatprep.subr.bf16.mxu0 0
    %670 = vmatpush1.bf16.msra.mxu0 0
    %671 = vmatprep.subr.bf16.mxu0 0
    %672 = vmatpush1.bf16.msra.mxu0 0
    %673 = vmatprep.subr.bf16.mxu0 0
    %674 = vmatpush1.bf16.msra.mxu0 0
    %675 = vmatprep.mubr.bf16.mxu0 0
    %676 = vmatmul.mubr.bf16.gmra.mrb[0].mxu0 %v641
    %v677 = vpop.f32.mrb[0].mxu0
    %v678 = vadd.f32 0.0, %v677
    %v679 = vpop.f32.mrb[0].mxu0
    %v680 = vpop.f32.mrb[0].mxu0
    %v681 = vpop.f32.mrb[0].mxu0
    %682 = vdwg.mxu0
    %v683 = vld [vmem:[%s575] sm:$0xff]
    %v684 = vadd.f32 %v683, %v678
    %v685 = vld [vmem:[%s572] sm:$0xff]
    %v686 = vadd.f32 %v685, %v678
    %v687 = vxor.u32 %v684, 2147483648
    %v688 = vmul.f32 %v687, 1.442695
    %v689 = vpow.pop %v688
    %v690 = vadd.f32 %v689, 1.0
    %v691 = vrcp.pop %v690
    %v692 = vmul.f32 1.0, %v691
    %v693 = vtanh.pop %v684
    %v694 = vmul.f32 %v692, %v595
    %696 = vrot.lane.b32.xlu0 %v693, 80
    %v697 = vpop.permute.xlu0 %696
    %v699 = vmul.f32 %v692, %v697
    %701 = vrot.lane.b32.xlu0 %v699, 16
    %v702 = vpop.permute.xlu0 %701
    %v704 = vadd.f32 %v694, %v702
    %v705 = vtanh.pop %v704
    %707 = vrot.lane.b32.xlu0 %v705, 16
    %v708 = vpop.permute.xlu0 %707
    %v710 = vmul.f32 %v692, %v708
    %v711 = vxor.u32 %v686, 2147483648
    %v712 = vmul.f32 %v711, 1.442695
    %v713 = vpow.pop %v712
    %v714 = vadd.f32 %v713, 1.0
    %v715 = vrcp.pop %v714
    %v716 = vmul.f32 1.0, %v715
    %v717 = vtanh.pop %v686
    %v718 = vmul.f32 %v716, %v619
    %720 = vrot.lane.b32.xlu0 %v717, 80
    %v721 = vpop.permute.xlu0 %720
    %v723 = vmul.f32 %v716, %v721
    %725 = vrot.lane.b32.xlu0 %v723, 16
    %v726 = vpop.permute.xlu0 %725
    %v728 = vadd.f32 %v718, %v726
    %v729 = vtanh.pop %v728
    %731 = vrot.lane.b32.xlu0 %v729, 16
    %v732 = vpop.permute.xlu0 %731
    %v734 = vmul.f32 %v716, %v732
    %736 = vrot.lane.b32.xlu0 %v710, 96
    %v737 = vpop.permute.xlu0 %736
    %739 = vst.msk [vmem:[%s636] sm:$0xff] %vm296, %v737
    %741 = vrot.lane.b32.xlu0 %v734, 48
    %v742 = vpop.permute.xlu0 %741
    %744 = vst.msk [vmem:[%s630] sm:$0xff] %vm303, %v742
    %v745 = vsel %vm296, %v737, %v742
    %v746 = vpack.c.bf16 %v745, %v745
    %v748 = vsel %vm93, %v746, 0
    %750 = vmatprep.subr.bf16.mxu0 0
    %751 = vmatpush1.bf16.msra.mxu0 %v192
    %752 = vmatprep.subr.bf16.mxu0 0
    %753 = vmatpush1.bf16.msra.mxu0 %v193
    %754 = vmatprep.subr.bf16.mxu0 0
    %755 = vmatpush1.bf16.msra.mxu0 0
    %756 = vmatprep.subr.bf16.mxu0 0
    %757 = vmatpush1.bf16.msra.mxu0 0
    %758 = vmatprep.subr.bf16.mxu0 0
    %759 = vmatpush1.bf16.msra.mxu0 0
    %760 = vmatprep.subr.bf16.mxu0 0
    %761 = vmatpush1.bf16.msra.mxu0 0
    %762 = vmatprep.subr.bf16.mxu0 0
    %763 = vmatpush1.bf16.msra.mxu0 0
    %764 = vmatprep.subr.bf16.mxu0 0
    %765 = vmatpush1.bf16.msra.mxu0 0
    %766 = vmatprep.subr.bf16.mxu0 0
    %767 = vmatpush1.bf16.msra.mxu0 0
    %768 = vmatprep.subr.bf16.mxu0 0
    %769 = vmatpush1.bf16.msra.mxu0 0
    %770 = vmatprep.subr.bf16.mxu0 0
    %771 = vmatpush1.bf16.msra.mxu0 0
    %772 = vmatprep.subr.bf16.mxu0 0
    %773 = vmatpush1.bf16.msra.mxu0 0
    %774 = vmatprep.subr.bf16.mxu0 0
    %775 = vmatpush1.bf16.msra.mxu0 0
    %776 = vmatprep.subr.bf16.mxu0 0
    %777 = vmatpush1.bf16.msra.mxu0 0
    %778 = vmatprep.subr.bf16.mxu0 0
    %779 = vmatpush1.bf16.msra.mxu0 0
    %780 = vmatprep.subr.bf16.mxu0 0
    %781 = vmatpush1.bf16.msra.mxu0 0
    %782 = vmatprep.mubr.bf16.mxu0 0
    %783 = vmatmul.mubr.bf16.gmra.mrb[0].mxu0 %v748
    %v784 = vpop.f32.mrb[0].mxu0
    %v785 = vadd.f32 0.0, %v784
    %v786 = vpop.f32.mrb[0].mxu0
    %v787 = vpop.f32.mrb[0].mxu0
    %v788 = vpop.f32.mrb[0].mxu0
    %789 = vdwg.mxu0
    %v790 = vld [vmem:[%s464] sm:$0xff]
    %v791 = vadd.f32 %v790, %v785
    %v792 = vld [vmem:[%s461] sm:$0xff]
    %v793 = vadd.f32 %v792, %v785
    %v794 = vxor.u32 %v791, 2147483648
    %v795 = vmul.f32 %v794, 1.442695
    %v796 = vpow.pop %v795
    %v797 = vadd.f32 %v796, 1.0
    %v798 = vrcp.pop %v797
    %v799 = vmul.f32 1.0, %v798
    %v800 = vtanh.pop %v791
    %v801 = vmul.f32 %v799, %v704
    %803 = vrot.lane.b32.xlu0 %v800, 80
    %v804 = vpop.permute.xlu0 %803
    %v806 = vmul.f32 %v799, %v804
    %808 = vrot.lane.b32.xlu0 %v806, 16
    %v809 = vpop.permute.xlu0 %808
    %v811 = vadd.f32 %v801, %v809
    %v812 = vtanh.pop %v811
    %814 = vrot.lane.b32.xlu0 %v812, 16
    %v815 = vpop.permute.xlu0 %814
    %v817 = vmul.f32 %v799, %v815
    %v818 = vxor.u32 %v793, 2147483648
    %v819 = vmul.f32 %v818, 1.442695
    %v820 = vpow.pop %v819
    %v821 = vadd.f32 %v820, 1.0
    %v822 = vrcp.pop %v821
    %v823 = vmul.f32 1.0, %v822
    %v824 = vtanh.pop %v793
    %v825 = vmul.f32 %v823, %v728
    %827 = vrot.lane.b32.xlu0 %v824, 80
    %v828 = vpop.permute.xlu0 %827
    %v830 = vmul.f32 %v823, %v828
    %832 = vrot.lane.b32.xlu0 %v830, 16
    %v833 = vpop.permute.xlu0 %832
    %v835 = vadd.f32 %v825, %v833
    %v836 = vtanh.pop %v835
    %838 = vrot.lane.b32.xlu0 %v836, 16
    %v839 = vpop.permute.xlu0 %838
    %v841 = vmul.f32 %v823, %v839
    %843 = vrot.lane.b32.xlu0 %v817, 96
    %v844 = vpop.permute.xlu0 %843
    %846 = vst.msk [vmem:[%s525] sm:$0xff] %vm296, %v844
    %848 = vrot.lane.b32.xlu0 %v841, 48
    %v849 = vpop.permute.xlu0 %848
    %851 = vst.msk [vmem:[%s519] sm:$0xff] %vm303, %v849
    %v852 = vsel %vm296, %v844, %v849
    %v853 = vpack.c.bf16 %v852, %v852
    %v855 = vsel %vm93, %v853, 0
    %857 = vmatprep.subr.bf16.mxu0 0
    %858 = vmatpush1.bf16.msra.mxu0 %v192
    %859 = vmatprep.subr.bf16.mxu0 0
    %860 = vmatpush1.bf16.msra.mxu0 %v193
    %861 = vmatprep.subr.bf16.mxu0 0
    %862 = vmatpush1.bf16.msra.mxu0 0
    %863 = vmatprep.subr.bf16.mxu0 0
    %864 = vmatpush1.bf16.msra.mxu0 0
    %865 = vmatprep.subr.bf16.mxu0 0
    %866 = vmatpush1.bf16.msra.mxu0 0
    %867 = vmatprep.subr.bf16.mxu0 0
    %868 = vmatpush1.bf16.msra.mxu0 0
    %869 = vmatprep.subr.bf16.mxu0 0
    %870 = vmatpush1.bf16.msra.mxu0 0
    %871 = vmatprep.subr.bf16.mxu0 0
    %872 = vmatpush1.bf16.msra.mxu0 0
    %873 = vmatprep.subr.bf16.mxu0 0
    %874 = vmatpush1.bf16.msra.mxu0 0
    %875 = vmatprep.subr.bf16.mxu0 0
    %876 = vmatpush1.bf16.msra.mxu0 0
    %877 = vmatprep.subr.bf16.mxu0 0
    %878 = vmatpush1.bf16.msra.mxu0 0
    %879 = vmatprep.subr.bf16.mxu0 0
    %880 = vmatpush1.bf16.msra.mxu0 0
    %881 = vmatprep.subr.bf16.mxu0 0
    %882 = vmatpush1.bf16.msra.mxu0 0
    %883 = vmatprep.subr.bf16.mxu0 0
    %884 = vmatpush1.bf16.msra.mxu0 0
    %885 = vmatprep.subr.bf16.mxu0 0
    %886 = vmatpush1.bf16.msra.mxu0 0
    %887 = vmatprep.subr.bf16.mxu0 0
    %888 = vmatpush1.bf16.msra.mxu0 0
    %889 = vmatprep.mubr.bf16.mxu0 0
    %890 = vmatmul.mubr.bf16.gmra.mrb[0].mxu0 %v855
    %v891 = vpop.f32.mrb[0].mxu0
    %v892 = vadd.f32 0.0, %v891
    %v893 = vpop.f32.mrb[0].mxu0
    %v894 = vpop.f32.mrb[0].mxu0
    %v895 = vpop.f32.mrb[0].mxu0
    %896 = vdwg.mxu0
    %v897 = vld [vmem:[%s353] sm:$0xff]
    %v898 = vadd.f32 %v897, %v892
    %v899 = vld [vmem:[%s350] sm:$0xff]
    %v900 = vadd.f32 %v899, %v892
    %v901 = vxor.u32 %v898, 2147483648
    %v902 = vmul.f32 %v901, 1.442695
    %v903 = vpow.pop %v902
    %v904 = vadd.f32 %v903, 1.0
    %v905 = vrcp.pop %v904
    %v906 = vmul.f32 1.0, %v905
    %v907 = vtanh.pop %v898
    %v908 = vmul.f32 %v906, %v811
    %910 = vrot.lane.b32.xlu0 %v907, 80
    %v911 = vpop.permute.xlu0 %910
    %v913 = vmul.f32 %v906, %v911
    %915 = vrot.lane.b32.xlu0 %v913, 16
    %v916 = vpop.permute.xlu0 %915
    %v918 = vadd.f32 %v908, %v916
    %v919 = vtanh.pop %v918
    %921 = vrot.lane.b32.xlu0 %v919, 16
    %v922 = vpop.permute.xlu0 %921
    %v924 = vmul.f32 %v906, %v922
    %v925 = vxor.u32 %v900, 2147483648
    %v926 = vmul.f32 %v925, 1.442695
    %v927 = vpow.pop %v926
    %v928 = vadd.f32 %v927, 1.0
    %v929 = vrcp.pop %v928
    %v930 = vmul.f32 1.0, %v929
    %v931 = vtanh.pop %v900
    %v932 = vmul.f32 %v930, %v835
    %934 = vrot.lane.b32.xlu0 %v931, 80
    %v935 = vpop.permute.xlu0 %934
    %v937 = vmul.f32 %v930, %v935
    %939 = vrot.lane.b32.xlu0 %v937, 16
    %v940 = vpop.permute.xlu0 %939
    %v942 = vadd.f32 %v932, %v940
    %v943 = vtanh.pop %v942
    %945 = vrot.lane.b32.xlu0 %v943, 16
    %v946 = vpop.permute.xlu0 %945
    %v948 = vmul.f32 %v930, %v946
    %950 = vrot.lane.b32.xlu0 %v924, 96
    %v951 = vpop.permute.xlu0 %950
    %953 = vst.msk [vmem:[%s414] sm:$0xff] %vm296, %v951
    %955 = vrot.lane.b32.xlu0 %v948, 48
    %v956 = vpop.permute.xlu0 %955
    %958 = vst.msk [vmem:[%s408] sm:$0xff] %vm303, %v956
    %v959 = vsel %vm296, %v951, %v956
    %v960 = vpack.c.bf16 %v959, %v959
    %v962 = vsel %vm93, %v960, 0
    %964 = vmatprep.subr.bf16.mxu0 0
    %965 = vmatpush1.bf16.msra.mxu0 %v192
    %966 = vmatprep.subr.bf16.mxu0 0
    %967 = vmatpush1.bf16.msra.mxu0 %v193
    %968 = vmatprep.subr.bf16.mxu0 0
    %969 = vmatpush1.bf16.msra.mxu0 0
    %970 = vmatprep.subr.bf16.mxu0 0
    %971 = vmatpush1.bf16.msra.mxu0 0
    %972 = vmatprep.subr.bf16.mxu0 0
    %973 = vmatpush1.bf16.msra.mxu0 0
    %974 = vmatprep.subr.bf16.mxu0 0
    %975 = vmatpush1.bf16.msra.mxu0 0
    %976 = vmatprep.subr.bf16.mxu0 0
    %977 = vmatpush1.bf16.msra.mxu0 0
    %978 = vmatprep.subr.bf16.mxu0 0
    %979 = vmatpush1.bf16.msra.mxu0 0
    %980 = vmatprep.subr.bf16.mxu0 0
    %981 = vmatpush1.bf16.msra.mxu0 0
    %982 = vmatprep.subr.bf16.mxu0 0
    %983 = vmatpush1.bf16.msra.mxu0 0
    %984 = vmatprep.subr.bf16.mxu0 0
    %985 = vmatpush1.bf16.msra.mxu0 0
    %986 = vmatprep.subr.bf16.mxu0 0
    %987 = vmatpush1.bf16.msra.mxu0 0
    %988 = vmatprep.subr.bf16.mxu0 0
    %989 = vmatpush1.bf16.msra.mxu0 0
    %990 = vmatprep.subr.bf16.mxu0 0
    %991 = vmatpush1.bf16.msra.mxu0 0
    %992 = vmatprep.subr.bf16.mxu0 0
    %993 = vmatpush1.bf16.msra.mxu0 0
    %994 = vmatprep.subr.bf16.mxu0 0
    %995 = vmatpush1.bf16.msra.mxu0 0
    %996 = vmatprep.mubr.bf16.mxu0 0
    %997 = vmatmul.mubr.bf16.gmra.mrb[0].mxu0 %v962
    %v998 = vpop.f32.mrb[0].mxu0
    %v999 = vadd.f32 0.0, %v998
    %v1000 = vpop.f32.mrb[0].mxu0
    %v1001 = vpop.f32.mrb[0].mxu0
    %v1002 = vpop.f32.mrb[0].mxu0
    %1003 = vdwg.mxu0
    %v1004 = vld [vmem:[%s241] sm:$0xff]
    %v1005 = vadd.f32 %v1004, %v999
    %v1006 = vld [vmem:[#allocation4] sm:$0xff]
    %v1007 = vadd.f32 %v1006, %v999
    %v1008 = vxor.u32 %v1005, 2147483648
    %v1009 = vmul.f32 %v1008, 1.442695
    %v1010 = vpow.pop %v1009
    %v1011 = vadd.f32 %v1010, 1.0
    %v1012 = vrcp.pop %v1011
    %v1013 = vmul.f32 1.0, %v1012
    %v1014 = vtanh.pop %v1005
    %v1015 = vmul.f32 %v1013, %v918
    %1017 = vrot.lane.b32.xlu0 %v1014, 80
    %v1018 = vpop.permute.xlu0 %1017
    %v1020 = vmul.f32 %v1013, %v1018
    %1022 = vrot.lane.b32.xlu0 %v1020, 16
    %v1023 = vpop.permute.xlu0 %1022
    %v1025 = vadd.f32 %v1015, %v1023
    %v1026 = vtanh.pop %v1025
    %1028 = vrot.lane.b32.xlu0 %v1026, 16
    %v1029 = vpop.permute.xlu0 %1028
    %v1031 = vmul.f32 %v1013, %v1029
    %v1032 = vxor.u32 %v1007, 2147483648
    %v1033 = vmul.f32 %v1032, 1.442695
    %v1034 = vpow.pop %v1033
    %v1035 = vadd.f32 %v1034, 1.0
    %v1036 = vrcp.pop %v1035
    %v1037 = vmul.f32 1.0, %v1036
    %v1038 = vtanh.pop %v1007
    %v1039 = vmul.f32 %v1037, %v942
    %1041 = vrot.lane.b32.xlu0 %v1038, 80
    %v1042 = vpop.permute.xlu0 %1041
    %v1044 = vmul.f32 %v1037, %v1042
    %1046 = vrot.lane.b32.xlu0 %v1044, 16
    %v1047 = vpop.permute.xlu0 %1046
    %v1049 = vadd.f32 %v1039, %v1047
    %v1050 = vtanh.pop %v1049
    %1052 = vrot.lane.b32.xlu0 %v1050, 16
    %v1053 = vpop.permute.xlu0 %1052
    %v1055 = vmul.f32 %v1037, %v1053
    %1057 = vrot.lane.b32.xlu0 %v1031, 96
    %v1058 = vpop.permute.xlu0 %1057
    %1060 = vst.msk [vmem:[%s302] sm:$0xff] %vm296, %v1058
    %1062 = vrot.lane.b32.xlu0 %v1055, 48
    %v1063 = vpop.permute.xlu0 %1062
    %1065 = vst.msk [vmem:[#allocation2] sm:$0xff] %vm303, %v1063
    %v1066 = vld [vmem:[#allocation2] sm:$0xff]
    %v1067 = vld [vmem:[#allocation2 + $0x8] sm:$0xff]
    %v1068 = vld [vmem:[#allocation2 + $0x10] sm:$0xff]
    %v1069 = vld [vmem:[#allocation2 + $0x18] sm:$0xff]
    %v1070 = vld [vmem:[#allocation2 + $0x20] sm:$0xff]
    %v1071 = vld [vmem:[#allocation2 + $0x28] sm:$0xff]
    %v1072 = vld [vmem:[#allocation2 + $0x30] sm:$0xff]
    %v1073 = vld [vmem:[#allocation2 + $0x38] sm:$0xff]
    %v1074 = vpack.c.bf16 %v1067, %v1066
    %v1075 = vpack.c.bf16 %v1069, %v1068
    %v1076 = vpack.c.bf16 %v1071, %v1070
    %v1077 = vpack.c.bf16 %v1073, %v1072
    %v1078 = vld [vmem:[%s5] sm:$0xf]
    %v1079 = vld [vmem:[%s5 + $0x4] sm:$0xf]
    %v1080 = vld [vmem:[%s5 + $0x8] sm:$0xf]
    %v1081 = vld [vmem:[%s5 + $0xc] sm:$0xf]
    %v1082 = vld [vmem:[%s7] sm:$0x1]
    %v1084 = vlaneseq
    %v1085 = vshrl.u32 %v1084, 7
    %v1086 = vsub.s32 0, %v1085
    %v1087 = vrot.slane %v1082, %v1086
    %v1093 = vunpack.c.l.b16 %v1078
    %v1094 = vunpack.c.l.b16 %v1079
    %v1095 = vunpack.c.l.b16 %v1080
    %v1096 = vunpack.c.l.b16 %v1081
    %v1097 = vpack.c.b16 %v1094, %v1093
    %v1098 = vpack.c.b16 %v1096, %v1095
    %v1102 = vsel %vm93, %v1074, 0
    %v1105 = vsel %vm93, %v1075, 0
    %v1108 = vsel %vm93, %v1076, 0
    %v1111 = vsel %vm93, %v1077, 0
    %1113 = vmatprep.subr.bf16.mxu0 0
    %1114 = vmatpush1.bf16.msra.mxu0 %v1097
    %1115 = vmatprep.subr.bf16.mxu0 0
    %1116 = vmatpush1.bf16.msra.mxu0 %v1098
    %1117 = vmatprep.subr.bf16.mxu0 0
    %1118 = vmatpush1.bf16.msra.mxu0 0
    %1119 = vmatprep.subr.bf16.mxu0 0
    %1120 = vmatpush1.bf16.msra.mxu0 0
    %1121 = vmatprep.subr.bf16.mxu0 0
    %1122 = vmatpush1.bf16.msra.mxu0 0
    %1123 = vmatprep.subr.bf16.mxu0 0
    %1124 = vmatpush1.bf16.msra.mxu0 0
    %1125 = vmatprep.subr.bf16.mxu0 0
    %1126 = vmatpush1.bf16.msra.mxu0 0
    %1127 = vmatprep.subr.bf16.mxu0 0
    %1128 = vmatpush1.bf16.msra.mxu0 0
    %1129 = vmatprep.subr.bf16.mxu0 0
    %1130 = vmatpush1.bf16.msra.mxu0 0
    %1131 = vmatprep.subr.bf16.mxu0 0
    %1132 = vmatpush1.bf16.msra.mxu0 0
    %1133 = vmatprep.subr.bf16.mxu0 0
    %1134 = vmatpush1.bf16.msra.mxu0 0
    %1135 = vmatprep.subr.bf16.mxu0 0
    %1136 = vmatpush1.bf16.msra.mxu0 0
    %1137 = vmatprep.subr.bf16.mxu0 0
    %1138 = vmatpush1.bf16.msra.mxu0 0
    %1139 = vmatprep.subr.bf16.mxu0 0
    %1140 = vmatpush1.bf16.msra.mxu0 0
    %1141 = vmatprep.subr.bf16.mxu0 0
    %1142 = vmatpush1.bf16.msra.mxu0 0
    %1143 = vmatprep.subr.bf16.mxu0 0
    %1144 = vmatpush1.bf16.msra.mxu0 0
    %1145 = vmatprep.mubr.bf16.mxu0 0
    %1146 = vmatmul.mubr.bf16.gmra.mrb[0].mxu0 %v1102
    %v1147 = vpop.f32.mrb[0].mxu0
    %v1148 = vadd.f32 %v1087, %v1147
    %v1149 = vpop.f32.mrb[0].mxu0
    %v1150 = vpop.f32.mrb[0].mxu0
    %v1151 = vadd.f32 %v1087, %v1150
    %v1152 = vpop.f32.mrb[0].mxu0
    %1153 = vmatprep.mubr.bf16.mxu0 0
    %1154 = vmatmul.mubr.bf16.gmra.mrb[0].mxu0 %v1105
    %v1155 = vpop.f32.mrb[0].mxu0
    %v1156 = vadd.f32 %v1087, %v1155
    %v1157 = vpop.f32.mrb[0].mxu0
    %v1158 = vpop.f32.mrb[0].mxu0
    %v1159 = vadd.f32 %v1087, %v1158
    %v1160 = vpop.f32.mrb[0].mxu0
    %1161 = vmatprep.mubr.bf16.mxu0 0
    %1162 = vmatmul.mubr.bf16.gmra.mrb[0].mxu0 %v1108
    %v1163 = vpop.f32.mrb[0].mxu0
    %v1164 = vadd.f32 %v1087, %v1163
    %v1165 = vpop.f32.mrb[0].mxu0
    %v1166 = vpop.f32.mrb[0].mxu0
    %v1167 = vadd.f32 %v1087, %v1166
    %v1168 = vpop.f32.mrb[0].mxu0
    %1169 = vmatprep.mubr.bf16.mxu0 0
    %1170 = vmatmul.mubr.bf16.gmra.mrb[0].mxu0 %v1111
    %v1171 = vpop.f32.mrb[0].mxu0
    %v1172 = vadd.f32 %v1087, %v1171
    %v1173 = vpop.f32.mrb[0].mxu0
    %v1174 = vpop.f32.mrb[0].mxu0
    %v1175 = vadd.f32 %v1087, %v1174
    %v1176 = vpop.f32.mrb[0].mxu0
    %1177 = vdwg.mxu0
    %1178 = vst [vmem:[#allocation4] sm:$0xff] %v1148
    %1179 = vst [vmem:[#allocation4 + $0x10] sm:$0xff] %v1151
    %1180 = vst [vmem:[#allocation4 + $0x20] sm:$0xff] %v1156
    %1181 = vst [vmem:[#allocation4 + $0x30] sm:$0xff] %v1159
    %1182 = vst [vmem:[#allocation4 + $0x40] sm:$0xff] %v1164
    %1183 = vst [vmem:[#allocation4 + $0x50] sm:$0xff] %v1167
    %1184 = vst [vmem:[#allocation4 + $0x60] sm:$0xff] %v1172
    %1185 = vst [vmem:[#allocation4 + $0x70] sm:$0xff] %v1175
    %v1186 = vld [vmem:[%s6] sm:$0xf]
    %v1187 = vld [vmem:[%s6 + $0x4] sm:$0xf]
    %v1188 = vld [vmem:[%s6 + $0x8] sm:$0xf]
    %v1189 = vld [vmem:[%s6 + $0xc] sm:$0xf]
    %v1194 = vunpack.c.l.b16 %v1186
    %v1195 = vunpack.c.l.b16 %v1187
    %v1196 = vunpack.c.l.b16 %v1188
    %v1197 = vunpack.c.l.b16 %v1189
    %v1198 = vpack.c.b16 %v1195, %v1194
    %v1199 = vpack.c.b16 %v1197, %v1196
    %1202 = vmatprep.subr.bf16.mxu0 0
    %1203 = vmatpush1.bf16.msra.mxu0 %v1198
    %1204 = vmatprep.subr.bf16.mxu0 0
    %1205 = vmatpush1.bf16.msra.mxu0 %v1199
    %1206 = vmatprep.subr.bf16.mxu0 0
    %1207 = vmatpush1.bf16.msra.mxu0 0
    %1208 = vmatprep.subr.bf16.mxu0 0
    %1209 = vmatpush1.bf16.msra.mxu0 0
    %1210 = vmatprep.subr.bf16.mxu0 0
    %1211 = vmatpush1.bf16.msra.mxu0 0
    %1212 = vmatprep.subr.bf16.mxu0 0
    %1213 = vmatpush1.bf16.msra.mxu0 0
    %1214 = vmatprep.subr.bf16.mxu0 0
    %1215 = vmatpush1.bf16.msra.mxu0 0
    %1216 = vmatprep.subr.bf16.mxu0 0
    %1217 = vmatpush1.bf16.msra.mxu0 0
    %1218 = vmatprep.subr.bf16.mxu0 0
    %1219 = vmatpush1.bf16.msra.mxu0 0
    %1220 = vmatprep.subr.bf16.mxu0 0
    %1221 = vmatpush1.bf16.msra.mxu0 0
    %1222 = vmatprep.subr.bf16.mxu0 0
    %1223 = vmatpush1.bf16.msra.mxu0 0
    %1224 = vmatprep.subr.bf16.mxu0 0
    %1225 = vmatpush1.bf16.msra.mxu0 0
    %1226 = vmatprep.subr.bf16.mxu0 0
    %1227 = vmatpush1.bf16.msra.mxu0 0
    %1228 = vmatprep.subr.bf16.mxu0 0
    %1229 = vmatpush1.bf16.msra.mxu0 0
    %1230 = vmatprep.subr.bf16.mxu0 0
    %1231 = vmatpush1.bf16.msra.mxu0 0
    %1232 = vmatprep.subr.bf16.mxu0 0
    %1233 = vmatpush1.bf16.msra.mxu0 0
    %1234 = vmatprep.mubr.bf16.mxu0 0
    %1235 = vmatmul.mubr.bf16.gmra.mrb[0].mxu0 %v197
    %v1236 = vpop.f32.mrb[0].mxu0
    %v1237 = vadd.f32 0.0, %v1236
    %v1238 = vpop.f32.mrb[0].mxu0
    %v1239 = vpop.f32.mrb[0].mxu0
    %v1240 = vpop.f32.mrb[0].mxu0
    %1241 = vdwg.mxu0
    %v1242 = vld [vmem:[#allocation4] sm:$0xff]
    %v1243 = vadd.f32 %v1242, %v1237
    %v1244 = vld [vmem:[%s241] sm:$0xff]
    %v1245 = vadd.f32 %v1244, %v1237
    %v1246 = vxor.u32 %v1243, 2147483648
    %v1247 = vmul.f32 %v1246, 1.442695
    %v1248 = vpow.pop %v1247
    %v1249 = vadd.f32 %v1248, 1.0
    %v1250 = vrcp.pop %v1249
    %v1251 = vmul.f32 1.0, %v1250
    %v1252 = vtanh.pop %v1243
    %v1253 = vmul.f32 %v1251, 0.0
    %1255 = vrot.lane.b32.xlu0 %v1252, 80
    %v1256 = vpop.permute.xlu0 %1255
    %v1258 = vmul.f32 %v1251, %v1256
    %1260 = vrot.lane.b32.xlu0 %v1258, 16
    %v1261 = vpop.permute.xlu0 %1260
    %v1263 = vadd.f32 %v1253, %v1261
    %v1264 = vtanh.pop %v1263
    %1266 = vrot.lane.b32.xlu0 %v1264, 16
    %v1267 = vpop.permute.xlu0 %1266
    %v1269 = vmul.f32 %v1251, %v1267
    %v1270 = vxor.u32 %v1245, 2147483648
    %v1271 = vmul.f32 %v1270, 1.442695
    %v1272 = vpow.pop %v1271
    %v1273 = vadd.f32 %v1272, 1.0
    %v1274 = vrcp.pop %v1273
    %v1275 = vmul.f32 1.0, %v1274
    %v1276 = vtanh.pop %v1245
    %v1277 = vmul.f32 %v1275, 0.0
    %1279 = vrot.lane.b32.xlu0 %v1276, 80
    %v1280 = vpop.permute.xlu0 %1279
    %v1282 = vmul.f32 %v1275, %v1280
    %1284 = vrot.lane.b32.xlu0 %v1282, 16
    %v1285 = vpop.permute.xlu0 %1284
    %v1287 = vadd.f32 %v1277, %v1285
    %v1288 = vtanh.pop %v1287
    %1290 = vrot.lane.b32.xlu0 %v1288, 16
    %v1291 = vpop.permute.xlu0 %1290
    %v1293 = vmul.f32 %v1275, %v1291
    %1295 = vrot.lane.b32.xlu0 %v1269, 96
    %v1296 = vpop.permute.xlu0 %1295
    %1298 = vst.msk [vmem:[#allocation3] sm:$0xff] %vm296, %v1296
    %1300 = vrot.lane.b32.xlu0 %v1293, 48
    %v1301 = vpop.permute.xlu0 %1300
    %s1303 = scalar_lea.vmem [#allocation3], 56
    %1304 = vst.msk [vmem:[%s1303] sm:$0xff] %vm303, %v1301
    %v1305 = vsel %vm296, %v1296, %v1301
    %v1306 = vpack.c.bf16 %v1305, %v1305
    %v1308 = vsel %vm93, %v1306, 0
    %1310 = vmatprep.subr.bf16.mxu0 0
    %1311 = vmatpush1.bf16.msra.mxu0 %v1198
    %1312 = vmatprep.subr.bf16.mxu0 0
    %1313 = vmatpush1.bf16.msra.mxu0 %v1199
    %1314 = vmatprep.subr.bf16.mxu0 0
    %1315 = vmatpush1.bf16.msra.mxu0 0
    %1316 = vmatprep.subr.bf16.mxu0 0
    %1317 = vmatpush1.bf16.msra.mxu0 0
    %1318 = vmatprep.subr.bf16.mxu0 0
    %1319 = vmatpush1.bf16.msra.mxu0 0
    %1320 = vmatprep.subr.bf16.mxu0 0
    %1321 = vmatpush1.bf16.msra.mxu0 0
    %1322 = vmatprep.subr.bf16.mxu0 0
    %1323 = vmatpush1.bf16.msra.mxu0 0
    %1324 = vmatprep.subr.bf16.mxu0 0
    %1325 = vmatpush1.bf16.msra.mxu0 0
    %1326 = vmatprep.subr.bf16.mxu0 0
    %1327 = vmatpush1.bf16.msra.mxu0 0
    %1328 = vmatprep.subr.bf16.mxu0 0
    %1329 = vmatpush1.bf16.msra.mxu0 0
    %1330 = vmatprep.subr.bf16.mxu0 0
    %1331 = vmatpush1.bf16.msra.mxu0 0
    %1332 = vmatprep.subr.bf16.mxu0 0
    %1333 = vmatpush1.bf16.msra.mxu0 0
    %1334 = vmatprep.subr.bf16.mxu0 0
    %1335 = vmatpush1.bf16.msra.mxu0 0
    %1336 = vmatprep.subr.bf16.mxu0 0
    %1337 = vmatpush1.bf16.msra.mxu0 0
    %1338 = vmatprep.subr.bf16.mxu0 0
    %1339 = vmatpush1.bf16.msra.mxu0 0
    %1340 = vmatprep.subr.bf16.mxu0 0
    %1341 = vmatpush1.bf16.msra.mxu0 0
    %1342 = vmatprep.mubr.bf16.mxu0 0
    %1343 = vmatmul.mubr.bf16.gmra.mrb[0].mxu0 %v1308
    %v1344 = vpop.f32.mrb[0].mxu0
    %v1345 = vadd.f32 0.0, %v1344
    %v1346 = vpop.f32.mrb[0].mxu0
    %v1347 = vpop.f32.mrb[0].mxu0
    %v1348 = vpop.f32.mrb[0].mxu0
    %1349 = vdwg.mxu0
    %v1350 = vld [vmem:[%s350] sm:$0xff]
    %v1351 = vadd.f32 %v1350, %v1345
    %v1352 = vld [vmem:[%s353] sm:$0xff]
    %v1353 = vadd.f32 %v1352, %v1345
    %v1354 = vxor.u32 %v1351, 2147483648
    %v1355 = vmul.f32 %v1354, 1.442695
    %v1356 = vpow.pop %v1355
    %v1357 = vadd.f32 %v1356, 1.0
    %v1358 = vrcp.pop %v1357
    %v1359 = vmul.f32 1.0, %v1358
    %v1360 = vtanh.pop %v1351
    %v1361 = vmul.f32 %v1359, %v1263
    %1363 = vrot.lane.b32.xlu0 %v1360, 80
    %v1364 = vpop.permute.xlu0 %1363
    %v1366 = vmul.f32 %v1359, %v1364
    %1368 = vrot.lane.b32.xlu0 %v1366, 16
    %v1369 = vpop.permute.xlu0 %1368
    %v1371 = vadd.f32 %v1361, %v1369
    %v1372 = vtanh.pop %v1371
    %1374 = vrot.lane.b32.xlu0 %v1372, 16
    %v1375 = vpop.permute.xlu0 %1374
    %v1377 = vmul.f32 %v1359, %v1375
    %v1378 = vxor.u32 %v1353, 2147483648
    %v1379 = vmul.f32 %v1378, 1.442695
    %v1380 = vpow.pop %v1379
    %v1381 = vadd.f32 %v1380, 1.0
    %v1382 = vrcp.pop %v1381
    %v1383 = vmul.f32 1.0, %v1382
    %v1384 = vtanh.pop %v1353
    %v1385 = vmul.f32 %v1383, %v1287
    %1387 = vrot.lane.b32.xlu0 %v1384, 80
    %v1388 = vpop.permute.xlu0 %1387
    %v1390 = vmul.f32 %v1383, %v1388
    %1392 = vrot.lane.b32.xlu0 %v1390, 16
    %v1393 = vpop.permute.xlu0 %1392
    %v1395 = vadd.f32 %v1385, %v1393
    %v1396 = vtanh.pop %v1395
    %1398 = vrot.lane.b32.xlu0 %v1396, 16
    %v1399 = vpop.permute.xlu0 %1398
    %v1401 = vmul.f32 %v1383, %v1399
    %1403 = vrot.lane.b32.xlu0 %v1377, 96
    %v1404 = vpop.permute.xlu0 %1403
    %s1406 = scalar_lea.vmem [#allocation3], 8
    %1407 = vst.msk [vmem:[%s1406] sm:$0xff] %vm296, %v1404
    %1409 = vrot.lane.b32.xlu0 %v1401, 48
    %v1410 = vpop.permute.xlu0 %1409
    %s1412 = scalar_lea.vmem [#allocation3], 48
    %1413 = vst.msk [vmem:[%s1412] sm:$0xff] %vm303, %v1410
    %v1414 = vsel %vm296, %v1404, %v1410
    %v1415 = vpack.c.bf16 %v1414, %v1414
    %v1417 = vsel %vm93, %v1415, 0
    %1419 = vmatprep.subr.bf16.mxu0 0
    %1420 = vmatpush1.bf16.msra.mxu0 %v1198
    %1421 = vmatprep.subr.bf16.mxu0 0
    %1422 = vmatpush1.bf16.msra.mxu0 %v1199
    %1423 = vmatprep.subr.bf16.mxu0 0
    %1424 = vmatpush1.bf16.msra.mxu0 0
    %1425 = vmatprep.subr.bf16.mxu0 0
    %1426 = vmatpush1.bf16.msra.mxu0 0
    %1427 = vmatprep.subr.bf16.mxu0 0
    %1428 = vmatpush1.bf16.msra.mxu0 0
    %1429 = vmatprep.subr.bf16.mxu0 0
    %1430 = vmatpush1.bf16.msra.mxu0 0
    %1431 = vmatprep.subr.bf16.mxu0 0
    %1432 = vmatpush1.bf16.msra.mxu0 0
    %1433 = vmatprep.subr.bf16.mxu0 0
    %1434 = vmatpush1.bf16.msra.mxu0 0
    %1435 = vmatprep.subr.bf16.mxu0 0
    %1436 = vmatpush1.bf16.msra.mxu0 0
    %1437 = vmatprep.subr.bf16.mxu0 0
    %1438 = vmatpush1.bf16.msra.mxu0 0
    %1439 = vmatprep.subr.bf16.mxu0 0
    %1440 = vmatpush1.bf16.msra.mxu0 0
    %1441 = vmatprep.subr.bf16.mxu0 0
    %1442 = vmatpush1.bf16.msra.mxu0 0
    %1443 = vmatprep.subr.bf16.mxu0 0
    %1444 = vmatpush1.bf16.msra.mxu0 0
    %1445 = vmatprep.subr.bf16.mxu0 0
    %1446 = vmatpush1.bf16.msra.mxu0 0
    %1447 = vmatprep.subr.bf16.mxu0 0
    %1448 = vmatpush1.bf16.msra.mxu0 0
    %1449 = vmatprep.subr.bf16.mxu0 0
    %1450 = vmatpush1.bf16.msra.mxu0 0
    %1451 = vmatprep.mubr.bf16.mxu0 0
    %1452 = vmatmul.mubr.bf16.gmra.mrb[0].mxu0 %v1417
    %v1453 = vpop.f32.mrb[0].mxu0
    %v1454 = vadd.f32 0.0, %v1453
    %v1455 = vpop.f32.mrb[0].mxu0
    %v1456 = vpop.f32.mrb[0].mxu0
    %v1457 = vpop.f32.mrb[0].mxu0
    %1458 = vdwg.mxu0
    %v1459 = vld [vmem:[%s461] sm:$0xff]
    %v1460 = vadd.f32 %v1459, %v1454
    %v1461 = vld [vmem:[%s464] sm:$0xff]
    %v1462 = vadd.f32 %v1461, %v1454
    %v1463 = vxor.u32 %v1460, 2147483648
    %v1464 = vmul.f32 %v1463, 1.442695
    %v1465 = vpow.pop %v1464
    %v1466 = vadd.f32 %v1465, 1.0
    %v1467 = vrcp.pop %v1466
    %v1468 = vmul.f32 1.0, %v1467
    %v1469 = vtanh.pop %v1460
    %v1470 = vmul.f32 %v1468, %v1371
    %1472 = vrot.lane.b32.xlu0 %v1469, 80
    %v1473 = vpop.permute.xlu0 %1472
    %v1475 = vmul.f32 %v1468, %v1473
    %1477 = vrot.lane.b32.xlu0 %v1475, 16
    %v1478 = vpop.permute.xlu0 %1477
    %v1480 = vadd.f32 %v1470, %v1478
    %v1481 = vtanh.pop %v1480
    %1483 = vrot.lane.b32.xlu0 %v1481, 16
    %v1484 = vpop.permute.xlu0 %1483
    %v1486 = vmul.f32 %v1468, %v1484
    %v1487 = vxor.u32 %v1462, 2147483648
    %v1488 = vmul.f32 %v1487, 1.442695
    %v1489 = vpow.pop %v1488
    %v1490 = vadd.f32 %v1489, 1.0
    %v1491 = vrcp.pop %v1490
    %v1492 = vmul.f32 1.0, %v1491
    %v1493 = vtanh.pop %v1462
    %v1494 = vmul.f32 %v1492, %v1395
    %1496 = vrot.lane.b32.xlu0 %v1493, 80
    %v1497 = vpop.permute.xlu0 %1496
    %v1499 = vmul.f32 %v1492, %v1497
    %1501 = vrot.lane.b32.xlu0 %v1499, 16
    %v1502 = vpop.permute.xlu0 %1501
    %v1504 = vadd.f32 %v1494, %v1502
    %v1505 = vtanh.pop %v1504
    %1507 = vrot.lane.b32.xlu0 %v1505, 16
    %v1508 = vpop.permute.xlu0 %1507
    %v1510 = vmul.f32 %v1492, %v1508
    %1512 = vrot.lane.b32.xlu0 %v1486, 96
    %v1513 = vpop.permute.xlu0 %1512
    %s1515 = scalar_lea.vmem [#allocation3], 16
    %1516 = vst.msk [vmem:[%s1515] sm:$0xff] %vm296, %v1513
    %1518 = vrot.lane.b32.xlu0 %v1510, 48
    %v1519 = vpop.permute.xlu0 %1518
    %s1521 = scalar_lea.vmem [#allocation3], 40
    %1522 = vst.msk [vmem:[%s1521] sm:$0xff] %vm303, %v1519
    %v1523 = vsel %vm296, %v1513, %v1519
    %v1524 = vpack.c.bf16 %v1523, %v1523
    %v1526 = vsel %vm93, %v1524, 0
    %1528 = vmatprep.subr.bf16.mxu0 0
    %1529 = vmatpush1.bf16.msra.mxu0 %v1198
    %1530 = vmatprep.subr.bf16.mxu0 0
    %1531 = vmatpush1.bf16.msra.mxu0 %v1199
    %1532 = vmatprep.subr.bf16.mxu0 0
    %1533 = vmatpush1.bf16.msra.mxu0 0
    %1534 = vmatprep.subr.bf16.mxu0 0
    %1535 = vmatpush1.bf16.msra.mxu0 0
    %1536 = vmatprep.subr.bf16.mxu0 0
    %1537 = vmatpush1.bf16.msra.mxu0 0
    %1538 = vmatprep.subr.bf16.mxu0 0
    %1539 = vmatpush1.bf16.msra.mxu0 0
    %1540 = vmatprep.subr.bf16.mxu0 0
    %1541 = vmatpush1.bf16.msra.mxu0 0
    %1542 = vmatprep.subr.bf16.mxu0 0
    %1543 = vmatpush1.bf16.msra.mxu0 0
    %1544 = vmatprep.subr.bf16.mxu0 0
    %1545 = vmatpush1.bf16.msra.mxu0 0
    %1546 = vmatprep.subr.bf16.mxu0 0
    %1547 = vmatpush1.bf16.msra.mxu0 0
    %1548 = vmatprep.subr.bf16.mxu0 0
    %1549 = vmatpush1.bf16.msra.mxu0 0
    %1550 = vmatprep.subr.bf16.mxu0 0
    %1551 = vmatpush1.bf16.msra.mxu0 0
    %1552 = vmatprep.subr.bf16.mxu0 0
    %1553 = vmatpush1.bf16.msra.mxu0 0
    %1554 = vmatprep.subr.bf16.mxu0 0
    %1555 = vmatpush1.bf16.msra.mxu0 0
    %1556 = vmatprep.subr.bf16.mxu0 0
    %1557 = vmatpush1.bf16.msra.mxu0 0
    %1558 = vmatprep.subr.bf16.mxu0 0
    %1559 = vmatpush1.bf16.msra.mxu0 0
    %1560 = vmatprep.mubr.bf16.mxu0 0
    %1561 = vmatmul.mubr.bf16.gmra.mrb[0].mxu0 %v1526
    %v1562 = vpop.f32.mrb[0].mxu0
    %v1563 = vadd.f32 0.0, %v1562
    %v1564 = vpop.f32.mrb[0].mxu0
    %v1565 = vpop.f32.mrb[0].mxu0
    %v1566 = vpop.f32.mrb[0].mxu0
    %1567 = vdwg.mxu0
    %v1568 = vld [vmem:[%s572] sm:$0xff]
    %v1569 = vadd.f32 %v1568, %v1563
    %v1570 = vld [vmem:[%s575] sm:$0xff]
    %v1571 = vadd.f32 %v1570, %v1563
    %v1572 = vxor.u32 %v1569, 2147483648
    %v1573 = vmul.f32 %v1572, 1.442695
    %v1574 = vpow.pop %v1573
    %v1575 = vadd.f32 %v1574, 1.0
    %v1576 = vrcp.pop %v1575
    %v1577 = vmul.f32 1.0, %v1576
    %v1578 = vtanh.pop %v1569
    %v1579 = vmul.f32 %v1577, %v1480
    %1581 = vrot.lane.b32.xlu0 %v1578, 80
    %v1582 = vpop.permute.xlu0 %1581
    %v1584 = vmul.f32 %v1577, %v1582
    %1586 = vrot.lane.b32.xlu0 %v1584, 16
    %v1587 = vpop.permute.xlu0 %1586
    %v1589 = vadd.f32 %v1579, %v1587
    %v1590 = vtanh.pop %v1589
    %1592 = vrot.lane.b32.xlu0 %v1590, 16
    %v1593 = vpop.permute.xlu0 %1592
    %v1595 = vmul.f32 %v1577, %v1593
    %v1596 = vxor.u32 %v1571, 2147483648
    %v1597 = vmul.f32 %v1596, 1.442695
    %v1598 = vpow.pop %v1597
    %v1599 = vadd.f32 %v1598, 1.0
    %v1600 = vrcp.pop %v1599
    %v1601 = vmul.f32 1.0, %v1600
    %v1602 = vtanh.pop %v1571
    %v1603 = vmul.f32 %v1601, %v1504
    %1605 = vrot.lane.b32.xlu0 %v1602, 80
    %v1606 = vpop.permute.xlu0 %1605
    %v1608 = vmul.f32 %v1601, %v1606
    %1610 = vrot.lane.b32.xlu0 %v1608, 16
    %v1611 = vpop.permute.xlu0 %1610
    %v1613 = vadd.f32 %v1603, %v1611
    %v1614 = vtanh.pop %v1613
    %1616 = vrot.lane.b32.xlu0 %v1614, 16
    %v1617 = vpop.permute.xlu0 %1616
    %v1619 = vmul.f32 %v1601, %v1617
    %1621 = vrot.lane.b32.xlu0 %v1595, 96
    %v1622 = vpop.permute.xlu0 %1621
    %s1624 = scalar_lea.vmem [#allocation3], 24
    %1625 = vst.msk [vmem:[%s1624] sm:$0xff] %vm296, %v1622
    %1627 = vrot.lane.b32.xlu0 %v1619, 48
    %v1628 = vpop.permute.xlu0 %1627
    %s1630 = scalar_lea.vmem [#allocation3], 32
    %1631 = vst.msk [vmem:[%s1630] sm:$0xff] %vm303, %v1628
    %v1632 = vsel %vm296, %v1622, %v1628
    %v1633 = vpack.c.bf16 %v1632, %v1632
    %v1635 = vsel %vm93, %v1633, 0
    %1637 = vmatprep.subr.bf16.mxu0 0
    %1638 = vmatpush1.bf16.msra.mxu0 %v1198
    %1639 = vmatprep.subr.bf16.mxu0 0
    %1640 = vmatpush1.bf16.msra.mxu0 %v1199
    %1641 = vmatprep.subr.bf16.mxu0 0
    %1642 = vmatpush1.bf16.msra.mxu0 0
    %1643 = vmatprep.subr.bf16.mxu0 0
    %1644 = vmatpush1.bf16.msra.mxu0 0
    %1645 = vmatprep.subr.bf16.mxu0 0
    %1646 = vmatpush1.bf16.msra.mxu0 0
    %1647 = vmatprep.subr.bf16.mxu0 0
    %1648 = vmatpush1.bf16.msra.mxu0 0
    %1649 = vmatprep.subr.bf16.mxu0 0
    %1650 = vmatpush1.bf16.msra.mxu0 0
    %1651 = vmatprep.subr.bf16.mxu0 0
    %1652 = vmatpush1.bf16.msra.mxu0 0
    %1653 = vmatprep.subr.bf16.mxu0 0
    %1654 = vmatpush1.bf16.msra.mxu0 0
    %1655 = vmatprep.subr.bf16.mxu0 0
    %1656 = vmatpush1.bf16.msra.mxu0 0
    %1657 = vmatprep.subr.bf16.mxu0 0
    %1658 = vmatpush1.bf16.msra.mxu0 0
    %1659 = vmatprep.subr.bf16.mxu0 0
    %1660 = vmatpush1.bf16.msra.mxu0 0
    %1661 = vmatprep.subr.bf16.mxu0 0
    %1662 = vmatpush1.bf16.msra.mxu0 0
    %1663 = vmatprep.subr.bf16.mxu0 0
    %1664 = vmatpush1.bf16.msra.mxu0 0
    %1665 = vmatprep.subr.bf16.mxu0 0
    %1666 = vmatpush1.bf16.msra.mxu0 0
    %1667 = vmatprep.subr.bf16.mxu0 0
    %1668 = vmatpush1.bf16.msra.mxu0 0
    %1669 = vmatprep.mubr.bf16.mxu0 0
    %1670 = vmatmul.mubr.bf16.gmra.mrb[0].mxu0 %v1635
    %v1671 = vpop.f32.mrb[0].mxu0
    %v1672 = vadd.f32 0.0, %v1671
    %v1673 = vpop.f32.mrb[0].mxu0
    %v1674 = vpop.f32.mrb[0].mxu0
    %v1675 = vpop.f32.mrb[0].mxu0
    %1676 = vdwg.mxu0
    %v1677 = vld [vmem:[%s575] sm:$0xff]
    %v1678 = vadd.f32 %v1677, %v1672
    %v1679 = vld [vmem:[%s572] sm:$0xff]
    %v1680 = vadd.f32 %v1679, %v1672
    %v1681 = vxor.u32 %v1678, 2147483648
    %v1682 = vmul.f32 %v1681, 1.442695
    %v1683 = vpow.pop %v1682
    %v1684 = vadd.f32 %v1683, 1.0
    %v1685 = vrcp.pop %v1684
    %v1686 = vmul.f32 1.0, %v1685
    %v1687 = vtanh.pop %v1678
    %v1688 = vmul.f32 %v1686, %v1589
    %1690 = vrot.lane.b32.xlu0 %v1687, 80
    %v1691 = vpop.permute.xlu0 %1690
    %v1693 = vmul.f32 %v1686, %v1691
    %1695 = vrot.lane.b32.xlu0 %v1693, 16
    %v1696 = vpop.permute.xlu0 %1695
    %v1698 = vadd.f32 %v1688, %v1696
    %v1699 = vtanh.pop %v1698
    %1701 = vrot.lane.b32.xlu0 %v1699, 16
    %v1702 = vpop.permute.xlu0 %1701
    %v1704 = vmul.f32 %v1686, %v1702
    %v1705 = vxor.u32 %v1680, 2147483648
    %v1706 = vmul.f32 %v1705, 1.442695
    %v1707 = vpow.pop %v1706
    %v1708 = vadd.f32 %v1707, 1.0
    %v1709 = vrcp.pop %v1708
    %v1710 = vmul.f32 1.0, %v1709
    %v1711 = vtanh.pop %v1680
    %v1712 = vmul.f32 %v1710, %v1613
    %1714 = vrot.lane.b32.xlu0 %v1711, 80
    %v1715 = vpop.permute.xlu0 %1714
    %v1717 = vmul.f32 %v1710, %v1715
    %1719 = vrot.lane.b32.xlu0 %v1717, 16
    %v1720 = vpop.permute.xlu0 %1719
    %v1722 = vadd.f32 %v1712, %v1720
    %v1723 = vtanh.pop %v1722
    %1725 = vrot.lane.b32.xlu0 %v1723, 16
    %v1726 = vpop.permute.xlu0 %1725
    %v1728 = vmul.f32 %v1710, %v1726
    %1730 = vrot.lane.b32.xlu0 %v1704, 96
    %v1731 = vpop.permute.xlu0 %1730
    %1733 = vst.msk [vmem:[%s1630] sm:$0xff] %vm296, %v1731
    %1735 = vrot.lane.b32.xlu0 %v1728, 48
    %v1736 = vpop.permute.xlu0 %1735
    %1738 = vst.msk [vmem:[%s1624] sm:$0xff] %vm303, %v1736
    %v1739 = vsel %vm296, %v1731, %v1736
    %v1740 = vpack.c.bf16 %v1739, %v1739
    %v1742 = vsel %vm93, %v1740, 0
    %1744 = vmatprep.subr.bf16.mxu0 0
    %1745 = vmatpush1.bf16.msra.mxu0 %v1198
    %1746 = vmatprep.subr.bf16.mxu0 0
    %1747 = vmatpush1.bf16.msra.mxu0 %v1199
    %1748 = vmatprep.subr.bf16.mxu0 0
    %1749 = vmatpush1.bf16.msra.mxu0 0
    %1750 = vmatprep.subr.bf16.mxu0 0
    %1751 = vmatpush1.bf16.msra.mxu0 0
    %1752 = vmatprep.subr.bf16.mxu0 0
    %1753 = vmatpush1.bf16.msra.mxu0 0
    %1754 = vmatprep.subr.bf16.mxu0 0
    %1755 = vmatpush1.bf16.msra.mxu0 0
    %1756 = vmatprep.subr.bf16.mxu0 0
    %1757 = vmatpush1.bf16.msra.mxu0 0
    %1758 = vmatprep.subr.bf16.mxu0 0
    %1759 = vmatpush1.bf16.msra.mxu0 0
    %1760 = vmatprep.subr.bf16.mxu0 0
    %1761 = vmatpush1.bf16.msra.mxu0 0
    %1762 = vmatprep.subr.bf16.mxu0 0
    %1763 = vmatpush1.bf16.msra.mxu0 0
    %1764 = vmatprep.subr.bf16.mxu0 0
    %1765 = vmatpush1.bf16.msra.mxu0 0
    %1766 = vmatprep.subr.bf16.mxu0 0
    %1767 = vmatpush1.bf16.msra.mxu0 0
    %1768 = vmatprep.subr.bf16.mxu0 0
    %1769 = vmatpush1.bf16.msra.mxu0 0
    %1770 = vmatprep.subr.bf16.mxu0 0
    %1771 = vmatpush1.bf16.msra.mxu0 0
    %1772 = vmatprep.subr.bf16.mxu0 0
    %1773 = vmatpush1.bf16.msra.mxu0 0
    %1774 = vmatprep.subr.bf16.mxu0 0
    %1775 = vmatpush1.bf16.msra.mxu0 0
    %1776 = vmatprep.mubr.bf16.mxu0 0
    %1777 = vmatmul.mubr.bf16.gmra.mrb[0].mxu0 %v1742
    %v1778 = vpop.f32.mrb[0].mxu0
    %v1779 = vadd.f32 0.0, %v1778
    %v1780 = vpop.f32.mrb[0].mxu0
    %v1781 = vpop.f32.mrb[0].mxu0
    %v1782 = vpop.f32.mrb[0].mxu0
    %1783 = vdwg.mxu0
    %v1784 = vld [vmem:[%s464] sm:$0xff]
    %v1785 = vadd.f32 %v1784, %v1779
    %v1786 = vld [vmem:[%s461] sm:$0xff]
    %v1787 = vadd.f32 %v1786, %v1779
    %v1788 = vxor.u32 %v1785, 2147483648
    %v1789 = vmul.f32 %v1788, 1.442695
    %v1790 = vpow.pop %v1789
    %v1791 = vadd.f32 %v1790, 1.0
    %v1792 = vrcp.pop %v1791
    %v1793 = vmul.f32 1.0, %v1792
    %v1794 = vtanh.pop %v1785
    %v1795 = vmul.f32 %v1793, %v1698
    %1797 = vrot.lane.b32.xlu0 %v1794, 80
    %v1798 = vpop.permute.xlu0 %1797
    %v1800 = vmul.f32 %v1793, %v1798
    %1802 = vrot.lane.b32.xlu0 %v1800, 16
    %v1803 = vpop.permute.xlu0 %1802
    %v1805 = vadd.f32 %v1795, %v1803
    %v1806 = vtanh.pop %v1805
    %1808 = vrot.lane.b32.xlu0 %v1806, 16
    %v1809 = vpop.permute.xlu0 %1808
    %v1811 = vmul.f32 %v1793, %v1809
    %v1812 = vxor.u32 %v1787, 2147483648
    %v1813 = vmul.f32 %v1812, 1.442695
    %v1814 = vpow.pop %v1813
    %v1815 = vadd.f32 %v1814, 1.0
    %v1816 = vrcp.pop %v1815
    %v1817 = vmul.f32 1.0, %v1816
    %v1818 = vtanh.pop %v1787
    %v1819 = vmul.f32 %v1817, %v1722
    %1821 = vrot.lane.b32.xlu0 %v1818, 80
    %v1822 = vpop.permute.xlu0 %1821
    %v1824 = vmul.f32 %v1817, %v1822
    %1826 = vrot.lane.b32.xlu0 %v1824, 16
    %v1827 = vpop.permute.xlu0 %1826
    %v1829 = vadd.f32 %v1819, %v1827
    %v1830 = vtanh.pop %v1829
    %1832 = vrot.lane.b32.xlu0 %v1830, 16
    %v1833 = vpop.permute.xlu0 %1832
    %v1835 = vmul.f32 %v1817, %v1833
    %1837 = vrot.lane.b32.xlu0 %v1811, 96
    %v1838 = vpop.permute.xlu0 %1837
    %1840 = vst.msk [vmem:[%s1521] sm:$0xff] %vm296, %v1838
    %1842 = vrot.lane.b32.xlu0 %v1835, 48
    %v1843 = vpop.permute.xlu0 %1842
    %1845 = vst.msk [vmem:[%s1515] sm:$0xff] %vm303, %v1843
    %v1846 = vsel %vm296, %v1838, %v1843
    %v1847 = vpack.c.bf16 %v1846, %v1846
    %v1849 = vsel %vm93, %v1847, 0
    %1851 = vmatprep.subr.bf16.mxu0 0
    %1852 = vmatpush1.bf16.msra.mxu0 %v1198
    %1853 = vmatprep.subr.bf16.mxu0 0
    %1854 = vmatpush1.bf16.msra.mxu0 %v1199
    %1855 = vmatprep.subr.bf16.mxu0 0
    %1856 = vmatpush1.bf16.msra.mxu0 0
    %1857 = vmatprep.subr.bf16.mxu0 0
    %1858 = vmatpush1.bf16.msra.mxu0 0
    %1859 = vmatprep.subr.bf16.mxu0 0
    %1860 = vmatpush1.bf16.msra.mxu0 0
    %1861 = vmatprep.subr.bf16.mxu0 0
    %1862 = vmatpush1.bf16.msra.mxu0 0
    %1863 = vmatprep.subr.bf16.mxu0 0
    %1864 = vmatpush1.bf16.msra.mxu0 0
    %1865 = vmatprep.subr.bf16.mxu0 0
    %1866 = vmatpush1.bf16.msra.mxu0 0
    %1867 = vmatprep.subr.bf16.mxu0 0
    %1868 = vmatpush1.bf16.msra.mxu0 0
    %1869 = vmatprep.subr.bf16.mxu0 0
    %1870 = vmatpush1.bf16.msra.mxu0 0
    %1871 = vmatprep.subr.bf16.mxu0 0
    %1872 = vmatpush1.bf16.msra.mxu0 0
    %1873 = vmatprep.subr.bf16.mxu0 0
    %1874 = vmatpush1.bf16.msra.mxu0 0
    %1875 = vmatprep.subr.bf16.mxu0 0
    %1876 = vmatpush1.bf16.msra.mxu0 0
    %1877 = vmatprep.subr.bf16.mxu0 0
    %1878 = vmatpush1.bf16.msra.mxu0 0
    %1879 = vmatprep.subr.bf16.mxu0 0
    %1880 = vmatpush1.bf16.msra.mxu0 0
    %1881 = vmatprep.subr.bf16.mxu0 0
    %1882 = vmatpush1.bf16.msra.mxu0 0
    %1883 = vmatprep.mubr.bf16.mxu0 0
    %1884 = vmatmul.mubr.bf16.gmra.mrb[0].mxu0 %v1849
    %v1885 = vpop.f32.mrb[0].mxu0
    %v1886 = vadd.f32 0.0, %v1885
    %v1887 = vpop.f32.mrb[0].mxu0
    %v1888 = vpop.f32.mrb[0].mxu0
    %v1889 = vpop.f32.mrb[0].mxu0
    %1890 = vdwg.mxu0
    %v1891 = vld [vmem:[%s353] sm:$0xff]
    %v1892 = vadd.f32 %v1891, %v1886
    %v1893 = vld [vmem:[%s350] sm:$0xff]
    %v1894 = vadd.f32 %v1893, %v1886
    %v1895 = vxor.u32 %v1892, 2147483648
    %v1896 = vmul.f32 %v1895, 1.442695
    %v1897 = vpow.pop %v1896
    %v1898 = vadd.f32 %v1897, 1.0
    %v1899 = vrcp.pop %v1898
    %v1900 = vmul.f32 1.0, %v1899
    %v1901 = vtanh.pop %v1892
    %v1902 = vmul.f32 %v1900, %v1805
    %1904 = vrot.lane.b32.xlu0 %v1901, 80
    %v1905 = vpop.permute.xlu0 %1904
    %v1907 = vmul.f32 %v1900, %v1905
    %1909 = vrot.lane.b32.xlu0 %v1907, 16
    %v1910 = vpop.permute.xlu0 %1909
    %v1912 = vadd.f32 %v1902, %v1910
    %v1913 = vtanh.pop %v1912
    %1915 = vrot.lane.b32.xlu0 %v1913, 16
    %v1916 = vpop.permute.xlu0 %1915
    %v1918 = vmul.f32 %v1900, %v1916
    %v1919 = vxor.u32 %v1894, 2147483648
    %v1920 = vmul.f32 %v1919, 1.442695
    %v1921 = vpow.pop %v1920
    %v1922 = vadd.f32 %v1921, 1.0
    %v1923 = vrcp.pop %v1922
    %v1924 = vmul.f32 1.0, %v1923
    %v1925 = vtanh.pop %v1894
    %v1926 = vmul.f32 %v1924, %v1829
    %1928 = vrot.lane.b32.xlu0 %v1925, 80
    %v1929 = vpop.permute.xlu0 %1928
    %v1931 = vmul.f32 %v1924, %v1929
    %1933 = vrot.lane.b32.xlu0 %v1931, 16
    %v1934 = vpop.permute.xlu0 %1933
    %v1936 = vadd.f32 %v1926, %v1934
    %v1937 = vtanh.pop %v1936
    %1939 = vrot.lane.b32.xlu0 %v1937, 16
    %v1940 = vpop.permute.xlu0 %1939
    %v1942 = vmul.f32 %v1924, %v1940
    %1944 = vrot.lane.b32.xlu0 %v1918, 96
    %v1945 = vpop.permute.xlu0 %1944
    %1947 = vst.msk [vmem:[%s1412] sm:$0xff] %vm296, %v1945
    %1949 = vrot.lane.b32.xlu0 %v1942, 48
    %v1950 = vpop.permute.xlu0 %1949
    %1952 = vst.msk [vmem:[%s1406] sm:$0xff] %vm303, %v1950
    %v1953 = vsel %vm296, %v1945, %v1950
    %v1954 = vpack.c.bf16 %v1953, %v1953
    %v1956 = vsel %vm93, %v1954, 0
    %1958 = vmatprep.subr.bf16.mxu0 0
    %1959 = vmatpush1.bf16.msra.mxu0 %v1198
    %1960 = vmatprep.subr.bf16.mxu0 0
    %1961 = vmatpush1.bf16.msra.mxu0 %v1199
    %1962 = vmatprep.subr.bf16.mxu0 0
    %1963 = vmatpush1.bf16.msra.mxu0 0
    %1964 = vmatprep.subr.bf16.mxu0 0
    %1965 = vmatpush1.bf16.msra.mxu0 0
    %1966 = vmatprep.subr.bf16.mxu0 0
    %1967 = vmatpush1.bf16.msra.mxu0 0
    %1968 = vmatprep.subr.bf16.mxu0 0
    %1969 = vmatpush1.bf16.msra.mxu0 0
    %1970 = vmatprep.subr.bf16.mxu0 0
    %1971 = vmatpush1.bf16.msra.mxu0 0
    %1972 = vmatprep.subr.bf16.mxu0 0
    %1973 = vmatpush1.bf16.msra.mxu0 0
    %1974 = vmatprep.subr.bf16.mxu0 0
    %1975 = vmatpush1.bf16.msra.mxu0 0
    %1976 = vmatprep.subr.bf16.mxu0 0
    %1977 = vmatpush1.bf16.msra.mxu0 0
    %1978 = vmatprep.subr.bf16.mxu0 0
    %1979 = vmatpush1.bf16.msra.mxu0 0
    %1980 = vmatprep.subr.bf16.mxu0 0
    %1981 = vmatpush1.bf16.msra.mxu0 0
    %1982 = vmatprep.subr.bf16.mxu0 0
    %1983 = vmatpush1.bf16.msra.mxu0 0
    %1984 = vmatprep.subr.bf16.mxu0 0
    %1985 = vmatpush1.bf16.msra.mxu0 0
    %1986 = vmatprep.subr.bf16.mxu0 0
    %1987 = vmatpush1.bf16.msra.mxu0 0
    %1988 = vmatprep.subr.bf16.mxu0 0
    %1989 = vmatpush1.bf16.msra.mxu0 0
    %1990 = vmatprep.mubr.bf16.mxu0 0
    %1991 = vmatmul.mubr.bf16.gmra.mrb[0].mxu0 %v1956
    %v1992 = vpop.f32.mrb[0].mxu0
    %v1993 = vadd.f32 0.0, %v1992
    %v1994 = vpop.f32.mrb[0].mxu0
    %v1995 = vpop.f32.mrb[0].mxu0
    %v1996 = vpop.f32.mrb[0].mxu0
    %1997 = vdwg.mxu0
    %v1998 = vld [vmem:[%s241] sm:$0xff]
    %v1999 = vadd.f32 %v1998, %v1993
    %v2000 = vld [vmem:[#allocation4] sm:$0xff]
    %v2001 = vadd.f32 %v2000, %v1993
    %v2002 = vxor.u32 %v1999, 2147483648
    %v2003 = vmul.f32 %v2002, 1.442695
    %v2004 = vpow.pop %v2003
    %v2005 = vadd.f32 %v2004, 1.0
    %v2006 = vrcp.pop %v2005
    %v2007 = vmul.f32 1.0, %v2006
    %v2008 = vtanh.pop %v1999
    %v2009 = vmul.f32 %v2007, %v1912
    %2011 = vrot.lane.b32.xlu0 %v2008, 80
    %v2012 = vpop.permute.xlu0 %2011
    %v2014 = vmul.f32 %v2007, %v2012
    %2016 = vrot.lane.b32.xlu0 %v2014, 16
    %v2017 = vpop.permute.xlu0 %2016
    %v2019 = vadd.f32 %v2009, %v2017
    %v2020 = vtanh.pop %v2019
    %2022 = vrot.lane.b32.xlu0 %v2020, 16
    %v2023 = vpop.permute.xlu0 %2022
    %v2025 = vmul.f32 %v2007, %v2023
    %v2026 = vxor.u32 %v2001, 2147483648
    %v2027 = vmul.f32 %v2026, 1.442695
    %v2028 = vpow.pop %v2027
    %v2029 = vadd.f32 %v2028, 1.0
    %v2030 = vrcp.pop %v2029
    %v2031 = vmul.f32 1.0, %v2030
    %v2032 = vtanh.pop %v2001
    %v2033 = vmul.f32 %v2031, %v1936
    %2035 = vrot.lane.b32.xlu0 %v2032, 80
    %v2036 = vpop.permute.xlu0 %2035
    %v2038 = vmul.f32 %v2031, %v2036
    %2040 = vrot.lane.b32.xlu0 %v2038, 16
    %v2041 = vpop.permute.xlu0 %2040
    %v2043 = vadd.f32 %v2033, %v2041
    %v2044 = vtanh.pop %v2043
    %2046 = vrot.lane.b32.xlu0 %v2044, 16
    %v2047 = vpop.permute.xlu0 %2046
    %v2049 = vmul.f32 %v2031, %v2047
    %2051 = vrot.lane.b32.xlu0 %v2025, 96
    %v2052 = vpop.permute.xlu0 %2051
    %2054 = vst.msk [vmem:[%s1303] sm:$0xff] %vm296, %v2052
    %2056 = vrot.lane.b32.xlu0 %v2049, 48
    %v2057 = vpop.permute.xlu0 %2056
    %2059 = vst.msk [vmem:[#allocation3] sm:$0xff] %vm303, %v2057
    %s2060 = sld [smem:[#allocation5]]
    %v2061 = vstv %s2060
    %v2062 = vmul.f32 %v2061, %v1066
    %v2063 = vmul.f32 %v2061, %v1067
    %v2064 = vmul.f32 %v2061, %v1068
    %v2065 = vmul.f32 %v2061, %v1069
    %v2066 = vmul.f32 %v2061, %v1070
    %v2067 = vmul.f32 %v2061, %v1071
    %v2068 = vmul.f32 %v2061, %v1072
    %v2069 = vmul.f32 %v2061, %v1073
    %s2070 = sld [smem:[#allocation5 + $0x1]]
    %v2071 = vld [vmem:[#allocation3] sm:$0xff]
    %v2072 = vld [vmem:[#allocation3 + $0x8] sm:$0xff]
    %v2073 = vld [vmem:[#allocation3 + $0x10] sm:$0xff]
    %v2074 = vld [vmem:[#allocation3 + $0x18] sm:$0xff]
    %v2075 = vld [vmem:[#allocation3 + $0x20] sm:$0xff]
    %v2076 = vld [vmem:[#allocation3 + $0x28] sm:$0xff]
    %v2077 = vld [vmem:[#allocation3 + $0x30] sm:$0xff]
    %v2078 = vld [vmem:[#allocation3 + $0x38] sm:$0xff]
    %v2079 = vstv %s2070
    %v2080 = vmul.f32 %v2079, %v2071
    %v2081 = vmul.f32 %v2079, %v2072
    %v2082 = vmul.f32 %v2079, %v2073
    %v2083 = vmul.f32 %v2079, %v2074
    %v2084 = vmul.f32 %v2079, %v2075
    %v2085 = vmul.f32 %v2079, %v2076
    %v2086 = vmul.f32 %v2079, %v2077
    %v2087 = vmul.f32 %v2079, %v2078
    %v2088 = vadd.f32 %v2062, %v2080
    %v2089 = vadd.f32 %v2063, %v2081
    %v2090 = vadd.f32 %v2064, %v2082
    %v2091 = vadd.f32 %v2065, %v2083
    %v2092 = vadd.f32 %v2066, %v2084
    %v2093 = vadd.f32 %v2067, %v2085
    %v2094 = vadd.f32 %v2068, %v2086
    %v2095 = vadd.f32 %v2069, %v2087
    %s2096 = sld [smem:[#allocation5 + $0x2]]
    %v2097 = vstv %s2096
    %v2098 = vmul.f32 %v2097, %v58
    %v2099 = vmul.f32 %v2097, %v59
    %v2100 = vmul.f32 %v2097, %v60
    %v2101 = vmul.f32 %v2097, %v61
    %v2102 = vmul.f32 %v2097, %v62
    %v2103 = vmul.f32 %v2097, %v63
    %v2104 = vmul.f32 %v2097, %v64
    %v2105 = vmul.f32 %v2097, %v65
    %v2106 = vadd.f32 %v2088, %v2098
    %v2107 = vadd.f32 %v2089, %v2099
    %v2108 = vadd.f32 %v2090, %v2100
    %v2109 = vadd.f32 %v2091, %v2101
    %v2110 = vadd.f32 %v2092, %v2102
    %v2111 = vadd.f32 %v2093, %v2103
    %v2112 = vadd.f32 %v2094, %v2104
    %v2113 = vadd.f32 %v2095, %v2105
    %v2114 = vpack.c.bf16 %v2107, %v2106
    %v2115 = vpack.c.bf16 %v2109, %v2108
    %v2116 = vpack.c.bf16 %v2111, %v2110
    %v2117 = vpack.c.bf16 %v2113, %v2112
    %v2118 = vld [vmem:[%s8] sm:$0xff]
    %v2119 = vld [vmem:[%s8 + $0x8] sm:$0xff]
    %v2120 = vld [vmem:[%s8 + $0x10] sm:$0xff]
    %v2121 = vld [vmem:[%s8 + $0x18] sm:$0xff]
    %v2122 = vld [vmem:[%s10] sm:$0x3]
    %v2124 = vlaneseq
    %v2125 = vshrl.u32 %v2124, 7
    %v2126 = vsub.s32 0, %v2125
    %v2127 = vrot.slane %v2122, %v2126
    %v2128 = vlaneseq
    %v2129 = vshrl.u32 %v2128, 7
    %v2130 = vsub.s32 1, %v2129
    %v2131 = vrot.slane %v2122, %v2130
    %v2138 = vunpack.c.l.b16 %v2118
    %v2139 = vunpack.c.h.b16 %v2118
    %v2140 = vunpack.c.l.b16 %v2119
    %v2141 = vunpack.c.h.b16 %v2119
    %v2142 = vunpack.c.l.b16 %v2120
    %v2143 = vunpack.c.h.b16 %v2120
    %v2144 = vunpack.c.l.b16 %v2121
    %v2145 = vunpack.c.h.b16 %v2121
    %v2146 = vpack.c.b16 %v2140, %v2138
    %v2147 = vpack.c.b16 %v2141, %v2139
    %v2148 = vpack.c.b16 %v2144, %v2142
    %v2149 = vpack.c.b16 %v2145, %v2143
    %v2155 = vsel %vm93, %v2114, 0
    %v2158 = vsel %vm93, %v2115, 0
    %v2161 = vsel %vm93, %v2116, 0
    %v2164 = vsel %vm93, %v2117, 0
    %2166 = vmatprep.subr.bf16.mxu0 %v2147
    %2167 = vmatpush1.bf16.msra.mxu0 %v2146
    %2168 = vmatprep.subr.bf16.mxu0 %v2149
    %2169 = vmatpush1.bf16.msra.mxu0 %v2148
    %2170 = vmatprep.subr.bf16.mxu0 0
    %2171 = vmatpush1.bf16.msra.mxu0 0
    %2172 = vmatprep.subr.bf16.mxu0 0
    %2173 = vmatpush1.bf16.msra.mxu0 0
    %2174 = vmatprep.subr.bf16.mxu0 0
    %2175 = vmatpush1.bf16.msra.mxu0 0
    %2176 = vmatprep.subr.bf16.mxu0 0
    %2177 = vmatpush1.bf16.msra.mxu0 0
    %2178 = vmatprep.subr.bf16.mxu0 0
    %2179 = vmatpush1.bf16.msra.mxu0 0
    %2180 = vmatprep.subr.bf16.mxu0 0
    %2181 = vmatpush1.bf16.msra.mxu0 0
    %2182 = vmatprep.subr.bf16.mxu0 0
    %2183 = vmatpush1.bf16.msra.mxu0 0
    %2184 = vmatprep.subr.bf16.mxu0 0
    %2185 = vmatpush1.bf16.msra.mxu0 0
    %2186 = vmatprep.subr.bf16.mxu0 0
    %2187 = vmatpush1.bf16.msra.mxu0 0
    %2188 = vmatprep.subr.bf16.mxu0 0
    %2189 = vmatpush1.bf16.msra.mxu0 0
    %2190 = vmatprep.subr.bf16.mxu0 0
    %2191 = vmatpush1.bf16.msra.mxu0 0
    %2192 = vmatprep.subr.bf16.mxu0 0
    %2193 = vmatpush1.bf16.msra.mxu0 0
    %2194 = vmatprep.subr.bf16.mxu0 0
    %2195 = vmatpush1.bf16.msra.mxu0 0
    %2196 = vmatprep.subr.bf16.mxu0 0
    %2197 = vmatpush1.bf16.msra.mxu0 0
    %2198 = vmatprep.mubr.bf16.mxu0 0
    %2199 = vmatmul.mubr.bf16.gmra.mrb[0].mxu0 %v2155
    %v2200 = vpop.f32.mrb[0].mxu0
    %v2201 = vadd.f32 %v2127, %v2200
    %v2202 = vpop.f32.mrb[0].mxu0
    %v2203 = vadd.f32 %v2131, %v2202
    %v2204 = vpop.f32.mrb[0].mxu0
    %v2205 = vadd.f32 %v2127, %v2204
    %v2206 = vpop.f32.mrb[0].mxu0
    %v2207 = vadd.f32 %v2131, %v2206
    %2208 = vmatprep.mubr.bf16.mxu0 0
    %2209 = vmatmul.mubr.bf16.gmra.mrb[0].mxu0 %v2158
    %v2210 = vpop.f32.mrb[0].mxu0
    %v2211 = vadd.f32 %v2127, %v2210
    %v2212 = vpop.f32.mrb[0].mxu0
    %v2213 = vadd.f32 %v2131, %v2212
    %v2214 = vpop.f32.mrb[0].mxu0
    %v2215 = vadd.f32 %v2127, %v2214
    %v2216 = vpop.f32.mrb[0].mxu0
    %v2217 = vadd.f32 %v2131, %v2216
    %2218 = vmatprep.mubr.bf16.mxu0 0
    %2219 = vmatmul.mubr.bf16.gmra.mrb[0].mxu0 %v2161
    %v2220 = vpop.f32.mrb[0].mxu0
    %v2221 = vadd.f32 %v2127, %v2220
    %v2222 = vpop.f32.mrb[0].mxu0
    %v2223 = vadd.f32 %v2131, %v2222
    %v2224 = vpop.f32.mrb[0].mxu0
    %v2225 = vadd.f32 %v2127, %v2224
    %v2226 = vpop.f32.mrb[0].mxu0
    %v2227 = vadd.f32 %v2131, %v2226
    %2228 = vmatprep.mubr.bf16.mxu0 0
    %2229 = vmatmul.mubr.bf16.gmra.mrb[0].mxu0 %v2164
    %v2230 = vpop.f32.mrb[0].mxu0
    %v2231 = vadd.f32 %v2127, %v2230
    %v2232 = vpop.f32.mrb[0].mxu0
    %v2233 = vadd.f32 %v2131, %v2232
    %v2234 = vpop.f32.mrb[0].mxu0
    %v2235 = vadd.f32 %v2127, %v2234
    %v2236 = vpop.f32.mrb[0].mxu0
    %v2237 = vadd.f32 %v2131, %v2236
    %2238 = vdwg.mxu0
    %2239 = vst [vmem:[#allocation4] sm:$0xff] %v2201
    %2240 = vst [vmem:[#allocation4 + $0x8] sm:$0xff] %v2203
    %2241 = vst [vmem:[#allocation4 + $0x10] sm:$0xff] %v2205
    %2242 = vst [vmem:[#allocation4 + $0x18] sm:$0xff] %v2207
    %2243 = vst [vmem:[#allocation4 + $0x20] sm:$0xff] %v2211
    %2244 = vst [vmem:[#allocation4 + $0x28] sm:$0xff] %v2213
    %2245 = vst [vmem:[#allocation4 + $0x30] sm:$0xff] %v2215
    %2246 = vst [vmem:[#allocation4 + $0x38] sm:$0xff] %v2217
    %2247 = vst [vmem:[#allocation4 + $0x40] sm:$0xff] %v2221
    %2248 = vst [vmem:[#allocation4 + $0x48] sm:$0xff] %v2223
    %2249 = vst [vmem:[#allocation4 + $0x50] sm:$0xff] %v2225
    %2250 = vst [vmem:[#allocation4 + $0x58] sm:$0xff] %v2227
    %2251 = vst [vmem:[#allocation4 + $0x60] sm:$0xff] %v2231
    %2252 = vst [vmem:[#allocation4 + $0x68] sm:$0xff] %v2233
    %2253 = vst [vmem:[#allocation4 + $0x70] sm:$0xff] %v2235
    %2254 = vst [vmem:[#allocation4 + $0x78] sm:$0xff] %v2237
    %v2255 = vld [vmem:[%s9] sm:$0xff]
    %v2256 = vld [vmem:[%s9 + $0x8] sm:$0xff]
    %v2257 = vld [vmem:[%s9 + $0x10] sm:$0xff]
    %v2258 = vld [vmem:[%s9 + $0x18] sm:$0xff]
    %v2259 = vld [vmem:[%s9 + $0x20] sm:$0xff]
    %v2260 = vld [vmem:[%s9 + $0x28] sm:$0xff]
    %v2261 = vld [vmem:[%s9 + $0x30] sm:$0xff]
    %v2262 = vld [vmem:[%s9 + $0x38] sm:$0xff]
    %v2263 = vld [vmem:[#allocation4] sm:$0xff]
    %v2264 = vld [vmem:[#allocation4 + $0x8] sm:$0xff]
    %v2273 = vunpack.c.l.b16 %v2255
    %v2274 = vunpack.c.h.b16 %v2255
    %v2275 = vunpack.c.l.b16 %v2256
    %v2276 = vunpack.c.h.b16 %v2256
    %v2277 = vunpack.c.l.b16 %v2257
    %v2278 = vunpack.c.h.b16 %v2257
    %v2279 = vunpack.c.l.b16 %v2258
    %v2280 = vunpack.c.h.b16 %v2258
    %v2281 = vunpack.c.l.b16 %v2259
    %v2282 = vunpack.c.h.b16 %v2259
    %v2283 = vunpack.c.l.b16 %v2260
    %v2284 = vunpack.c.h.b16 %v2260
    %v2285 = vunpack.c.l.b16 %v2261
    %v2286 = vunpack.c.h.b16 %v2261
    %v2287 = vunpack.c.l.b16 %v2262
    %v2288 = vunpack.c.h.b16 %v2262
    %v2289 = vpack.c.b16 %v2275, %v2273
    %v2290 = vpack.c.b16 %v2276, %v2274
    %v2291 = vpack.c.b16 %v2279, %v2277
    %v2292 = vpack.c.b16 %v2280, %v2278
    %v2293 = vpack.c.b16 %v2283, %v2281
    %v2294 = vpack.c.b16 %v2284, %v2282
    %v2295 = vpack.c.b16 %v2287, %v2285
    %v2296 = vpack.c.b16 %v2288, %v2286
    %vm2305 = vcmask 523264
    %v2307 = vsel %vm2305, 0, 0
    %2309 = vmatprep.subr.bf16.mxu0 %v2290
    %2310 = vmatpush1.bf16.msra.mxu0 %v2289
    %2311 = vmatprep.subr.bf16.mxu0 %v2292
    %2312 = vmatpush1.bf16.msra.mxu0 %v2291
    %2313 = vmatprep.subr.bf16.mxu0 %v2294
    %2314 = vmatpush1.bf16.msra.mxu0 %v2293
    %2315 = vmatprep.subr.bf16.mxu0 %v2296
    %2316 = vmatpush1.bf16.msra.mxu0 %v2295
    %2317 = vmatprep.subr.bf16.mxu0 0
    %2318 = vmatpush1.bf16.msra.mxu0 0
    %2319 = vmatprep.subr.bf16.mxu0 0
    %2320 = vmatpush1.bf16.msra.mxu0 0
    %2321 = vmatprep.subr.bf16.mxu0 0
    %2322 = vmatpush1.bf16.msra.mxu0 0
    %2323 = vmatprep.subr.bf16.mxu0 0
    %2324 = vmatpush1.bf16.msra.mxu0 0
    %2325 = vmatprep.subr.bf16.mxu0 0
    %2326 = vmatpush1.bf16.msra.mxu0 0
    %2327 = vmatprep.subr.bf16.mxu0 0
    %2328 = vmatpush1.bf16.msra.mxu0 0
    %2329 = vmatprep.subr.bf16.mxu0 0
    %2330 = vmatpush1.bf16.msra.mxu0 0
    %2331 = vmatprep.subr.bf16.mxu0 0
    %2332 = vmatpush1.bf16.msra.mxu0 0
    %2333 = vmatprep.subr.bf16.mxu0 0
    %2334 = vmatpush1.bf16.msra.mxu0 0
    %2335 = vmatprep.subr.bf16.mxu0 0
    %2336 = vmatpush1.bf16.msra.mxu0 0
    %2337 = vmatprep.subr.bf16.mxu0 0
    %2338 = vmatpush1.bf16.msra.mxu0 0
    %2339 = vmatprep.subr.bf16.mxu0 0
    %2340 = vmatpush1.bf16.msra.mxu0 0
    %2341 = vmatprep.mubr.bf16.mxu0 0
    %2342 = vmatmul.mubr.bf16.gmra.mrb[0].mxu0 %v2307
    %v2343 = vpop.f32.mrb[0].mxu0
    %v2344 = vadd.f32 0.0, %v2343
    %v2345 = vpop.f32.mrb[0].mxu0
    %v2346 = vadd.f32 0.0, %v2345
    %v2347 = vpop.f32.mrb[0].mxu0
    %v2348 = vpop.f32.mrb[0].mxu0
    %2349 = vdwg.mxu0
    %v2350 = vadd.f32 %v2263, %v2344
    %v2351 = vadd.f32 %v2264, %v2346
    %v2352 = vxor.u32 %v2350, 2147483648
    %v2353 = vxor.u32 %v2351, 2147483648
    %v2354 = vmul.f32 %v2352, 1.442695
    %v2355 = vpow.pop %v2354
    %v2356 = vmul.f32 %v2353, 1.442695
    %v2357 = vpow.pop %v2356
    %v2358 = vadd.f32 %v2355, 1.0
    %v2359 = vadd.f32 %v2357, 1.0
    %v2360 = vrcp.pop %v2358
    %v2361 = vmul.f32 1.0, %v2360
    %v2362 = vrcp.pop %v2359
    %v2363 = vmul.f32 1.0, %v2362
    %v2364 = vtanh.pop %v2351
    %v2365 = vmul.f32 %v2361, 0.0
    %2367 = vrot.lane.b32.xlu0 %v2364, 64
    %v2368 = vpop.permute.xlu0 %2367
    %v2370 = vmul.f32 %v2361, %v2368
    %2372 = vrot.lane.b32.xlu0 %v2370, 64
    %v2373 = vpop.permute.xlu0 %2372
    %v2375 = vadd.f32 %v2365, %v2373
    %v2376 = vtanh.pop %v2375
    %2378 = vrot.lane.b32.xlu0 %v2376, 64
    %v2379 = vpop.permute.xlu0 %2378
    %v2381 = vmul.f32 %v2363, %v2379
    %v2382 = vld [vmem:[%s350] sm:$0xff]
    %v2383 = vld [vmem:[%s350 + $0x8] sm:$0xff]
    %v2384 = vpack.c.bf16 %v2381, %v2381
    %v2386 = vsel %vm2305, %v2384, 0
    %2388 = vmatprep.subr.bf16.mxu0 %v2290
    %2389 = vmatpush1.bf16.msra.mxu0 %v2289
    %2390 = vmatprep.subr.bf16.mxu0 %v2292
    %2391 = vmatpush1.bf16.msra.mxu0 %v2291
    %2392 = vmatprep.subr.bf16.mxu0 %v2294
    %2393 = vmatpush1.bf16.msra.mxu0 %v2293
    %2394 = vmatprep.subr.bf16.mxu0 %v2296
    %2395 = vmatpush1.bf16.msra.mxu0 %v2295
    %2396 = vmatprep.subr.bf16.mxu0 0
    %2397 = vmatpush1.bf16.msra.mxu0 0
    %2398 = vmatprep.subr.bf16.mxu0 0
    %2399 = vmatpush1.bf16.msra.mxu0 0
    %2400 = vmatprep.subr.bf16.mxu0 0
    %2401 = vmatpush1.bf16.msra.mxu0 0
    %2402 = vmatprep.subr.bf16.mxu0 0
    %2403 = vmatpush1.bf16.msra.mxu0 0
    %2404 = vmatprep.subr.bf16.mxu0 0
    %2405 = vmatpush1.bf16.msra.mxu0 0
    %2406 = vmatprep.subr.bf16.mxu0 0
    %2407 = vmatpush1.bf16.msra.mxu0 0
    %2408 = vmatprep.subr.bf16.mxu0 0
    %2409 = vmatpush1.bf16.msra.mxu0 0
    %2410 = vmatprep.subr.bf16.mxu0 0
    %2411 = vmatpush1.bf16.msra.mxu0 0
    %2412 = vmatprep.subr.bf16.mxu0 0
    %2413 = vmatpush1.bf16.msra.mxu0 0
    %2414 = vmatprep.subr.bf16.mxu0 0
    %2415 = vmatpush1.bf16.msra.mxu0 0
    %2416 = vmatprep.subr.bf16.mxu0 0
    %2417 = vmatpush1.bf16.msra.mxu0 0
    %2418 = vmatprep.subr.bf16.mxu0 0
    %2419 = vmatpush1.bf16.msra.mxu0 0
    %2420 = vmatprep.mubr.bf16.mxu0 0
    %2421 = vmatmul.mubr.bf16.gmra.mrb[0].mxu0 %v2386
    %v2422 = vpop.f32.mrb[0].mxu0
    %v2423 = vadd.f32 0.0, %v2422
    %v2424 = vpop.f32.mrb[0].mxu0
    %v2425 = vadd.f32 0.0, %v2424
    %v2426 = vpop.f32.mrb[0].mxu0
    %v2427 = vpop.f32.mrb[0].mxu0
    %2428 = vdwg.mxu0
    %v2429 = vadd.f32 %v2382, %v2423
    %v2430 = vadd.f32 %v2383, %v2425
    %v2431 = vxor.u32 %v2429, 2147483648
    %v2432 = vxor.u32 %v2430, 2147483648
    %v2433 = vmul.f32 %v2431, 1.442695
    %v2434 = vpow.pop %v2433
    %v2435 = vmul.f32 %v2432, 1.442695
    %v2436 = vpow.pop %v2435
    %v2437 = vadd.f32 %v2434, 1.0
    %v2438 = vadd.f32 %v2436, 1.0
    %v2439 = vrcp.pop %v2437
    %v2440 = vmul.f32 1.0, %v2439
    %v2441 = vrcp.pop %v2438
    %v2442 = vmul.f32 1.0, %v2441
    %v2443 = vtanh.pop %v2430
    %v2444 = vmul.f32 %v2440, %v2375
    %2446 = vrot.lane.b32.xlu0 %v2443, 64
    %v2447 = vpop.permute.xlu0 %2446
    %v2449 = vmul.f32 %v2440, %v2447
    %2451 = vrot.lane.b32.xlu0 %v2449, 64
    %v2452 = vpop.permute.xlu0 %2451
    %v2454 = vadd.f32 %v2444, %v2452
    %v2455 = vtanh.pop %v2454
    %2457 = vrot.lane.b32.xlu0 %v2455, 64
    %v2458 = vpop.permute.xlu0 %2457
    %v2460 = vmul.f32 %v2442, %v2458
    %v2461 = vld [vmem:[%s461] sm:$0xff]
    %v2462 = vld [vmem:[%s461 + $0x8] sm:$0xff]
    %v2463 = vpack.c.bf16 %v2460, %v2460
    %v2465 = vsel %vm2305, %v2463, 0
    %2467 = vmatprep.subr.bf16.mxu0 %v2290
    %2468 = vmatpush1.bf16.msra.mxu0 %v2289
    %2469 = vmatprep.subr.bf16.mxu0 %v2292
    %2470 = vmatpush1.bf16.msra.mxu0 %v2291
    %2471 = vmatprep.subr.bf16.mxu0 %v2294
    %2472 = vmatpush1.bf16.msra.mxu0 %v2293
    %2473 = vmatprep.subr.bf16.mxu0 %v2296
    %2474 = vmatpush1.bf16.msra.mxu0 %v2295
    %2475 = vmatprep.subr.bf16.mxu0 0
    %2476 = vmatpush1.bf16.msra.mxu0 0
    %2477 = vmatprep.subr.bf16.mxu0 0
    %2478 = vmatpush1.bf16.msra.mxu0 0
    %2479 = vmatprep.subr.bf16.mxu0 0
    %2480 = vmatpush1.bf16.msra.mxu0 0
    %2481 = vmatprep.subr.bf16.mxu0 0
    %2482 = vmatpush1.bf16.msra.mxu0 0
    %2483 = vmatprep.subr.bf16.mxu0 0
    %2484 = vmatpush1.bf16.msra.mxu0 0
    %2485 = vmatprep.subr.bf16.mxu0 0
    %2486 = vmatpush1.bf16.msra.mxu0 0
    %2487 = vmatprep.subr.bf16.mxu0 0
    %2488 = vmatpush1.bf16.msra.mxu0 0
    %2489 = vmatprep.subr.bf16.mxu0 0
    %2490 = vmatpush1.bf16.msra.mxu0 0
    %2491 = vmatprep.subr.bf16.mxu0 0
    %2492 = vmatpush1.bf16.msra.mxu0 0
    %2493 = vmatprep.subr.bf16.mxu0 0
    %2494 = vmatpush1.bf16.msra.mxu0 0
    %2495 = vmatprep.subr.bf16.mxu0 0
    %2496 = vmatpush1.bf16.msra.mxu0 0
    %2497 = vmatprep.subr.bf16.mxu0 0
    %2498 = vmatpush1.bf16.msra.mxu0 0
    %2499 = vmatprep.mubr.bf16.mxu0 0
    %2500 = vmatmul.mubr.bf16.gmra.mrb[0].mxu0 %v2465
    %v2501 = vpop.f32.mrb[0].mxu0
    %v2502 = vadd.f32 0.0, %v2501
    %v2503 = vpop.f32.mrb[0].mxu0
    %v2504 = vadd.f32 0.0, %v2503
    %v2505 = vpop.f32.mrb[0].mxu0
    %v2506 = vpop.f32.mrb[0].mxu0
    %2507 = vdwg.mxu0
    %v2508 = vadd.f32 %v2461, %v2502
    %v2509 = vadd.f32 %v2462, %v2504
    %v2510 = vxor.u32 %v2508, 2147483648
    %v2511 = vxor.u32 %v2509, 2147483648
    %v2512 = vmul.f32 %v2510, 1.442695
    %v2513 = vpow.pop %v2512
    %v2514 = vmul.f32 %v2511, 1.442695
    %v2515 = vpow.pop %v2514
    %v2516 = vadd.f32 %v2513, 1.0
    %v2517 = vadd.f32 %v2515, 1.0
    %v2518 = vrcp.pop %v2516
    %v2519 = vmul.f32 1.0, %v2518
    %v2520 = vrcp.pop %v2517
    %v2521 = vmul.f32 1.0, %v2520
    %v2522 = vtanh.pop %v2509
    %v2523 = vmul.f32 %v2519, %v2454
    %2525 = vrot.lane.b32.xlu0 %v2522, 64
    %v2526 = vpop.permute.xlu0 %2525
    %v2528 = vmul.f32 %v2519, %v2526
    %2530 = vrot.lane.b32.xlu0 %v2528, 64
    %v2531 = vpop.permute.xlu0 %2530
    %v2533 = vadd.f32 %v2523, %v2531
    %v2534 = vtanh.pop %v2533
    %2536 = vrot.lane.b32.xlu0 %v2534, 64
    %v2537 = vpop.permute.xlu0 %2536
    %v2539 = vmul.f32 %v2521, %v2537
    %v2540 = vld [vmem:[%s572] sm:$0xff]
    %v2541 = vld [vmem:[%s572 + $0x8] sm:$0xff]
    %v2542 = vpack.c.bf16 %v2539, %v2539
    %v2544 = vsel %vm2305, %v2542, 0
    %2546 = vmatprep.subr.bf16.mxu0 %v2290
    %2547 = vmatpush1.bf16.msra.mxu0 %v2289
    %2548 = vmatprep.subr.bf16.mxu0 %v2292
    %2549 = vmatpush1.bf16.msra.mxu0 %v2291
    %2550 = vmatprep.subr.bf16.mxu0 %v2294
    %2551 = vmatpush1.bf16.msra.mxu0 %v2293
    %2552 = vmatprep.subr.bf16.mxu0 %v2296
    %2553 = vmatpush1.bf16.msra.mxu0 %v2295
    %2554 = vmatprep.subr.bf16.mxu0 0
    %2555 = vmatpush1.bf16.msra.mxu0 0
    %2556 = vmatprep.subr.bf16.mxu0 0
    %2557 = vmatpush1.bf16.msra.mxu0 0
    %2558 = vmatprep.subr.bf16.mxu0 0
    %2559 = vmatpush1.bf16.msra.mxu0 0
    %2560 = vmatprep.subr.bf16.mxu0 0
    %2561 = vmatpush1.bf16.msra.mxu0 0
    %2562 = vmatprep.subr.bf16.mxu0 0
    %2563 = vmatpush1.bf16.msra.mxu0 0
    %2564 = vmatprep.subr.bf16.mxu0 0
    %2565 = vmatpush1.bf16.msra.mxu0 0
    %2566 = vmatprep.subr.bf16.mxu0 0
    %2567 = vmatpush1.bf16.msra.mxu0 0
    %2568 = vmatprep.subr.bf16.mxu0 0
    %2569 = vmatpush1.bf16.msra.mxu0 0
    %2570 = vmatprep.subr.bf16.mxu0 0
    %2571 = vmatpush1.bf16.msra.mxu0 0
    %2572 = vmatprep.subr.bf16.mxu0 0
    %2573 = vmatpush1.bf16.msra.mxu0 0
    %2574 = vmatprep.subr.bf16.mxu0 0
    %2575 = vmatpush1.bf16.msra.mxu0 0
    %2576 = vmatprep.subr.bf16.mxu0 0
    %2577 = vmatpush1.bf16.msra.mxu0 0
    %2578 = vmatprep.mubr.bf16.mxu0 0
    %2579 = vmatmul.mubr.bf16.gmra.mrb[0].mxu0 %v2544
    %v2580 = vpop.f32.mrb[0].mxu0
    %v2581 = vadd.f32 0.0, %v2580
    %v2582 = vpop.f32.mrb[0].mxu0
    %v2583 = vadd.f32 0.0, %v2582
    %v2584 = vpop.f32.mrb[0].mxu0
    %v2585 = vpop.f32.mrb[0].mxu0
    %2586 = vdwg.mxu0
    %v2587 = vadd.f32 %v2540, %v2581
    %v2588 = vadd.f32 %v2541, %v2583
    %v2589 = vxor.u32 %v2587, 2147483648
    %v2590 = vxor.u32 %v2588, 2147483648
    %v2591 = vmul.f32 %v2589, 1.442695
    %v2592 = vpow.pop %v2591
    %v2593 = vmul.f32 %v2590, 1.442695
    %v2594 = vpow.pop %v2593
    %v2595 = vadd.f32 %v2592, 1.0
    %v2596 = vadd.f32 %v2594, 1.0
    %v2597 = vrcp.pop %v2595
    %v2598 = vmul.f32 1.0, %v2597
    %v2599 = vrcp.pop %v2596
    %v2600 = vmul.f32 1.0, %v2599
    %v2601 = vtanh.pop %v2588
    %v2602 = vmul.f32 %v2598, %v2533
    %2604 = vrot.lane.b32.xlu0 %v2601, 64
    %v2605 = vpop.permute.xlu0 %2604
    %v2607 = vmul.f32 %v2598, %v2605
    %2609 = vrot.lane.b32.xlu0 %v2607, 64
    %v2610 = vpop.permute.xlu0 %2609
    %v2612 = vadd.f32 %v2602, %v2610
    %v2613 = vtanh.pop %v2612
    %2615 = vrot.lane.b32.xlu0 %v2613, 64
    %v2616 = vpop.permute.xlu0 %2615
    %v2618 = vmul.f32 %v2600, %v2616
    %v2619 = vld [vmem:[%s575] sm:$0xff]
    %v2620 = vld [vmem:[%s575 + $0x8] sm:$0xff]
    %v2621 = vpack.c.bf16 %v2618, %v2618
    %v2623 = vsel %vm2305, %v2621, 0
    %2625 = vmatprep.subr.bf16.mxu0 %v2290
    %2626 = vmatpush1.bf16.msra.mxu0 %v2289
    %2627 = vmatprep.subr.bf16.mxu0 %v2292
    %2628 = vmatpush1.bf16.msra.mxu0 %v2291
    %2629 = vmatprep.subr.bf16.mxu0 %v2294
    %2630 = vmatpush1.bf16.msra.mxu0 %v2293
    %2631 = vmatprep.subr.bf16.mxu0 %v2296
    %2632 = vmatpush1.bf16.msra.mxu0 %v2295
    %2633 = vmatprep.subr.bf16.mxu0 0
    %2634 = vmatpush1.bf16.msra.mxu0 0
    %2635 = vmatprep.subr.bf16.mxu0 0
    %2636 = vmatpush1.bf16.msra.mxu0 0
    %2637 = vmatprep.subr.bf16.mxu0 0
    %2638 = vmatpush1.bf16.msra.mxu0 0
    %2639 = vmatprep.subr.bf16.mxu0 0
    %2640 = vmatpush1.bf16.msra.mxu0 0
    %2641 = vmatprep.subr.bf16.mxu0 0
    %2642 = vmatpush1.bf16.msra.mxu0 0
    %2643 = vmatprep.subr.bf16.mxu0 0
    %2644 = vmatpush1.bf16.msra.mxu0 0
    %2645 = vmatprep.subr.bf16.mxu0 0
    %2646 = vmatpush1.bf16.msra.mxu0 0
    %2647 = vmatprep.subr.bf16.mxu0 0
    %2648 = vmatpush1.bf16.msra.mxu0 0
    %2649 = vmatprep.subr.bf16.mxu0 0
    %2650 = vmatpush1.bf16.msra.mxu0 0
    %2651 = vmatprep.subr.bf16.mxu0 0
    %2652 = vmatpush1.bf16.msra.mxu0 0
    %2653 = vmatprep.subr.bf16.mxu0 0
    %2654 = vmatpush1.bf16.msra.mxu0 0
    %2655 = vmatprep.subr.bf16.mxu0 0
    %2656 = vmatpush1.bf16.msra.mxu0 0
    %2657 = vmatprep.mubr.bf16.mxu0 0
    %2658 = vmatmul.mubr.bf16.gmra.mrb[0].mxu0 %v2623
    %v2659 = vpop.f32.mrb[0].mxu0
    %v2660 = vadd.f32 0.0, %v2659
    %v2661 = vpop.f32.mrb[0].mxu0
    %v2662 = vadd.f32 0.0, %v2661
    %v2663 = vpop.f32.mrb[0].mxu0
    %v2664 = vpop.f32.mrb[0].mxu0
    %2665 = vdwg.mxu0
    %v2666 = vadd.f32 %v2619, %v2660
    %v2667 = vadd.f32 %v2620, %v2662
    %v2668 = vxor.u32 %v2666, 2147483648
    %v2669 = vxor.u32 %v2667, 2147483648
    %v2670 = vmul.f32 %v2668, 1.442695
    %v2671 = vpow.pop %v2670
    %v2672 = vmul.f32 %v2669, 1.442695
    %v2673 = vpow.pop %v2672
    %v2674 = vadd.f32 %v2671, 1.0
    %v2675 = vadd.f32 %v2673, 1.0
    %v2676 = vrcp.pop %v2674
    %v2677 = vmul.f32 1.0, %v2676
    %v2678 = vrcp.pop %v2675
    %v2679 = vmul.f32 1.0, %v2678
    %v2680 = vtanh.pop %v2667
    %v2681 = vmul.f32 %v2677, %v2612
    %2683 = vrot.lane.b32.xlu0 %v2680, 64
    %v2684 = vpop.permute.xlu0 %2683
    %v2686 = vmul.f32 %v2677, %v2684
    %2688 = vrot.lane.b32.xlu0 %v2686, 64
    %v2689 = vpop.permute.xlu0 %2688
    %v2691 = vadd.f32 %v2681, %v2689
    %v2692 = vtanh.pop %v2691
    %2694 = vrot.lane.b32.xlu0 %v2692, 64
    %v2695 = vpop.permute.xlu0 %2694
    %v2697 = vmul.f32 %v2679, %v2695
    %v2698 = vld [vmem:[%s464] sm:$0xff]
    %v2699 = vld [vmem:[%s464 + $0x8] sm:$0xff]
    %v2700 = vpack.c.bf16 %v2697, %v2697
    %v2702 = vsel %vm2305, %v2700, 0
    %2704 = vmatprep.subr.bf16.mxu0 %v2290
    %2705 = vmatpush1.bf16.msra.mxu0 %v2289
    %2706 = vmatprep.subr.bf16.mxu0 %v2292
    %2707 = vmatpush1.bf16.msra.mxu0 %v2291
    %2708 = vmatprep.subr.bf16.mxu0 %v2294
    %2709 = vmatpush1.bf16.msra.mxu0 %v2293
    %2710 = vmatprep.subr.bf16.mxu0 %v2296
    %2711 = vmatpush1.bf16.msra.mxu0 %v2295
    %2712 = vmatprep.subr.bf16.mxu0 0
    %2713 = vmatpush1.bf16.msra.mxu0 0
    %2714 = vmatprep.subr.bf16.mxu0 0
    %2715 = vmatpush1.bf16.msra.mxu0 0
    %2716 = vmatprep.subr.bf16.mxu0 0
    %2717 = vmatpush1.bf16.msra.mxu0 0
    %2718 = vmatprep.subr.bf16.mxu0 0
    %2719 = vmatpush1.bf16.msra.mxu0 0
    %2720 = vmatprep.subr.bf16.mxu0 0
    %2721 = vmatpush1.bf16.msra.mxu0 0
    %2722 = vmatprep.subr.bf16.mxu0 0
    %2723 = vmatpush1.bf16.msra.mxu0 0
    %2724 = vmatprep.subr.bf16.mxu0 0
    %2725 = vmatpush1.bf16.msra.mxu0 0
    %2726 = vmatprep.subr.bf16.mxu0 0
    %2727 = vmatpush1.bf16.msra.mxu0 0
    %2728 = vmatprep.subr.bf16.mxu0 0
    %2729 = vmatpush1.bf16.msra.mxu0 0
    %2730 = vmatprep.subr.bf16.mxu0 0
    %2731 = vmatpush1.bf16.msra.mxu0 0
    %2732 = vmatprep.subr.bf16.mxu0 0
    %2733 = vmatpush1.bf16.msra.mxu0 0
    %2734 = vmatprep.subr.bf16.mxu0 0
    %2735 = vmatpush1.bf16.msra.mxu0 0
    %2736 = vmatprep.mubr.bf16.mxu0 0
    %2737 = vmatmul.mubr.bf16.gmra.mrb[0].mxu0 %v2702
    %v2738 = vpop.f32.mrb[0].mxu0
    %v2739 = vadd.f32 0.0, %v2738
    %v2740 = vpop.f32.mrb[0].mxu0
    %v2741 = vadd.f32 0.0, %v2740
    %v2742 = vpop.f32.mrb[0].mxu0
    %v2743 = vpop.f32.mrb[0].mxu0
    %2744 = vdwg.mxu0
    %v2745 = vadd.f32 %v2698, %v2739
    %v2746 = vadd.f32 %v2699, %v2741
    %v2747 = vxor.u32 %v2745, 2147483648
    %v2748 = vxor.u32 %v2746, 2147483648
    %v2749 = vmul.f32 %v2747, 1.442695
    %v2750 = vpow.pop %v2749
    %v2751 = vmul.f32 %v2748, 1.442695
    %v2752 = vpow.pop %v2751
    %v2753 = vadd.f32 %v2750, 1.0
    %v2754 = vadd.f32 %v2752, 1.0
    %v2755 = vrcp.pop %v2753
    %v2756 = vmul.f32 1.0, %v2755
    %v2757 = vrcp.pop %v2754
    %v2758 = vmul.f32 1.0, %v2757
    %v2759 = vtanh.pop %v2746
    %v2760 = vmul.f32 %v2756, %v2691
    %2762 = vrot.lane.b32.xlu0 %v2759, 64
    %v2763 = vpop.permute.xlu0 %2762
    %v2765 = vmul.f32 %v2756, %v2763
    %2767 = vrot.lane.b32.xlu0 %v2765, 64
    %v2768 = vpop.permute.xlu0 %2767
    %v2770 = vadd.f32 %v2760, %v2768
    %v2771 = vtanh.pop %v2770
    %2773 = vrot.lane.b32.xlu0 %v2771, 64
    %v2774 = vpop.permute.xlu0 %2773
    %v2776 = vmul.f32 %v2758, %v2774
    %v2777 = vld [vmem:[%s353] sm:$0xff]
    %v2778 = vld [vmem:[%s353 + $0x8] sm:$0xff]
    %v2779 = vpack.c.bf16 %v2776, %v2776
    %v2781 = vsel %vm2305, %v2779, 0
    %2783 = vmatprep.subr.bf16.mxu0 %v2290
    %2784 = vmatpush1.bf16.msra.mxu0 %v2289
    %2785 = vmatprep.subr.bf16.mxu0 %v2292
    %2786 = vmatpush1.bf16.msra.mxu0 %v2291
    %2787 = vmatprep.subr.bf16.mxu0 %v2294
    %2788 = vmatpush1.bf16.msra.mxu0 %v2293
    %2789 = vmatprep.subr.bf16.mxu0 %v2296
    %2790 = vmatpush1.bf16.msra.mxu0 %v2295
    %2791 = vmatprep.subr.bf16.mxu0 0
    %2792 = vmatpush1.bf16.msra.mxu0 0
    %2793 = vmatprep.subr.bf16.mxu0 0
    %2794 = vmatpush1.bf16.msra.mxu0 0
    %2795 = vmatprep.subr.bf16.mxu0 0
    %2796 = vmatpush1.bf16.msra.mxu0 0
    %2797 = vmatprep.subr.bf16.mxu0 0
    %2798 = vmatpush1.bf16.msra.mxu0 0
    %2799 = vmatprep.subr.bf16.mxu0 0
    %2800 = vmatpush1.bf16.msra.mxu0 0
    %2801 = vmatprep.subr.bf16.mxu0 0
    %2802 = vmatpush1.bf16.msra.mxu0 0
    %2803 = vmatprep.subr.bf16.mxu0 0
    %2804 = vmatpush1.bf16.msra.mxu0 0
    %2805 = vmatprep.subr.bf16.mxu0 0
    %2806 = vmatpush1.bf16.msra.mxu0 0
    %2807 = vmatprep.subr.bf16.mxu0 0
    %2808 = vmatpush1.bf16.msra.mxu0 0
    %2809 = vmatprep.subr.bf16.mxu0 0
    %2810 = vmatpush1.bf16.msra.mxu0 0
    %2811 = vmatprep.subr.bf16.mxu0 0
    %2812 = vmatpush1.bf16.msra.mxu0 0
    %2813 = vmatprep.subr.bf16.mxu0 0
    %2814 = vmatpush1.bf16.msra.mxu0 0
    %2815 = vmatprep.mubr.bf16.mxu0 0
    %2816 = vmatmul.mubr.bf16.gmra.mrb[0].mxu0 %v2781
    %v2817 = vpop.f32.mrb[0].mxu0
    %v2818 = vadd.f32 0.0, %v2817
    %v2819 = vpop.f32.mrb[0].mxu0
    %v2820 = vadd.f32 0.0, %v2819
    %v2821 = vpop.f32.mrb[0].mxu0
    %v2822 = vpop.f32.mrb[0].mxu0
    %2823 = vdwg.mxu0
    %v2824 = vadd.f32 %v2777, %v2818
    %v2825 = vadd.f32 %v2778, %v2820
    %v2826 = vxor.u32 %v2824, 2147483648
    %v2827 = vxor.u32 %v2825, 2147483648
    %v2828 = vmul.f32 %v2826, 1.442695
    %v2829 = vpow.pop %v2828
    %v2830 = vmul.f32 %v2827, 1.442695
    %v2831 = vpow.pop %v2830
    %v2832 = vadd.f32 %v2829, 1.0
    %v2833 = vadd.f32 %v2831, 1.0
    %v2834 = vrcp.pop %v2832
    %v2835 = vmul.f32 1.0, %v2834
    %v2836 = vrcp.pop %v2833
    %v2837 = vmul.f32 1.0, %v2836
    %v2838 = vtanh.pop %v2825
    %v2839 = vmul.f32 %v2835, %v2770
    %2841 = vrot.lane.b32.xlu0 %v2838, 64
    %v2842 = vpop.permute.xlu0 %2841
    %v2844 = vmul.f32 %v2835, %v2842
    %2846 = vrot.lane.b32.xlu0 %v2844, 64
    %v2847 = vpop.permute.xlu0 %2846
    %v2849 = vadd.f32 %v2839, %v2847
    %v2850 = vtanh.pop %v2849
    %2852 = vrot.lane.b32.xlu0 %v2850, 64
    %v2853 = vpop.permute.xlu0 %2852
    %v2855 = vmul.f32 %v2837, %v2853
    %v2856 = vld [vmem:[%s241] sm:$0xff]
    %v2857 = vld [vmem:[%s241 + $0x8] sm:$0xff]
    %v2858 = vpack.c.bf16 %v2855, %v2855
    %v2860 = vsel %vm2305, %v2858, 0
    %2862 = vmatprep.subr.bf16.mxu0 %v2290
    %2863 = vmatpush1.bf16.msra.mxu0 %v2289
    %2864 = vmatprep.subr.bf16.mxu0 %v2292
    %2865 = vmatpush1.bf16.msra.mxu0 %v2291
    %2866 = vmatprep.subr.bf16.mxu0 %v2294
    %2867 = vmatpush1.bf16.msra.mxu0 %v2293
    %2868 = vmatprep.subr.bf16.mxu0 %v2296
    %2869 = vmatpush1.bf16.msra.mxu0 %v2295
    %2870 = vmatprep.subr.bf16.mxu0 0
    %2871 = vmatpush1.bf16.msra.mxu0 0
    %2872 = vmatprep.subr.bf16.mxu0 0
    %2873 = vmatpush1.bf16.msra.mxu0 0
    %2874 = vmatprep.subr.bf16.mxu0 0
    %2875 = vmatpush1.bf16.msra.mxu0 0
    %2876 = vmatprep.subr.bf16.mxu0 0
    %2877 = vmatpush1.bf16.msra.mxu0 0
    %2878 = vmatprep.subr.bf16.mxu0 0
    %2879 = vmatpush1.bf16.msra.mxu0 0
    %2880 = vmatprep.subr.bf16.mxu0 0
    %2881 = vmatpush1.bf16.msra.mxu0 0
    %2882 = vmatprep.subr.bf16.mxu0 0
    %2883 = vmatpush1.bf16.msra.mxu0 0
    %2884 = vmatprep.subr.bf16.mxu0 0
    %2885 = vmatpush1.bf16.msra.mxu0 0
    %2886 = vmatprep.subr.bf16.mxu0 0
    %2887 = vmatpush1.bf16.msra.mxu0 0
    %2888 = vmatprep.subr.bf16.mxu0 0
    %2889 = vmatpush1.bf16.msra.mxu0 0
    %2890 = vmatprep.subr.bf16.mxu0 0
    %2891 = vmatpush1.bf16.msra.mxu0 0
    %2892 = vmatprep.subr.bf16.mxu0 0
    %2893 = vmatpush1.bf16.msra.mxu0 0
    %2894 = vmatprep.mubr.bf16.mxu0 0
    %2895 = vmatmul.mubr.bf16.gmra.mrb[0].mxu0 %v2860
    %v2896 = vpop.f32.mrb[0].mxu0
    %v2897 = vadd.f32 0.0, %v2896
    %v2898 = vpop.f32.mrb[0].mxu0
    %v2899 = vadd.f32 0.0, %v2898
    %v2900 = vpop.f32.mrb[0].mxu0
    %v2901 = vpop.f32.mrb[0].mxu0
    %2902 = vdwg.mxu0
    %v2903 = vadd.f32 %v2856, %v2897
    %v2904 = vadd.f32 %v2857, %v2899
    %v2905 = vxor.u32 %v2903, 2147483648
    %v2906 = vxor.u32 %v2904, 2147483648
    %v2907 = vmul.f32 %v2905, 1.442695
    %v2908 = vpow.pop %v2907
    %v2909 = vmul.f32 %v2906, 1.442695
    %v2910 = vpow.pop %v2909
    %v2911 = vadd.f32 %v2908, 1.0
    %v2912 = vadd.f32 %v2910, 1.0
    %v2913 = vrcp.pop %v2911
    %v2914 = vmul.f32 1.0, %v2913
    %v2915 = vrcp.pop %v2912
    %v2916 = vmul.f32 1.0, %v2915
    %v2917 = vtanh.pop %v2904
    %v2918 = vmul.f32 %v2914, %v2849
    %2920 = vrot.lane.b32.xlu0 %v2917, 64
    %v2921 = vpop.permute.xlu0 %2920
    %v2923 = vmul.f32 %v2914, %v2921
    %2925 = vrot.lane.b32.xlu0 %v2923, 64
    %v2926 = vpop.permute.xlu0 %2925
    %v2928 = vadd.f32 %v2918, %v2926
    %v2929 = vtanh.pop %v2928
    %2931 = vrot.lane.b32.xlu0 %v2929, 64
    %v2932 = vpop.permute.xlu0 %2931
    %v2934 = vmul.f32 %v2916, %v2932
    %v2935 = vpack.c.bf16 %v2934, %v2934
    %v2936 = vld [vmem:[%s11] sm:$0xf]
    %v2937 = vld [vmem:[%s11 + $0x4] sm:$0xf]
    %v2938 = vld [vmem:[%s11 + $0x8] sm:$0xf]
    %v2939 = vld [vmem:[%s11 + $0xc] sm:$0xf]
    %v2940 = vld [vmem:[%s11 + $0x10] sm:$0xf]
    %v2941 = vld [vmem:[%s11 + $0x14] sm:$0xf]
    %v2942 = vld [vmem:[%s11 + $0x18] sm:$0xf]
    %v2943 = vld [vmem:[%s11 + $0x1c] sm:$0xf]
    %v2944 = vld [vmem:[%s12] sm:$0x1]
    %v2946 = vlaneseq
    %v2947 = vshrl.u32 %v2946, 7
    %v2948 = vsub.s32 0, %v2947
    %v2949 = vrot.slane %v2944, %v2948
    %v2959 = vunpack.c.l.b16 %v2936
    %v2960 = vunpack.c.l.b16 %v2937
    %v2961 = vunpack.c.l.b16 %v2938
    %v2962 = vunpack.c.l.b16 %v2939
    %v2963 = vunpack.c.l.b16 %v2940
    %v2964 = vunpack.c.l.b16 %v2941
    %v2965 = vunpack.c.l.b16 %v2942
    %v2966 = vunpack.c.l.b16 %v2943
    %v2967 = vpack.c.b16 %v2960, %v2959
    %v2968 = vpack.c.b16 %v2962, %v2961
    %v2969 = vpack.c.b16 %v2964, %v2963
    %v2970 = vpack.c.b16 %v2966, %v2965
    %v2976 = vsel %vm2305, %v2935, 0
    %2978 = vmatprep.subr.bf16.mxu0 0
    %2979 = vmatpush1.bf16.msra.mxu0 %v2967
    %2980 = vmatprep.subr.bf16.mxu0 0
    %2981 = vmatpush1.bf16.msra.mxu0 %v2968
    %2982 = vmatprep.subr.bf16.mxu0 0
    %2983 = vmatpush1.bf16.msra.mxu0 %v2969
    %2984 = vmatprep.subr.bf16.mxu0 0
    %2985 = vmatpush1.bf16.msra.mxu0 %v2970
    %2986 = vmatprep.subr.bf16.mxu0 0
    %2987 = vmatpush1.bf16.msra.mxu0 0
    %2988 = vmatprep.subr.bf16.mxu0 0
    %2989 = vmatpush1.bf16.msra.mxu0 0
    %2990 = vmatprep.subr.bf16.mxu0 0
    %2991 = vmatpush1.bf16.msra.mxu0 0
    %2992 = vmatprep.subr.bf16.mxu0 0
    %2993 = vmatpush1.bf16.msra.mxu0 0
    %2994 = vmatprep.subr.bf16.mxu0 0
    %2995 = vmatpush1.bf16.msra.mxu0 0
    %2996 = vmatprep.subr.bf16.mxu0 0
    %2997 = vmatpush1.bf16.msra.mxu0 0
    %2998 = vmatprep.subr.bf16.mxu0 0
    %2999 = vmatpush1.bf16.msra.mxu0 0
    %3000 = vmatprep.subr.bf16.mxu0 0
    %3001 = vmatpush1.bf16.msra.mxu0 0
    %3002 = vmatprep.subr.bf16.mxu0 0
    %3003 = vmatpush1.bf16.msra.mxu0 0
    %3004 = vmatprep.subr.bf16.mxu0 0
    %3005 = vmatpush1.bf16.msra.mxu0 0
    %3006 = vmatprep.subr.bf16.mxu0 0
    %3007 = vmatpush1.bf16.msra.mxu0 0
    %3008 = vmatprep.subr.bf16.mxu0 0
    %3009 = vmatpush1.bf16.msra.mxu0 0
    %3010 = vmatprep.mubr.bf16.mxu0 0
    %3011 = vmatmul.mubr.bf16.gmra.mrb[0].mxu0 %v2976
    %v3012 = vpop.f32.mrb[0].mxu0
    %v3013 = vadd.f32 %v2949, %v3012
    %v3014 = vpop.f32.mrb[0].mxu0
    %v3015 = vpop.f32.mrb[0].mxu0
    %v3016 = vpop.f32.mrb[0].mxu0
    %3017 = vdwg.mxu0
    %3018 = vst [vmem:[%s13] sm:$0xff] %v3013
    // Predicated region
    $region58: #{elmo_classifier_forward.1} parent=1 // pred_check
      _
    $region59: #{elmo_classifier_forward.1} parent=1 // pred_check_branch
      %3020 = sbr.rel (0) target = $region61
    $region60: #{elmo_classifier_forward.1} parent=1 // pred_region
      _
    $region61: #{elmo_classifier_forward.1} parent=1 // pred_fallthru
      _
    // Predicated region
    $region62: #{elmo_classifier_forward.1} parent=1 // pred_check
      _
    $region63: #{elmo_classifier_forward.1} parent=1 // pred_check_branch
      %3022 = sbr.rel (0) target = $region65
    $region64: #{elmo_classifier_forward.1} parent=1 // pred_region
      _
    $region65: #{elmo_classifier_forward.1} parent=1 // pred_fallthru
      _
    %3023 = vsyncpa [#allocation6], 1

</llo_original>
